<compile_context>
chip_gen: v7x
topology: tpu7x:2x2x1
jax: 0.10.0
libtpu: 0.0.40
codegen_flags: <defaults>
</compile_context>

<pallas_src>
import functools

import jax
import jax.numpy as jnp
from jax.experimental import pallas as pl
from jax.experimental.pallas import tpu as pltpu


# --------------------------------------------------------------------------- #
# Hardware-aware helpers
# --------------------------------------------------------------------------- #
def _vmem_limit_bytes():
    """~75% of the physical per-TC VMEM (128 MiB on v5e/v6e, 64 MiB on v7x)."""
    try:
        cap = int(pltpu.get_tpu_info().vmem_capacity_bytes)
    except Exception:
        cap = 128 * 1024 * 1024
    return max(32 * 1024 * 1024, int(cap * 0.75))


def _exp_in_bf16():
    """bf16 exp (EUP) on v6e/v7x only; v5e and older have no bf16 EUP/VPU."""
    try:
        kind = jax.devices()[0].device_kind.lower()
    except Exception:
        return False
    for old in ("v2", "v3", "v4", "v5"):
        if old in kind:
            return False
    return ("v6" in kind) or ("v7" in kind)


def _pick_row_tile(n, tq=None):
    """Row tile: multiple of 32 (int8 sublane granule) dividing N, or N itself."""
    if tq is not None and tq <= n and n % tq == 0 and (tq % 32 == 0 or tq == n):
        return tq
    for t in (512, 256, 128, 64, 32):
        if t <= n and n % t == 0:
            return t
    return n


def _pick_key_tile(n, tk=None):
    """Key tile: multiple of 128 (lane granule) dividing N, or N itself."""
    if tk is not None and tk <= n and n % tk == 0 and (tk % 128 == 0 or tk == n):
        return tk
    for t in (512, 256, 128):
        if t <= n and n % t == 0:
            return t
    return n


def _derive_tiles(n, nheads, f_out, vmem_budget, tq=None, tk=None):
    """Pick (TQ, TK) and shrink them if the rough VMEM footprint is too big."""
    tq = _pick_row_tile(n, tq)
    tk = _pick_key_tile(n, tk)
    fp = f_out + 1

    def est(tq_, tk_):
        stream = 2 * (tq_ * tk_                       # adj int8 (double-buffered)
                      + nheads * tk_ * fp * 2         # [h|1] tile bf16
                      + nheads * tk_ * 4              # f2^T tile f32
                      + tq_ * nheads * 4              # f1 tile f32
                      + tq_ * nheads * f_out * 2)     # out tile bf16
        scratch = 2 * nheads * tq_ * 128 * 4          # acc + m (lane-padded f32)
        temps = 4 * tq_ * tk_ * 4                     # e / att / p / mask working set
        return stream + scratch + temps

    while est(tq, tk) > 0.4 * vmem_budget and tk >= 256 and (tk // 2) % 128 == 0:
        tk //= 2
    while est(tq, tk) > 0.4 * vmem_budget and tq >= 64 and (tq // 2) % 32 == 0:
        tq //= 2
    return tq, tk


# --------------------------------------------------------------------------- #
# Kernel: one multi-head GraphAttentionLayer, tiled over (query rows, key cols)
# --------------------------------------------------------------------------- #
def _gat_layer_kernel(adj_ref, f1_ref, f2t_ref, h_ref, out_ref, m_scr, acc_scr,
                      *, alpha, nheads, f_out, exp_bf16):
    """Grid (N//TQ, N//TK): qi is "parallel", ki is "arbitrary" (online softmax).

    adj_ref : (TQ, TK) int8        edge mask tile
    f1_ref  : (TQ, H)  f32         h @ a1 per head, row tile
    f2t_ref : (H, TK)  f32         (h @ a2)^T per head, key tile
    h_ref   : (H, TK, F_out+1) bf16  projected features + ones column, key tile
    out_ref : (TQ, H*F_out)        torch.cat(heads, dim=1) row tile
    m_scr   : (H, TQ, 1) f32       running max per head
    acc_scr : (H, TQ, F_out+1) f32 running [weighted-sum | denominator] per head
    """
    ki = pl.program_id(1)
    nk = pl.num_programs(1)
    fp = f_out + 1

    @pl.when(ki == 0)
    def _():
        m_scr[...] = jnp.full_like(m_scr, -jnp.inf)
        acc_scr[...] = jnp.zeros_like(acc_scr)

    # int8 adj halves the dominant N^2 DMA; unpack once per tile.
    edge_mask = adj_ref[...].astype(jnp.float32) > 0.0              # (TQ, TK)
    f1_tile = f1_ref[...]                                           # (TQ, H) f32
    f2t = f2t_ref[...]                                              # (H, TK) f32
    neg_big = jnp.float32(-9.0e15)

    for h in range(nheads):                                         # unrolled, H small
        # e = leakyrelu(f1 + f2^T) for this (TQ, TK) tile only.
        e = f1_tile[:, h:h + 1] + f2t[h:h + 1, :]                   # (TQ, TK) f32
        e = jnp.maximum(e, alpha * e)                               # LeakyReLU
        att = jnp.where(edge_mask, e, neg_big)

        # Online (flash-style) softmax along the key axis.
        m_prev = m_scr[h]                                           # (TQ, 1)
        m_new = jnp.maximum(m_prev, jnp.max(att, axis=1, keepdims=True))
        scale = jnp.exp(m_prev - m_new)                             # (TQ, 1) f32
        s = att - m_new
        if exp_bf16:
            p = jnp.exp(s.astype(jnp.bfloat16))                     # bf16 EUP (v6e/v7x)
        else:
            p = jnp.exp(s).astype(jnp.bfloat16)                     # f32 EUP (v5e)

        # [h | 1] column: the MXU matmul also produces the softmax denominator.
        hv = h_ref[h]                                               # (TK, F_out+1) bf16
        contrib = jnp.dot(p, hv, preferred_element_type=jnp.float32)  # (TQ, F_out+1)
        acc_scr[h] = scale * acc_scr[h] + contrib
        m_scr[h] = m_new

    @pl.when(ki == nk - 1)
    def _():
        outs = []
        for h in range(nheads):
            blk = acc_scr[h]                                        # (TQ, F_out+1) f32
            hp = blk[:, :f_out] * pl.reciprocal(blk[:, f_out:fp], approx=True)
            # concat=True -> ELU(alpha=1); exp only on the clipped branch.
            outs.append(jnp.where(hp > 0, hp, jnp.exp(jnp.minimum(hp, 0.0)) - 1.0))
        out_ref[...] = jnp.concatenate(outs, axis=1).astype(out_ref.dtype)


# --------------------------------------------------------------------------- #
# Layer wrapper
# --------------------------------------------------------------------------- #
def gat_multihead_layer(x, adj_i8, W, a1, a2, *, alpha, tq=None, tk=None,
                        vmem_budget=None, exp_bf16=False, out_dtype=jnp.bfloat16):
    """All heads of one GraphAttentionLayer.

    x      : (N, F_in)
    adj_i8 : (N, N) int8 (nonzero == edge)
    W      : (H, F_in, F_out),  a1/a2: (H, F_out)
    returns: (N, H*F_out)  == torch.cat([head_0, head_1, ...], dim=1)
    """
    H, F_in, F_out = W.shape
    N = x.shape[0]
    Fp = F_out + 1
    if vmem_budget is None:
        vmem_budget = _vmem_limit_bytes()
    tq, tk = _derive_tiles(N, H, F_out, vmem_budget, tq, tk)

    # ---- Projection hoisted out of the kernel (bf16 MXU, f32 accumulation) ----
    xb = x.astype(jnp.bfloat16)
    Wb = W.astype(jnp.bfloat16)
    h_heads = jnp.einsum("nf,hfo->hno", xb, Wb,
                         preferred_element_type=jnp.float32)         # (H, N, F_out) f32
    F1 = jnp.einsum("hno,ho->nh", h_heads, a1)                       # (N, H) f32
    F2T = jnp.einsum("hno,ho->hn", h_heads, a2)                      # (H, N) f32
    # Ones column per head -> dot(p, [h | 1]) also yields the softmax denominator.
    h_aug = jnp.concatenate(
        [h_heads, jnp.ones((H, N, 1), jnp.float32)], axis=-1
    ).astype(jnp.bfloat16)                                           # (H, N, F_out+1)

    kernel = functools.partial(_gat_layer_kernel, alpha=alpha, nheads=H,
                               f_out=F_out, exp_bf16=exp_bf16)
    out = pl.pallas_call(
        kernel,
        out_shape=jax.ShapeDtypeStruct((N, H * F_out), out_dtype),
        grid=(N // tq, N // tk),
        in_specs=[
            pl.BlockSpec((tq, tk), lambda qi, ki: (qi, ki)),         # adj int8 tile
            pl.BlockSpec((tq, H), lambda qi, ki: (qi, 0)),           # f1 row tile
            pl.BlockSpec((H, tk), lambda qi, ki: (0, ki)),           # f2^T key tile
            pl.BlockSpec((H, tk, Fp), lambda qi, ki: (0, ki, 0)),    # [h | 1] key tile
        ],
        out_specs=pl.BlockSpec((tq, H * F_out), lambda qi, ki: (qi, 0)),
        scratch_shapes=[
            pltpu.VMEM((H, tq, 1), jnp.float32),    # running max per head
            pltpu.VMEM((H, tq, Fp), jnp.float32),   # running [acc | denom] per head
        ],
        compiler_params=pltpu.CompilerParams(
            dimension_semantics=("parallel", "arbitrary"),
            vmem_limit_bytes=vmem_budget,
        ),
    )(adj_i8, F1, F2T, h_aug)
    return out


def gat_forward(x, adj, params, nheads, alpha, tq=None, tk=None):
    """Dense GAT forward (eval mode -> every F.dropout is identity)."""
    # TODO(synk): training-mode dropout (on inputs and attention) not implemented.
    adj_i8 = (adj > 0).astype(jnp.int8)        # compact edge mask shared by all layers
    budget = _vmem_limit_bytes()
    exp_bf16 = _exp_in_bf16()
    common = dict(alpha=alpha, tq=tq, tk=tk, vmem_budget=budget, exp_bf16=exp_bf16)

    x1 = gat_multihead_layer(x, adj_i8, params["W1"], params["a1_1"], params["a2_1"],
                             out_dtype=jnp.bfloat16, **common)
    x2 = gat_multihead_layer(x1, adj_i8, params["W2"], params["a1_2"], params["a2_2"],
                             out_dtype=jnp.bfloat16, **common)
    x3 = gat_multihead_layer(x2, adj_i8, params["W3"], params["a1_3"], params["a2_3"],
                             out_dtype=jnp.float32, **common)

    N = x3.shape[0]
    nclass = params["W3"].shape[2]
    out = x3.reshape(N, nheads, nclass).mean(axis=1)                 # sum(heads)/nheads
    return jnp.where(out > 0, out, jnp.exp(jnp.minimum(out, 0.0)) - 1.0)  # final ELU


# --------------------------------------------------------------------------- #
# Params
# --------------------------------------------------------------------------- #
def _xavier_uniform(key, shape, fan_in, fan_out, gain):
    bound = gain * (6.0 / (fan_in + fan_out)) ** 0.5
    return jax.random.uniform(key, shape, jnp.float32, -bound, bound)


def init_gat_params(key, nfeat, nhid, nclass, nheads):
    gain = 2.0 ** 0.5
    keys = jax.random.split(key, 9)
    return {
        # layer 1: nfeat -> nhid, H heads
        "W1": _xavier_uniform(keys[0], (nheads, nfeat, nhid), nfeat, nhid, gain),
        "a1_1": _xavier_uniform(keys[1], (nheads, nhid), nhid, 1, gain),
        "a2_1": _xavier_uniform(keys[2], (nheads, nhid), nhid, 1, gain),
        # layer 2: nhid*nheads -> nhid, H heads
        "W2": _xavier_uniform(keys[3], (nheads, nhid * nheads, nhid), nhid * nheads, nhid, gain),
        "a1_2": _xavier_uniform(keys[4], (nheads, nhid), nhid, 1, gain),
        "a2_2": _xavier_uniform(keys[5], (nheads, nhid), nhid, 1, gain),
        # output layer: nhid*nheads -> nclass, H heads (averaged + ELU)
        "W3": _xavier_uniform(keys[6], (nheads, nhid * nheads, nclass), nhid * nheads, nclass, gain),
        "a1_3": _xavier_uniform(keys[7], (nheads, nclass), nclass, 1, gain),
        "a2_3": _xavier_uniform(keys[8], (nheads, nclass), nclass, 1, gain),
    }


if __name__ == "__main__":
    # Small deterministic problem exercising both grid axes (multi row/key tiles):
    # N=256 nodes, nfeat=16, nhid=8, nclass=4, nheads=2, TQ=64, TK=128 -> grid (4, 2).
    N, nfeat, nhid, nclass, nheads = 256, 16, 8, 4, 2
    alpha = 0.2   # LeakyReLU slope
    tq, tk = 64, 128

    key = jax.random.PRNGKey(0)
    k_x, k_adj, k_params = jax.random.split(key, 3)

    x = jax.random.normal(k_x, (N, nfeat), jnp.float32)
    # Random symmetric 0/1 adjacency with self-loops.
    a = (jax.random.uniform(k_adj, (N, N)) > 0.95).astype(jnp.float32)
    adj = jnp.clip(a + a.T + jnp.eye(N, dtype=jnp.float32), 0.0, 1.0)

    params = init_gat_params(k_params, nfeat, nhid, nclass, nheads)

    fwd = jax.jit(functools.partial(gat_forward, nheads=nheads, alpha=alpha, tq=tq, tk=tk))
    out = jax.block_until_ready(fwd(x, adj, params))

    assert out.shape == (N, nclass), out.shape
    assert bool(jnp.all(jnp.isfinite(out)))
    print("KERNEL_OK")
</pallas_src>

<mosaic_0001>
module attributes {stable_mosaic.version = 11 : i64} {
  func.func @_gat_layer_kernel(%arg0: i32, %arg1: i32, %arg2: memref<64x128xi8, #tpu.memory_space<vmem>>, %arg3: memref<64x2xf32, #tpu.memory_space<vmem>>, %arg4: memref<2x128xf32, #tpu.memory_space<vmem>>, %arg5: memref<2x128x9xbf16, #tpu.memory_space<vmem>>, %arg6: memref<64x16xbf16, #tpu.memory_space<vmem>>, %arg7: memref<2x64x1xf32, #tpu.memory_space<vmem>>, %arg8: memref<2x64x9xf32, #tpu.memory_space<vmem>>) attributes {dimension_semantics = [#tpu.dimension_semantics<parallel>, #tpu.dimension_semantics<arbitrary>], iteration_bounds = array<i64: 4, 2>, scalar_prefetch = 0 : i64, scratch_operands = 2 : i64, tpu.core_type = #tpu.core_type<tc>, window_params = [{transform_indices = @transform_0, window_bounds = array<i64: 64, 128>}, {transform_indices = @transform_1, window_bounds = array<i64: 64, 2>}, {transform_indices = @transform_2, window_bounds = array<i64: 2, 128>}, {transform_indices = @transform_3, window_bounds = array<i64: 2, 128, 9>}, {transform_indices = @transform_4, window_bounds = array<i64: 64, 16>}]} {
    %c0_i32 = arith.constant 0 : i32
    %0 = arith.cmpi eq, %arg1, %c0_i32 : i32
    %1 = arith.extui %0 : i1 to i32
    %c0_i32_0 = arith.constant 0 : i32
    %2 = arith.cmpi ne, %1, %c0_i32_0 : i32
    scf.if %2 {
      %cst_44 = arith.constant 0xFF800000 : f32
      %82 = vector.broadcast %cst_44 : f32 to vector<2x64x1xf32>
      %c0_45 = arith.constant 0 : index
      %c0_46 = arith.constant 0 : index
      %c0_47 = arith.constant 0 : index
      %83 = vector.load %arg7[%c0_45, %c0_46, %c0_47] : memref<2x64x1xf32, #tpu.memory_space<vmem>>, vector<2x64x1xf32>
      tpu.vector_store %arg7[%c0_45, %c0_46, %c0_47], %82 {strides = array<i32>} : memref<2x64x1xf32, #tpu.memory_space<vmem>>, vector<2x64x1xf32>,
      %cst_48 = arith.constant 0.000000e+00 : f32
      %84 = vector.broadcast %cst_48 : f32 to vector<2x64x9xf32>
      %c0_49 = arith.constant 0 : index
      %c0_50 = arith.constant 0 : index
      %c0_51 = arith.constant 0 : index
      %85 = vector.load %arg8[%c0_49, %c0_50, %c0_51] : memref<2x64x9xf32, #tpu.memory_space<vmem>>, vector<2x64x9xf32>
      tpu.vector_store %arg8[%c0_49, %c0_50, %c0_51], %84 {strides = array<i32>} : memref<2x64x9xf32, #tpu.memory_space<vmem>>, vector<2x64x9xf32>,
    } else {
    }
    %c0 = arith.constant 0 : index
    %c0_1 = arith.constant 0 : index
    %3 = vector.load %arg2[%c0, %c0_1] : memref<64x128xi8, #tpu.memory_space<vmem>>, vector<64x128xi8>
    %4 = arith.sitofp %3 : vector<64x128xi8> to vector<64x128xf32>
    %cst = arith.constant 0.000000e+00 : f32
    %5 = vector.broadcast %cst : f32 to vector<64x128xf32>
    %6 = arith.cmpf ogt, %4, %5 : vector<64x128xf32>
    %c0_2 = arith.constant 0 : index
    %c0_3 = arith.constant 0 : index
    %7 = vector.load %arg3[%c0_2, %c0_3] : memref<64x2xf32, #tpu.memory_space<vmem>>, vector<64x2xf32>
    %c0_4 = arith.constant 0 : index
    %c0_5 = arith.constant 0 : index
    %8 = vector.load %arg4[%c0_4, %c0_5] : memref<2x128xf32, #tpu.memory_space<vmem>>, vector<2x128xf32>
    %9 = vector.extract_strided_slice %7 {offsets = [0, 0], sizes = [64, 1], strides = [1, 1]} : vector<64x2xf32> to vector<64x1xf32>
    %10 = vector.extract_strided_slice %8 {offsets = [0, 0], sizes = [1, 128], strides = [1, 1]} : vector<2x128xf32> to vector<1x128xf32>
    %11 = vector.broadcast %9 : vector<64x1xf32> to vector<64x128xf32>
    %12 = vector.broadcast %10 : vector<1x128xf32> to vector<64x128xf32>
    %13 = arith.addf %11, %12 : vector<64x128xf32>
    %cst_6 = arith.constant 2.000000e-01 : f32
    %14 = vector.broadcast %cst_6 : f32 to vector<64x128xf32>
    %15 = arith.mulf %14, %13 : vector<64x128xf32>
    %16 = arith.maximumf %13, %15 : vector<64x128xf32>
    %cst_7 = arith.constant -9.000000e+15 : f32
    %17 = vector.broadcast %cst_7 : f32 to vector<64x128xf32>
    %18 = arith.select %6, %16, %17 : vector<64x128xi1>, vector<64x128xf32>
    %c0_8 = arith.constant 0 : index
    %c0_9 = arith.constant 0 : index
    %c0_10 = arith.constant 0 : index
    %19 = vector.load %arg7[%c0_8, %c0_9, %c0_10] : memref<2x64x1xf32, #tpu.memory_space<vmem>>, vector<1x64x1xf32>
    %20 = vector.shape_cast %19 : vector<1x64x1xf32> to vector<64x1xf32>
    %cst_11 = arith.constant dense<0xFF800000> : vector<64xf32>
    %21 = vector.multi_reduction <maximumf>, %18, %cst_11 [1] : vector<64x128xf32> to vector<64xf32>
    %22 = vector.shape_cast %21 : vector<64xf32> to vector<64x1xf32>
    %23 = arith.maximumf %20, %22 : vector<64x1xf32>
    %24 = arith.subf %20, %23 : vector<64x1xf32>
    %25 = math.exp %24 : vector<64x1xf32>
    %26 = vector.broadcast %23 : vector<64x1xf32> to vector<64x128xf32>
    %27 = arith.subf %18, %26 : vector<64x128xf32>
    %28 = math.exp %27 : vector<64x128xf32>
    %29 = arith.truncf %28 : vector<64x128xf32> to vector<64x128xbf16>
    %c0_12 = arith.constant 0 : index
    %c0_13 = arith.constant 0 : index
    %c0_14 = arith.constant 0 : index
    %30 = vector.load %arg5[%c0_12, %c0_13, %c0_14] : memref<2x128x9xbf16, #tpu.memory_space<vmem>>, vector<1x128x9xbf16>
    %31 = vector.shape_cast %30 : vector<1x128x9xbf16> to vector<128x9xbf16>
    %cst_15 = arith.constant dense<0.000000e+00> : vector<64x9xf32>
    %32 = tpu.matmul %29, %31, %cst_15 {dimension_numbers = #tpu.dot_dimension_numbers<[1], [0], [0], [1], [0, 0, 1, 1], [], []>} : vector<64x128xbf16>, vector<128x9xbf16>, vector<64x9xf32> -> vector<64x9xf32>
    %c0_16 = arith.constant 0 : index
    %c0_17 = arith.constant 0 : index
    %c0_18 = arith.constant 0 : index
    %33 = vector.load %arg8[%c0_16, %c0_17, %c0_18] : memref<2x64x9xf32, #tpu.memory_space<vmem>>, vector<1x64x9xf32>
    %34 = vector.shape_cast %33 : vector<1x64x9xf32> to vector<64x9xf32>
    %35 = vector.broadcast %25 : vector<64x1xf32> to vector<64x9xf32>
    %36 = arith.mulf %35, %34 : vector<64x9xf32>
    %37 = arith.addf %36, %32 : vector<64x9xf32>
    %c0_19 = arith.constant 0 : index
    %c0_20 = arith.constant 0 : index
    %c0_21 = arith.constant 0 : index
    %38 = vector.load %arg8[%c0_19, %c0_20, %c0_21] : memref<2x64x9xf32, #tpu.memory_space<vmem>>, vector<1x64x9xf32>
    %39 = vector.shape_cast %38 : vector<1x64x9xf32> to vector<64x9xf32>
    %40 = vector.shape_cast %37 : vector<64x9xf32> to vector<1x64x9xf32>
    tpu.vector_store %arg8[%c0_19, %c0_20, %c0_21], %40 {strides = array<i32>} : memref<2x64x9xf32, #tpu.memory_space<vmem>>, vector<1x64x9xf32>,
    %c0_22 = arith.constant 0 : index
    %c0_23 = arith.constant 0 : index
    %c0_24 = arith.constant 0 : index
    %41 = vector.load %arg7[%c0_22, %c0_23, %c0_24] : memref<2x64x1xf32, #tpu.memory_space<vmem>>, vector<1x64x1xf32>
    %42 = vector.shape_cast %41 : vector<1x64x1xf32> to vector<64x1xf32>
    %43 = vector.shape_cast %23 : vector<64x1xf32> to vector<1x64x1xf32>
    tpu.vector_store %arg7[%c0_22, %c0_23, %c0_24], %43 {strides = array<i32>} : memref<2x64x1xf32, #tpu.memory_space<vmem>>, vector<1x64x1xf32>,
    %44 = vector.extract_strided_slice %7 {offsets = [0, 1], sizes = [64, 1], strides = [1, 1]} : vector<64x2xf32> to vector<64x1xf32>
    %45 = vector.extract_strided_slice %8 {offsets = [1, 0], sizes = [1, 128], strides = [1, 1]} : vector<2x128xf32> to vector<1x128xf32>
    %46 = vector.broadcast %44 : vector<64x1xf32> to vector<64x128xf32>
    %47 = vector.broadcast %45 : vector<1x128xf32> to vector<64x128xf32>
    %48 = arith.addf %46, %47 : vector<64x128xf32>
    %cst_25 = arith.constant 2.000000e-01 : f32
    %49 = vector.broadcast %cst_25 : f32 to vector<64x128xf32>
    %50 = arith.mulf %49, %48 : vector<64x128xf32>
    %51 = arith.maximumf %48, %50 : vector<64x128xf32>
    %cst_26 = arith.constant -9.000000e+15 : f32
    %52 = vector.broadcast %cst_26 : f32 to vector<64x128xf32>
    %53 = arith.select %6, %51, %52 : vector<64x128xi1>, vector<64x128xf32>
    %c1 = arith.constant 1 : index
    %c0_27 = arith.constant 0 : index
    %c0_28 = arith.constant 0 : index
    %54 = vector.load %arg7[%c1, %c0_27, %c0_28] : memref<2x64x1xf32, #tpu.memory_space<vmem>>, vector<1x64x1xf32>
    %55 = vector.shape_cast %54 : vector<1x64x1xf32> to vector<64x1xf32>
    %cst_29 = arith.constant dense<0xFF800000> : vector<64xf32>
    %56 = vector.multi_reduction <maximumf>, %53, %cst_29 [1] : vector<64x128xf32> to vector<64xf32>
    %57 = vector.shape_cast %56 : vector<64xf32> to vector<64x1xf32>
    %58 = arith.maximumf %55, %57 : vector<64x1xf32>
    %59 = arith.subf %55, %58 : vector<64x1xf32>
    %60 = math.exp %59 : vector<64x1xf32>
    %61 = vector.broadcast %58 : vector<64x1xf32> to vector<64x128xf32>
    %62 = arith.subf %53, %61 : vector<64x128xf32>
    %63 = math.exp %62 : vector<64x128xf32>
    %64 = arith.truncf %63 : vector<64x128xf32> to vector<64x128xbf16>
    %c1_30 = arith.constant 1 : index
    %c0_31 = arith.constant 0 : index
    %c0_32 = arith.constant 0 : index
    %65 = vector.load %arg5[%c1_30, %c0_31, %c0_32] : memref<2x128x9xbf16, #tpu.memory_space<vmem>>, vector<1x128x9xbf16>
    %66 = vector.shape_cast %65 : vector<1x128x9xbf16> to vector<128x9xbf16>
    %cst_33 = arith.constant dense<0.000000e+00> : vector<64x9xf32>
    %67 = tpu.matmul %64, %66, %cst_33 {dimension_numbers = #tpu.dot_dimension_numbers<[1], [0], [0], [1], [0, 0, 1, 1], [], []>} : vector<64x128xbf16>, vector<128x9xbf16>, vector<64x9xf32> -> vector<64x9xf32>
    %c1_34 = arith.constant 1 : index
    %c0_35 = arith.constant 0 : index
    %c0_36 = arith.constant 0 : index
    %68 = vector.load %arg8[%c1_34, %c0_35, %c0_36] : memref<2x64x9xf32, #tpu.memory_space<vmem>>, vector<1x64x9xf32>
    %69 = vector.shape_cast %68 : vector<1x64x9xf32> to vector<64x9xf32>
    %70 = vector.broadcast %60 : vector<64x1xf32> to vector<64x9xf32>
    %71 = arith.mulf %70, %69 : vector<64x9xf32>
    %72 = arith.addf %71, %67 : vector<64x9xf32>
    %c1_37 = arith.constant 1 : index
    %c0_38 = arith.constant 0 : index
    %c0_39 = arith.constant 0 : index
    %73 = vector.load %arg8[%c1_37, %c0_38, %c0_39] : memref<2x64x9xf32, #tpu.memory_space<vmem>>, vector<1x64x9xf32>
    %74 = vector.shape_cast %73 : vector<1x64x9xf32> to vector<64x9xf32>
    %75 = vector.shape_cast %72 : vector<64x9xf32> to vector<1x64x9xf32>
    tpu.vector_store %arg8[%c1_37, %c0_38, %c0_39], %75 {strides = array<i32>} : memref<2x64x9xf32, #tpu.memory_space<vmem>>, vector<1x64x9xf32>,
    %c1_40 = arith.constant 1 : index
    %c0_41 = arith.constant 0 : index
    %c0_42 = arith.constant 0 : index
    %76 = vector.load %arg7[%c1_40, %c0_41, %c0_42] : memref<2x64x1xf32, #tpu.memory_space<vmem>>, vector<1x64x1xf32>
    %77 = vector.shape_cast %76 : vector<1x64x1xf32> to vector<64x1xf32>
    %78 = vector.shape_cast %58 : vector<64x1xf32> to vector<1x64x1xf32>
    tpu.vector_store %arg7[%c1_40, %c0_41, %c0_42], %78 {strides = array<i32>} : memref<2x64x1xf32, #tpu.memory_space<vmem>>, vector<1x64x1xf32>,
    %c1_i32 = arith.constant 1 : i32
    %79 = arith.cmpi eq, %arg1, %c1_i32 : i32
    %80 = arith.extui %79 : i1 to i32
    %c0_i32_43 = arith.constant 0 : i32
    %81 = arith.cmpi ne, %80, %c0_i32_43 : i32
    scf.if %81 {
      %c0_44 = arith.constant 0 : index
      %c0_45 = arith.constant 0 : index
      %c0_46 = arith.constant 0 : index
      %82 = vector.load %arg8[%c0_44, %c0_45, %c0_46] : memref<2x64x9xf32, #tpu.memory_space<vmem>>, vector<1x64x9xf32>
      %83 = vector.shape_cast %82 : vector<1x64x9xf32> to vector<64x9xf32>
      %84 = vector.extract_strided_slice %83 {offsets = [0, 0], sizes = [64, 8], strides = [1, 1]} : vector<64x9xf32> to vector<64x8xf32>
      %85 = vector.extract_strided_slice %83 {offsets = [0, 8], sizes = [64, 1], strides = [1, 1]} : vector<64x9xf32> to vector<64x1xf32>
      %86 = tpu.reciprocal %85 {approx = true} : vector<64x1xf32> -> vector<64x1xf32>
      %87 = vector.broadcast %86 : vector<64x1xf32> to vector<64x8xf32>
      %88 = arith.mulf %84, %87 : vector<64x8xf32>
      %cst_47 = arith.constant 0.000000e+00 : f32
      %89 = vector.broadcast %cst_47 : f32 to vector<64x8xf32>
      %90 = arith.cmpf ogt, %88, %89 : vector<64x8xf32>
      %cst_48 = arith.constant 0.000000e+00 : f32
      %91 = vector.broadcast %cst_48 : f32 to vector<64x8xf32>
      %92 = arith.minimumf %88, %91 : vector<64x8xf32>
      %93 = math.exp %92 : vector<64x8xf32>
      %cst_49 = arith.constant 1.000000e+00 : f32
      %94 = vector.broadcast %cst_49 : f32 to vector<64x8xf32>
      %95 = arith.subf %93, %94 : vector<64x8xf32>
      %96 = arith.select %90, %88, %95 : vector<64x8xi1>, vector<64x8xf32>
      %c1_50 = arith.constant 1 : index
      %c0_51 = arith.constant 0 : index
      %c0_52 = arith.constant 0 : index
      %97 = vector.load %arg8[%c1_50, %c0_51, %c0_52] : memref<2x64x9xf32, #tpu.memory_space<vmem>>, vector<1x64x9xf32>
      %98 = vector.shape_cast %97 : vector<1x64x9xf32> to vector<64x9xf32>
      %99 = vector.extract_strided_slice %98 {offsets = [0, 0], sizes = [64, 8], strides = [1, 1]} : vector<64x9xf32> to vector<64x8xf32>
      %100 = vector.extract_strided_slice %98 {offsets = [0, 8], sizes = [64, 1], strides = [1, 1]} : vector<64x9xf32> to vector<64x1xf32>
      %101 = tpu.reciprocal %100 {approx = true} : vector<64x1xf32> -> vector<64x1xf32>
      %102 = vector.broadcast %101 : vector<64x1xf32> to vector<64x8xf32>
      %103 = arith.mulf %99, %102 : vector<64x8xf32>
      %cst_53 = arith.constant 0.000000e+00 : f32
      %104 = vector.broadcast %cst_53 : f32 to vector<64x8xf32>
      %105 = arith.cmpf ogt, %103, %104 : vector<64x8xf32>
      %cst_54 = arith.constant 0.000000e+00 : f32
      %106 = vector.broadcast %cst_54 : f32 to vector<64x8xf32>
      %107 = arith.minimumf %103, %106 : vector<64x8xf32>
      %108 = math.exp %107 : vector<64x8xf32>
      %cst_55 = arith.constant 1.000000e+00 : f32
      %109 = vector.broadcast %cst_55 : f32 to vector<64x8xf32>
      %110 = arith.subf %108, %109 : vector<64x8xf32>
      %111 = arith.select %105, %103, %110 : vector<64x8xi1>, vector<64x8xf32>
      %112 = tpu.concatenate %96, %111 in 1 : vector<64x8xf32>, vector<64x8xf32> -> vector<64x16xf32>
      %113 = arith.truncf %112 : vector<64x16xf32> to vector<64x16xbf16>
      %c0_56 = arith.constant 0 : index
      %c0_57 = arith.constant 0 : index
      %114 = vector.load %arg6[%c0_56, %c0_57] : memref<64x16xbf16, #tpu.memory_space<vmem>>, vector<64x16xbf16>
      tpu.vector_store %arg6[%c0_56, %c0_57], %113 {strides = array<i32>} : memref<64x16xbf16, #tpu.memory_space<vmem>>, vector<64x16xbf16>,
    } else {
    }
    return
  }
  func.func @transform_0(%arg0: i32, %arg1: i32) -> (i32, i32) {
    %c0_i32 = arith.constant 0 : i32
    return %arg0, %arg1 : i32, i32
  }
  func.func @transform_1(%arg0: i32, %arg1: i32) -> (i32, i32) {
    %c0_i32 = arith.constant 0 : i32
    %c0_i32_0 = arith.constant 0 : i32
    return %arg0, %c0_i32 : i32, i32
  }
  func.func @transform_2(%arg0: i32, %arg1: i32) -> (i32, i32) {
    %c0_i32 = arith.constant 0 : i32
    %c0_i32_0 = arith.constant 0 : i32
    return %c0_i32, %arg1 : i32, i32
  }
  func.func @transform_3(%arg0: i32, %arg1: i32) -> (i32, i32, i32) {
    %c0_i32 = arith.constant 0 : i32
    %c0_i32_0 = arith.constant 0 : i32
    %c0_i32_1 = arith.constant 0 : i32
    return %c0_i32, %arg1, %c0_i32_0 : i32, i32, i32
  }
  func.func @transform_4(%arg0: i32, %arg1: i32) -> (i32, i32) {
    %c0_i32 = arith.constant 0 : i32
    %c0_i32_0 = arith.constant 0 : i32
    return %arg0, %c0_i32 : i32, i32
  }
}

module attributes {stable_mosaic.version = 11 : i64} {
  func.func @_gat_layer_kernel(%arg0: i32, %arg1: i32, %arg2: memref<64x128xi8, #tpu.memory_space<vmem>>, %arg3: memref<64x2xf32, #tpu.memory_space<vmem>>, %arg4: memref<2x128xf32, #tpu.memory_space<vmem>>, %arg5: memref<2x128x5xbf16, #tpu.memory_space<vmem>>, %arg6: memref<64x8xf32, #tpu.memory_space<vmem>>, %arg7: memref<2x64x1xf32, #tpu.memory_space<vmem>>, %arg8: memref<2x64x5xf32, #tpu.memory_space<vmem>>) attributes {dimension_semantics = [#tpu.dimension_semantics<parallel>, #tpu.dimension_semantics<arbitrary>], iteration_bounds = array<i64: 4, 2>, scalar_prefetch = 0 : i64, scratch_operands = 2 : i64, tpu.core_type = #tpu.core_type<tc>, window_params = [{transform_indices = @transform_0, window_bounds = array<i64: 64, 128>}, {transform_indices = @transform_1, window_bounds = array<i64: 64, 2>}, {transform_indices = @transform_2, window_bounds = array<i64: 2, 128>}, {transform_indices = @transform_3, window_bounds = array<i64: 2, 128, 5>}, {transform_indices = @transform_4, window_bounds = array<i64: 64, 8>}]} {
    %c0_i32 = arith.constant 0 : i32
    %0 = arith.cmpi eq, %arg1, %c0_i32 : i32
    %1 = arith.extui %0 : i1 to i32
    %c0_i32_0 = arith.constant 0 : i32
    %2 = arith.cmpi ne, %1, %c0_i32_0 : i32
    scf.if %2 {
      %cst_44 = arith.constant 0xFF800000 : f32
      %82 = vector.broadcast %cst_44 : f32 to vector<2x64x1xf32>
      %c0_45 = arith.constant 0 : index
      %c0_46 = arith.constant 0 : index
      %c0_47 = arith.constant 0 : index
      %83 = vector.load %arg7[%c0_45, %c0_46, %c0_47] : memref<2x64x1xf32, #tpu.memory_space<vmem>>, vector<2x64x1xf32>
      tpu.vector_store %arg7[%c0_45, %c0_46, %c0_47], %82 {strides = array<i32>} : memref<2x64x1xf32, #tpu.memory_space<vmem>>, vector<2x64x1xf32>,
      %cst_48 = arith.constant 0.000000e+00 : f32
      %84 = vector.broadcast %cst_48 : f32 to vector<2x64x5xf32>
      %c0_49 = arith.constant 0 : index
      %c0_50 = arith.constant 0 : index
      %c0_51 = arith.constant 0 : index
      %85 = vector.load %arg8[%c0_49, %c0_50, %c0_51] : memref<2x64x5xf32, #tpu.memory_space<vmem>>, vector<2x64x5xf32>
      tpu.vector_store %arg8[%c0_49, %c0_50, %c0_51], %84 {strides = array<i32>} : memref<2x64x5xf32, #tpu.memory_space<vmem>>, vector<2x64x5xf32>,
    } else {
    }
    %c0 = arith.constant 0 : index
    %c0_1 = arith.constant 0 : index
    %3 = vector.load %arg2[%c0, %c0_1] : memref<64x128xi8, #tpu.memory_space<vmem>>, vector<64x128xi8>
    %4 = arith.sitofp %3 : vector<64x128xi8> to vector<64x128xf32>
    %cst = arith.constant 0.000000e+00 : f32
    %5 = vector.broadcast %cst : f32 to vector<64x128xf32>
    %6 = arith.cmpf ogt, %4, %5 : vector<64x128xf32>
    %c0_2 = arith.constant 0 : index
    %c0_3 = arith.constant 0 : index
    %7 = vector.load %arg3[%c0_2, %c0_3] : memref<64x2xf32, #tpu.memory_space<vmem>>, vector<64x2xf32>
    %c0_4 = arith.constant 0 : index
    %c0_5 = arith.constant 0 : index
    %8 = vector.load %arg4[%c0_4, %c0_5] : memref<2x128xf32, #tpu.memory_space<vmem>>, vector<2x128xf32>
    %9 = vector.extract_strided_slice %7 {offsets = [0, 0], sizes = [64, 1], strides = [1, 1]} : vector<64x2xf32> to vector<64x1xf32>
    %10 = vector.extract_strided_slice %8 {offsets = [0, 0], sizes = [1, 128], strides = [1, 1]} : vector<2x128xf32> to vector<1x128xf32>
    %11 = vector.broadcast %9 : vector<64x1xf32> to vector<64x128xf32>
    %12 = vector.broadcast %10 : vector<1x128xf32> to vector<64x128xf32>
    %13 = arith.addf %11, %12 : vector<64x128xf32>
    %cst_6 = arith.constant 2.000000e-01 : f32
    %14 = vector.broadcast %cst_6 : f32 to vector<64x128xf32>
    %15 = arith.mulf %14, %13 : vector<64x128xf32>
    %16 = arith.maximumf %13, %15 : vector<64x128xf32>
    %cst_7 = arith.constant -9.000000e+15 : f32
    %17 = vector.broadcast %cst_7 : f32 to vector<64x128xf32>
    %18 = arith.select %6, %16, %17 : vector<64x128xi1>, vector<64x128xf32>
    %c0_8 = arith.constant 0 : index
    %c0_9 = arith.constant 0 : index
    %c0_10 = arith.constant 0 : index
    %19 = vector.load %arg7[%c0_8, %c0_9, %c0_10] : memref<2x64x1xf32, #tpu.memory_space<vmem>>, vector<1x64x1xf32>
    %20 = vector.shape_cast %19 : vector<1x64x1xf32> to vector<64x1xf32>
    %cst_11 = arith.constant dense<0xFF800000> : vector<64xf32>
    %21 = vector.multi_reduction <maximumf>, %18, %cst_11 [1] : vector<64x128xf32> to vector<64xf32>
    %22 = vector.shape_cast %21 : vector<64xf32> to vector<64x1xf32>
    %23 = arith.maximumf %20, %22 : vector<64x1xf32>
    %24 = arith.subf %20, %23 : vector<64x1xf32>
    %25 = math.exp %24 : vector<64x1xf32>
    %26 = vector.broadcast %23 : vector<64x1xf32> to vector<64x128xf32>
    %27 = arith.subf %18, %26 : vector<64x128xf32>
    %28 = math.exp %27 : vector<64x128xf32>
    %29 = arith.truncf %28 : vector<64x128xf32> to vector<64x128xbf16>
    %c0_12 = arith.constant 0 : index
    %c0_13 = arith.constant 0 : index
    %c0_14 = arith.constant 0 : index
    %30 = vector.load %arg5[%c0_12, %c0_13, %c0_14] : memref<2x128x5xbf16, #tpu.memory_space<vmem>>, vector<1x128x5xbf16>
    %31 = vector.shape_cast %30 : vector<1x128x5xbf16> to vector<128x5xbf16>
    %cst_15 = arith.constant dense<0.000000e+00> : vector<64x5xf32>
    %32 = tpu.matmul %29, %31, %cst_15 {dimension_numbers = #tpu.dot_dimension_numbers<[1], [0], [0], [1], [0, 0, 1, 1], [], []>} : vector<64x128xbf16>, vector<128x5xbf16>, vector<64x5xf32> -> vector<64x5xf32>
    %c0_16 = arith.constant 0 : index
    %c0_17 = arith.constant 0 : index
    %c0_18 = arith.constant 0 : index
    %33 = vector.load %arg8[%c0_16, %c0_17, %c0_18] : memref<2x64x5xf32, #tpu.memory_space<vmem>>, vector<1x64x5xf32>
    %34 = vector.shape_cast %33 : vector<1x64x5xf32> to vector<64x5xf32>
    %35 = vector.broadcast %25 : vector<64x1xf32> to vector<64x5xf32>
    %36 = arith.mulf %35, %34 : vector<64x5xf32>
    %37 = arith.addf %36, %32 : vector<64x5xf32>
    %c0_19 = arith.constant 0 : index
    %c0_20 = arith.constant 0 : index
    %c0_21 = arith.constant 0 : index
    %38 = vector.load %arg8[%c0_19, %c0_20, %c0_21] : memref<2x64x5xf32, #tpu.memory_space<vmem>>, vector<1x64x5xf32>
    %39 = vector.shape_cast %38 : vector<1x64x5xf32> to vector<64x5xf32>
    %40 = vector.shape_cast %37 : vector<64x5xf32> to vector<1x64x5xf32>
    tpu.vector_store %arg8[%c0_19, %c0_20, %c0_21], %40 {strides = array<i32>} : memref<2x64x5xf32, #tpu.memory_space<vmem>>, vector<1x64x5xf32>,
    %c0_22 = arith.constant 0 : index
    %c0_23 = arith.constant 0 : index
    %c0_24 = arith.constant 0 : index
    %41 = vector.load %arg7[%c0_22, %c0_23, %c0_24] : memref<2x64x1xf32, #tpu.memory_space<vmem>>, vector<1x64x1xf32>
    %42 = vector.shape_cast %41 : vector<1x64x1xf32> to vector<64x1xf32>
    %43 = vector.shape_cast %23 : vector<64x1xf32> to vector<1x64x1xf32>
    tpu.vector_store %arg7[%c0_22, %c0_23, %c0_24], %43 {strides = array<i32>} : memref<2x64x1xf32, #tpu.memory_space<vmem>>, vector<1x64x1xf32>,
    %44 = vector.extract_strided_slice %7 {offsets = [0, 1], sizes = [64, 1], strides = [1, 1]} : vector<64x2xf32> to vector<64x1xf32>
    %45 = vector.extract_strided_slice %8 {offsets = [1, 0], sizes = [1, 128], strides = [1, 1]} : vector<2x128xf32> to vector<1x128xf32>
    %46 = vector.broadcast %44 : vector<64x1xf32> to vector<64x128xf32>
    %47 = vector.broadcast %45 : vector<1x128xf32> to vector<64x128xf32>
    %48 = arith.addf %46, %47 : vector<64x128xf32>
    %cst_25 = arith.constant 2.000000e-01 : f32
    %49 = vector.broadcast %cst_25 : f32 to vector<64x128xf32>
    %50 = arith.mulf %49, %48 : vector<64x128xf32>
    %51 = arith.maximumf %48, %50 : vector<64x128xf32>
    %cst_26 = arith.constant -9.000000e+15 : f32
    %52 = vector.broadcast %cst_26 : f32 to vector<64x128xf32>
    %53 = arith.select %6, %51, %52 : vector<64x128xi1>, vector<64x128xf32>
    %c1 = arith.constant 1 : index
    %c0_27 = arith.constant 0 : index
    %c0_28 = arith.constant 0 : index
    %54 = vector.load %arg7[%c1, %c0_27, %c0_28] : memref<2x64x1xf32, #tpu.memory_space<vmem>>, vector<1x64x1xf32>
    %55 = vector.shape_cast %54 : vector<1x64x1xf32> to vector<64x1xf32>
    %cst_29 = arith.constant dense<0xFF800000> : vector<64xf32>
    %56 = vector.multi_reduction <maximumf>, %53, %cst_29 [1] : vector<64x128xf32> to vector<64xf32>
    %57 = vector.shape_cast %56 : vector<64xf32> to vector<64x1xf32>
    %58 = arith.maximumf %55, %57 : vector<64x1xf32>
    %59 = arith.subf %55, %58 : vector<64x1xf32>
    %60 = math.exp %59 : vector<64x1xf32>
    %61 = vector.broadcast %58 : vector<64x1xf32> to vector<64x128xf32>
    %62 = arith.subf %53, %61 : vector<64x128xf32>
    %63 = math.exp %62 : vector<64x128xf32>
    %64 = arith.truncf %63 : vector<64x128xf32> to vector<64x128xbf16>
    %c1_30 = arith.constant 1 : index
    %c0_31 = arith.constant 0 : index
    %c0_32 = arith.constant 0 : index
    %65 = vector.load %arg5[%c1_30, %c0_31, %c0_32] : memref<2x128x5xbf16, #tpu.memory_space<vmem>>, vector<1x128x5xbf16>
    %66 = vector.shape_cast %65 : vector<1x128x5xbf16> to vector<128x5xbf16>
    %cst_33 = arith.constant dense<0.000000e+00> : vector<64x5xf32>
    %67 = tpu.matmul %64, %66, %cst_33 {dimension_numbers = #tpu.dot_dimension_numbers<[1], [0], [0], [1], [0, 0, 1, 1], [], []>} : vector<64x128xbf16>, vector<128x5xbf16>, vector<64x5xf32> -> vector<64x5xf32>
    %c1_34 = arith.constant 1 : index
    %c0_35 = arith.constant 0 : index
    %c0_36 = arith.constant 0 : index
    %68 = vector.load %arg8[%c1_34, %c0_35, %c0_36] : memref<2x64x5xf32, #tpu.memory_space<vmem>>, vector<1x64x5xf32>
    %69 = vector.shape_cast %68 : vector<1x64x5xf32> to vector<64x5xf32>
    %70 = vector.broadcast %60 : vector<64x1xf32> to vector<64x5xf32>
    %71 = arith.mulf %70, %69 : vector<64x5xf32>
    %72 = arith.addf %71, %67 : vector<64x5xf32>
    %c1_37 = arith.constant 1 : index
    %c0_38 = arith.constant 0 : index
    %c0_39 = arith.constant 0 : index
    %73 = vector.load %arg8[%c1_37, %c0_38, %c0_39] : memref<2x64x5xf32, #tpu.memory_space<vmem>>, vector<1x64x5xf32>
    %74 = vector.shape_cast %73 : vector<1x64x5xf32> to vector<64x5xf32>
    %75 = vector.shape_cast %72 : vector<64x5xf32> to vector<1x64x5xf32>
    tpu.vector_store %arg8[%c1_37, %c0_38, %c0_39], %75 {strides = array<i32>} : memref<2x64x5xf32, #tpu.memory_space<vmem>>, vector<1x64x5xf32>,
    %c1_40 = arith.constant 1 : index
    %c0_41 = arith.constant 0 : index
    %c0_42 = arith.constant 0 : index
    %76 = vector.load %arg7[%c1_40, %c0_41, %c0_42] : memref<2x64x1xf32, #tpu.memory_space<vmem>>, vector<1x64x1xf32>
    %77 = vector.shape_cast %76 : vector<1x64x1xf32> to vector<64x1xf32>
    %78 = vector.shape_cast %58 : vector<64x1xf32> to vector<1x64x1xf32>
    tpu.vector_store %arg7[%c1_40, %c0_41, %c0_42], %78 {strides = array<i32>} : memref<2x64x1xf32, #tpu.memory_space<vmem>>, vector<1x64x1xf32>,
    %c1_i32 = arith.constant 1 : i32
    %79 = arith.cmpi eq, %arg1, %c1_i32 : i32
    %80 = arith.extui %79 : i1 to i32
    %c0_i32_43 = arith.constant 0 : i32
    %81 = arith.cmpi ne, %80, %c0_i32_43 : i32
    scf.if %81 {
      %c0_44 = arith.constant 0 : index
      %c0_45 = arith.constant 0 : index
      %c0_46 = arith.constant 0 : index
      %82 = vector.load %arg8[%c0_44, %c0_45, %c0_46] : memref<2x64x5xf32, #tpu.memory_space<vmem>>, vector<1x64x5xf32>
      %83 = vector.shape_cast %82 : vector<1x64x5xf32> to vector<64x5xf32>
      %84 = vector.extract_strided_slice %83 {offsets = [0, 0], sizes = [64, 4], strides = [1, 1]} : vector<64x5xf32> to vector<64x4xf32>
      %85 = vector.extract_strided_slice %83 {offsets = [0, 4], sizes = [64, 1], strides = [1, 1]} : vector<64x5xf32> to vector<64x1xf32>
      %86 = tpu.reciprocal %85 {approx = true} : vector<64x1xf32> -> vector<64x1xf32>
      %87 = vector.broadcast %86 : vector<64x1xf32> to vector<64x4xf32>
      %88 = arith.mulf %84, %87 : vector<64x4xf32>
      %cst_47 = arith.constant 0.000000e+00 : f32
      %89 = vector.broadcast %cst_47 : f32 to vector<64x4xf32>
      %90 = arith.cmpf ogt, %88, %89 : vector<64x4xf32>
      %cst_48 = arith.constant 0.000000e+00 : f32
      %91 = vector.broadcast %cst_48 : f32 to vector<64x4xf32>
      %92 = arith.minimumf %88, %91 : vector<64x4xf32>
      %93 = math.exp %92 : vector<64x4xf32>
      %cst_49 = arith.constant 1.000000e+00 : f32
      %94 = vector.broadcast %cst_49 : f32 to vector<64x4xf32>
      %95 = arith.subf %93, %94 : vector<64x4xf32>
      %96 = arith.select %90, %88, %95 : vector<64x4xi1>, vector<64x4xf32>
      %c1_50 = arith.constant 1 : index
      %c0_51 = arith.constant 0 : index
      %c0_52 = arith.constant 0 : index
      %97 = vector.load %arg8[%c1_50, %c0_51, %c0_52] : memref<2x64x5xf32, #tpu.memory_space<vmem>>, vector<1x64x5xf32>
      %98 = vector.shape_cast %97 : vector<1x64x5xf32> to vector<64x5xf32>
      %99 = vector.extract_strided_slice %98 {offsets = [0, 0], sizes = [64, 4], strides = [1, 1]} : vector<64x5xf32> to vector<64x4xf32>
      %100 = vector.extract_strided_slice %98 {offsets = [0, 4], sizes = [64, 1], strides = [1, 1]} : vector<64x5xf32> to vector<64x1xf32>
      %101 = tpu.reciprocal %100 {approx = true} : vector<64x1xf32> -> vector<64x1xf32>
      %102 = vector.broadcast %101 : vector<64x1xf32> to vector<64x4xf32>
      %103 = arith.mulf %99, %102 : vector<64x4xf32>
      %cst_53 = arith.constant 0.000000e+00 : f32
      %104 = vector.broadcast %cst_53 : f32 to vector<64x4xf32>
      %105 = arith.cmpf ogt, %103, %104 : vector<64x4xf32>
      %cst_54 = arith.constant 0.000000e+00 : f32
      %106 = vector.broadcast %cst_54 : f32 to vector<64x4xf32>
      %107 = arith.minimumf %103, %106 : vector<64x4xf32>
      %108 = math.exp %107 : vector<64x4xf32>
      %cst_55 = arith.constant 1.000000e+00 : f32
      %109 = vector.broadcast %cst_55 : f32 to vector<64x4xf32>
      %110 = arith.subf %108, %109 : vector<64x4xf32>
      %111 = arith.select %105, %103, %110 : vector<64x4xi1>, vector<64x4xf32>
      %112 = tpu.concatenate %96, %111 in 1 : vector<64x4xf32>, vector<64x4xf32> -> vector<64x8xf32>
      %c0_56 = arith.constant 0 : index
      %c0_57 = arith.constant 0 : index
      %113 = vector.load %arg6[%c0_56, %c0_57] : memref<64x8xf32, #tpu.memory_space<vmem>>, vector<64x8xf32>
      tpu.vector_store %arg6[%c0_56, %c0_57], %112 {strides = array<i32>} : memref<64x8xf32, #tpu.memory_space<vmem>>, vector<64x8xf32>,
    } else {
    }
    return
  }
  func.func @transform_0(%arg0: i32, %arg1: i32) -> (i32, i32) {
    %c0_i32 = arith.constant 0 : i32
    return %arg0, %arg1 : i32, i32
  }
  func.func @transform_1(%arg0: i32, %arg1: i32) -> (i32, i32) {
    %c0_i32 = arith.constant 0 : i32
    %c0_i32_0 = arith.constant 0 : i32
    return %arg0, %c0_i32 : i32, i32
  }
  func.func @transform_2(%arg0: i32, %arg1: i32) -> (i32, i32) {
    %c0_i32 = arith.constant 0 : i32
    %c0_i32_0 = arith.constant 0 : i32
    return %c0_i32, %arg1 : i32, i32
  }
  func.func @transform_3(%arg0: i32, %arg1: i32) -> (i32, i32, i32) {
    %c0_i32 = arith.constant 0 : i32
    %c0_i32_0 = arith.constant 0 : i32
    %c0_i32_1 = arith.constant 0 : i32
    return %c0_i32, %arg1, %c0_i32_0 : i32, i32, i32
  }
  func.func @transform_4(%arg0: i32, %arg1: i32) -> (i32, i32) {
    %c0_i32 = arith.constant 0 : i32
    %c0_i32_0 = arith.constant 0 : i32
    return %arg0, %c0_i32 : i32, i32
  }
}

</mosaic_0001>

<llo_original>
// kernel: gat_forward.3
$region0: #{gat_forward.3}
  #allocation0 [shape = 'u32[]', space=smem, size = 0x4, offset = 0x4, fixed_abs, tag = 'smem constant byte address 0x4 - core index']
  #allocation1 [shape = 'u32[144,128]{1,0:T(1,128)}', space=vmem, size = 0x12000, scoped, tag = 'internal scratch']
  #allocation2 [shape = 'f32[2,64,1]{2,1,0:T(8,128)}', space=vmem, size = 0x10000, scoped, tag = 'scratch operand']
  #allocation3 [shape = 'f32[2,64,9]{2,1,0:T(8,128)}', space=vmem, size = 0x10000, scoped, tag = 'scratch operand']
  #allocation13 [shape = 's32[]', space=sflag, size = 0x4, offset = 0, fixed_abs, tag = 'sflag constant byte address 0x0 - dummy sync flag']
  %s0 = inlined_call_operand.hbm [shape: s8[256,256], index: 0, kind: input, shape index: {}]
  %s1 = inlined_call_operand.hbm [shape: f32[256,2], index: 1, kind: input, shape index: {}]
  %s2 = inlined_call_operand.hbm [shape: f32[2,256], index: 2, kind: input, shape index: {}]
  %s3 = inlined_call_operand.hbm [shape: bf16[2,256,9], index: 3, kind: input, shape index: {}]
  %s4 = inlined_call_operand.hbm [shape: bf16[256,16], index: 4, kind: output, shape index: {}]
  %s5 = sld [smem:[#allocation0]]
  $region73: #{gat_forward.3} parent=0
    _
  %s7 = ssub.s32 1, %s5
  %s8 = scalar_select 0, %s7, %s5
  $region1: #{gat_forward.3} parent=0
    #allocation4 [shape = 'u8[16384]{0}', space=vmem, size = 0x4000, scoped, tag = 'input window, operand 0']
    #allocation5 [shape = 's32[2]{0}', space=sflag, size = 0x8, scoped, tag = 'scoped memory for gat_forward.3']
    #allocation6 [shape = 's32[2]{0}', space=sflag, size = 0x8, scoped, tag = 'scoped memory for gat_forward.3']
    #allocation7 [shape = 'u8[65536]{0}', space=vmem, size = 0x10000, scoped, tag = 'input window, operand 1']
    #allocation8 [shape = 's32[2]{0}', space=sflag, size = 0x8, scoped, tag = 'scoped memory for gat_forward.3']
    #allocation9 [shape = 'u8[2048]{0}', space=vmem, size = 0x800, scoped, tag = 'input window, operand 2']
    #allocation10 [shape = 'u8[131072]{0}', space=vmem, size = 0x20000, scoped, tag = 'input window, operand 3']
    #allocation11 [shape = 's32[2]{0}', space=sflag, size = 0x8, scoped, tag = 'scoped memory for gat_forward.3']
    #allocation12 [shape = 'u8[32768]{0}', space=vmem, size = 0x8000, scoped, tag = 'output window, operand 0']
    %9 = vsyncpa [#allocation5], 0
    %s10 = scalar_lea.sflag [#allocation5], 1
    %11 = vsyncpa %s10, 0
    %12 = vsyncpa [#allocation8], 0
    %s13 = scalar_lea.sflag [#allocation8], 1
    %14 = vsyncpa %s13, 0
    %15 = vsyncpa [#allocation11], 0
    %s16 = scalar_lea.sflag [#allocation11], 1
    %17 = vsyncpa %s16, 0
    %18 = vsyncpa [#allocation6], 0
    %s19 = scalar_lea.sflag [#allocation6], 1
    %20 = vsyncpa %s19, 0
    loop: start=0, step=1, limit=10
    $region2: #{gat_forward.3} parent=1 // loop_pre_header
      _
    $region3: #{gat_forward.3} parent=1 // loop_header
      %s22 = sphi 0, %s26
      %p23 = scmp.ge.s32.totalorder %s22, 10
      %s29 = sphi 0, %s41
      %s30 = sphi 0, %s37
      %s31 = sphi 0, %s29
      %s32 = sphi 0, %s30
      %s33 = sphi 0, %s31
      %s34 = sphi 0, %s32
      %s46 = sphi 0, %s48
      %s49 = sphi 0, %s46
      %s50 = sphi 0, %s49
      %s66 = sphi 0, %s50
      %s72 = sphi 0, %s74
      %s75 = sphi 0, %s72
      %s76 = sphi 0, %s75
      %s92 = sphi 0, %s76
      %s98 = sphi 0, %s100
      %s101 = sphi 0, %s98
      %s102 = sphi 0, %s101
      %s118 = sphi 0, %s102
      %s124 = sphi 0, %s126
      %s127 = sphi 0, %s124
      %s128 = sphi 0, %s127
      %s144 = sphi 0, %s128
      %s150 = sphi 0, %s152
      %s153 = sphi 0, %s150
      %s154 = sphi 0, %s153
      %s170 = sphi 0, %s154
    $region4: #{gat_forward.3} parent=1 // loop_header_branch
      %25 = sbr.rel (%p23) target = $region8
    $region5: #{gat_forward.3} parent=1 // loop_body
      %s27 = ssub.s32 %s22, 1
      %s28 = ssub.s32 %s22, 2
      %s35 = sadd.s32 1, %s30
      %p36 = scmp.ge.s32.totalorder %s35, 2
      %s37 = scalar_select %p36, 0, %s35
      %s38 = sadd.s32 1, %s29
      %s39 = scalar_select %p36, %s38, %s29
      %p40 = scmp.ge.s32.totalorder %s39, 4
      %s41 = scalar_select %p40, 0, %s39
      %s42 = ssub.s32 %s29, %s41
      %s43 = ssub.s32 %s30, %s37
      %s44 = sor.u32 %s42, %s43
      %p45 = scmp.eq.s32.totalorder %s44, 0
      %s47 = sadd.s32 %s46, 1
      %s48 = scalar_select %p45, %s46, %s47
      %p51 = pneg %p45
      %p52 = scmp.eq.s32.totalorder %s22, 7
      %p53 = por %p51, %p52
      %p54 = scmp.ne.s32.totalorder %s46, %s49
      %p55 = scmp.eq.s32.totalorder %s22, 0
      %p56 = por %p54, %p55
      %p57 = scmp.ne.s32.totalorder %s46, %s49
      %p58 = scmp.eq.s32.totalorder %s27, 7
      %p59 = por %p57, %p58
      %p60 = scmp.ne.s32.totalorder %s49, %s50
      %p61 = scmp.eq.s32.totalorder %s27, 0
      %p62 = por %p60, %p61
      %p63 = scmp.ne.s32.totalorder %s49, %s50
      %p64 = scmp.eq.s32.totalorder %s28, 7
      %p65 = por %p63, %p64
      %p67 = scmp.ne.s32.totalorder %s50, %s66
      %p68 = scmp.eq.s32.totalorder %s28, 0
      %p69 = por %p67, %p68
      %s70 = ssub.s32 %s29, %s41
      %p71 = scmp.eq.s32.totalorder %s70, 0
      %s73 = sadd.s32 %s72, 1
      %s74 = scalar_select %p71, %s72, %s73
      %p77 = pneg %p71
      %p78 = scmp.eq.s32.totalorder %s22, 7
      %p79 = por %p77, %p78
      %p80 = scmp.ne.s32.totalorder %s72, %s75
      %p81 = scmp.eq.s32.totalorder %s22, 0
      %p82 = por %p80, %p81
      %p83 = scmp.ne.s32.totalorder %s72, %s75
      %p84 = scmp.eq.s32.totalorder %s27, 7
      %p85 = por %p83, %p84
      %p86 = scmp.ne.s32.totalorder %s75, %s76
      %p87 = scmp.eq.s32.totalorder %s27, 0
      %p88 = por %p86, %p87
      %p89 = scmp.ne.s32.totalorder %s75, %s76
      %p90 = scmp.eq.s32.totalorder %s28, 7
      %p91 = por %p89, %p90
      %p93 = scmp.ne.s32.totalorder %s76, %s92
      %p94 = scmp.eq.s32.totalorder %s28, 0
      %p95 = por %p93, %p94
      %s96 = ssub.s32 %s30, %s37
      %p97 = scmp.eq.s32.totalorder %s96, 0
      %s99 = sadd.s32 %s98, 1
      %s100 = scalar_select %p97, %s98, %s99
      %p103 = pneg %p97
      %p104 = scmp.eq.s32.totalorder %s22, 7
      %p105 = por %p103, %p104
      %p106 = scmp.ne.s32.totalorder %s98, %s101
      %p107 = scmp.eq.s32.totalorder %s22, 0
      %p108 = por %p106, %p107
      %p109 = scmp.ne.s32.totalorder %s98, %s101
      %p110 = scmp.eq.s32.totalorder %s27, 7
      %p111 = por %p109, %p110
      %p112 = scmp.ne.s32.totalorder %s101, %s102
      %p113 = scmp.eq.s32.totalorder %s27, 0
      %p114 = por %p112, %p113
      %p115 = scmp.ne.s32.totalorder %s101, %s102
      %p116 = scmp.eq.s32.totalorder %s28, 7
      %p117 = por %p115, %p116
      %p119 = scmp.ne.s32.totalorder %s102, %s118
      %p120 = scmp.eq.s32.totalorder %s28, 0
      %p121 = por %p119, %p120
      %s122 = ssub.s32 %s30, %s37
      %p123 = scmp.eq.s32.totalorder %s122, 0
      %s125 = sadd.s32 %s124, 1
      %s126 = scalar_select %p123, %s124, %s125
      %p129 = pneg %p123
      %p130 = scmp.eq.s32.totalorder %s22, 7
      %p131 = por %p129, %p130
      %p132 = scmp.ne.s32.totalorder %s124, %s127
      %p133 = scmp.eq.s32.totalorder %s22, 0
      %p134 = por %p132, %p133
      %p135 = scmp.ne.s32.totalorder %s124, %s127
      %p136 = scmp.eq.s32.totalorder %s27, 7
      %p137 = por %p135, %p136
      %p138 = scmp.ne.s32.totalorder %s127, %s128
      %p139 = scmp.eq.s32.totalorder %s27, 0
      %p140 = por %p138, %p139
      %p141 = scmp.ne.s32.totalorder %s127, %s128
      %p142 = scmp.eq.s32.totalorder %s28, 7
      %p143 = por %p141, %p142
      %p145 = scmp.ne.s32.totalorder %s128, %s144
      %p146 = scmp.eq.s32.totalorder %s28, 0
      %p147 = por %p145, %p146
      %s148 = ssub.s32 %s29, %s41
      %p149 = scmp.eq.s32.totalorder %s148, 0
      %s151 = sadd.s32 %s150, 1
      %s152 = scalar_select %p149, %s150, %s151
      %p155 = pneg %p149
      %p156 = scmp.eq.s32.totalorder %s22, 7
      %p157 = por %p155, %p156
      %p158 = scmp.ne.s32.totalorder %s150, %s153
      %p159 = scmp.eq.s32.totalorder %s22, 0
      %p160 = por %p158, %p159
      %p161 = scmp.ne.s32.totalorder %s150, %s153
      %p162 = scmp.eq.s32.totalorder %s27, 7
      %p163 = por %p161, %p162
      %p164 = scmp.ne.s32.totalorder %s153, %s154
      %p165 = scmp.eq.s32.totalorder %s27, 0
      %p166 = por %p164, %p165
      %p167 = scmp.ne.s32.totalorder %s153, %s154
      %p168 = scmp.eq.s32.totalorder %s28, 7
      %p169 = por %p167, %p168
      %p171 = scmp.ne.s32.totalorder %s154, %s170
      %p172 = scmp.eq.s32.totalorder %s28, 0
      %p173 = por %p171, %p172
      %p174 = scmp.le.s32.totalorder 1, %s22
      %p175 = scmp.lt.s32.totalorder %s22, 9
      %p176 = pnand %p174, %p175
      %p177 = pneg %p176
      // Predicated region
      $region9: #{gat_forward.3} parent=5 // pred_check
        _
      $region10: #{gat_forward.3} parent=5 // pred_check_branch
        %179 = sbr.rel (%p176) target = $region12
      $region11: #{gat_forward.3} parent=5 // pred_region
        %s180 = ssub.s32 %s22, 1
      $region12: #{gat_forward.3} parent=5 // pred_fallthru
        _
      %p181 = scmp.lt.s32.totalorder %s22, 8
      // Predicated region
      $region13: #{gat_forward.3} parent=5 // pred_check
        %p182 = pneg %p181
      $region14: #{gat_forward.3} parent=5 // pred_check_branch
        %184 = sbr.rel (%p182) target = $region16
      $region15: #{gat_forward.3} parent=5 // pred_region
        // Predicated region
        $region17: #{gat_forward.3} parent=15 // pred_check
          %p185 = pneg %p56
        $region18: #{gat_forward.3} parent=15 // pred_check_branch
          %187 = sbr.rel (%p185) target = $region20
        $region19: #{gat_forward.3} parent=15 // pred_region
          %s188 = sand.u32 %s46, 1
          %s189 = scalar_lea.sflag [#allocation5], %s188
          %s190 = sand.u32 %s46, 1
          %s191 = smul.addr %s190, 16
          %s192 = scalar_lea.vmem [#allocation4], %s191
          %s193 = smul.u32 2, %s29
          %s195 = ssub.s32 256, 256
          %196 = vsyncadd %s189, %s195
          %s197 = smul.addr %s193, 2
          %s198 = sadd.s32 %s30, %s197
          %s199 = smul.addr %s198, 128
          %s200 = scalar_lea.hbm %s0, %s199
          %s201 = sshll.u32 %s192, 4
          %s202 = int_to_ptr.vmem [resolvable:$true] %s201
          %207 = dma.hbm_to_vmem [thread:$0]  %s200, 256, %s202, %s189, 256, 128, 8
        $region20: #{gat_forward.3} parent=15 // pred_fallthru
          _
        // Predicated region
        $region21: #{gat_forward.3} parent=15 // pred_check
          %p208 = pneg %p82
        $region22: #{gat_forward.3} parent=15 // pred_check_branch
          %210 = sbr.rel (%p208) target = $region24
        $region23: #{gat_forward.3} parent=15 // pred_region
          %s211 = sand.u32 %s22, 1
          %s212 = scalar_lea.sflag [#allocation8], %s211
          %s213 = sand.u32 %s72, 1
          %s214 = smul.addr %s213, 64
          %s215 = scalar_lea.vmem [#allocation7], %s214
          %s216 = smul.u32 8, %s29
          %s218 = ssub.s32 1024, 1024
          %219 = vsyncadd %s212, %s218
          %s220 = smul.addr %s216, 128
          %s221 = scalar_lea.hbm %s1, %s220
          %s222 = sshll.u32 %s215, 4
          %s223 = int_to_ptr.vmem [resolvable:$true] %s222
          %228 = dma.hbm_to_vmem [thread:$0]  %s221, 1024, %s223, %s212, 128, 128, 8
        $region24: #{gat_forward.3} parent=15 // pred_fallthru
          _
        // Predicated region
        $region25: #{gat_forward.3} parent=15 // pred_check
          %p229 = pneg %p108
        $region26: #{gat_forward.3} parent=15 // pred_check_branch
          %231 = sbr.rel (%p229) target = $region28
        $region27: #{gat_forward.3} parent=15 // pred_region
          %s232 = sand.u32 %s22, 1
          %s233 = scalar_lea.sflag [#allocation8], %s232
          %s234 = sand.u32 %s98, 1
          %s235 = smul.addr %s234, 2
          %s236 = scalar_lea.vmem [#allocation9], %s235
          %s238 = ssub.s32 32, 32
          %239 = vsyncadd %s233, %s238
          %s240 = smul.addr %s30, 32
          %s241 = scalar_lea.hbm %s2, %s240
          %s243 = sshll.u32 %s236, 4
          %s244 = int_to_ptr.vmem [resolvable:$true] %s243
          %246 = dma.hbm_to_vmem [thread:$0]  %s241, 32, %s244, %s233
        $region28: #{gat_forward.3} parent=15 // pred_fallthru
          _
        // Predicated region
        $region29: #{gat_forward.3} parent=15 // pred_check
          %p247 = pneg %p134
        $region30: #{gat_forward.3} parent=15 // pred_check_branch
          %249 = sbr.rel (%p247) target = $region32
        $region31: #{gat_forward.3} parent=15 // pred_region
          #allocation14 [shape = 'u32[6]{0}', space=smem, size = 0x18, scoped, tag = 'DMA stride descriptor']
          %s250 = sand.u32 %s124, 1
          %s251 = scalar_lea.sflag [#allocation11], %s250
          %s252 = sand.u32 %s124, 1
          %s253 = smul.addr %s252, 128
          %s254 = scalar_lea.vmem [#allocation10], %s253
          %s255 = smul.u32 16, %s30
          %s257 = ssub.s32 2048, 2048
          %258 = vsyncadd %s251, %s257
          %s259 = smul.addr %s255, 64
          %s260 = scalar_lea.hbm %s3, %s259
          %s262 = sshll.u32 1, 14
          %s263 = sxor.u32 4294967295, %s262
          %s265 = sld [smem:[#allocation0]]
          %s266 = sadd.s32 2, %s265
          %s268 = sshll.u32 7, 26
          %s269 = sxor.u32 4294967295, %s268
          %s270 = sand.u32 0, %s269
          %s271 = sshll.u32 %s266, 26
          %s272 = sor.u32 %s270, %s271
          %s273 = sshll.u32 %s254, 4
          %s274 = int_to_ptr.vmem [resolvable:$true] %s273
          %280 = sst [smem:[#allocation14]] 2048
          %s281 = scalar_lea.smem [#allocation14], 1
          %282 = sst [smem:[%s281]] 1024
          %s283 = scalar_lea.smem [#allocation14], 2
          %284 = sst [smem:[%s283]] 16
          %s285 = scalar_lea.smem [#allocation14], 3
          %286 = sst [smem:[%s285]] 64
          %s287 = scalar_lea.smem [#allocation14], 4
          %288 = sst [smem:[%s287]] 64
          %s289 = scalar_lea.smem [#allocation14], 5
          %290 = sst [smem:[%s289]] 4
          %292 = dma.general %s260, 2048, %s274, %s251, [#allocation13], [#allocation14], %s272, 0
        $region32: #{gat_forward.3} parent=15 // pred_fallthru
          _
      $region16: #{gat_forward.3} parent=5 // pred_fallthru
        _
      %p293 = scmp.le.s32.totalorder 1, %s22
      %p294 = scmp.lt.s32.totalorder %s22, 9
      %p295 = pnand %p293, %p294
      %p296 = pneg %p295
      // Predicated region
      $region33: #{gat_forward.3} parent=5 // pred_check
        _
      $region34: #{gat_forward.3} parent=5 // pred_check_branch
        %298 = sbr.rel (%p295) target = $region36
      $region35: #{gat_forward.3} parent=5 // pred_region
        %s299 = ssub.s32 %s22, 1
        %s300 = sand.u32 %s49, 1
        %s301 = scalar_lea.sflag [#allocation5], %s300
        %s302 = sand.u32 %s49, 1
        %s303 = smul.addr %s302, 16
        %s304 = scalar_lea.vmem [#allocation4], %s303
        // Predicated region
        $region37: #{gat_forward.3} parent=35 // pred_check
          %p305 = pneg %p62
        $region38: #{gat_forward.3} parent=35 // pred_check_branch
          %307 = sbr.rel (%p305) target = $region40
        $region39: #{gat_forward.3} parent=35 // pred_region
          %308 = dma.done %s301, 256
        $region40: #{gat_forward.3} parent=35 // pred_fallthru
          _
        %s309 = sand.u32 %s27, 1
        %s310 = scalar_lea.sflag [#allocation8], %s309
        %s311 = sand.u32 %s75, 1
        %s312 = smul.addr %s311, 64
        %s313 = scalar_lea.vmem [#allocation7], %s312
        // Predicated region
        $region41: #{gat_forward.3} parent=35 // pred_check
          %p314 = pneg %p88
        $region42: #{gat_forward.3} parent=35 // pred_check_branch
          %316 = sbr.rel (%p314) target = $region44
        $region43: #{gat_forward.3} parent=35 // pred_region
          %317 = dma.done %s310, 1024
        $region44: #{gat_forward.3} parent=35 // pred_fallthru
          _
        %s318 = sand.u32 %s27, 1
        %s319 = scalar_lea.sflag [#allocation8], %s318
        %s320 = sand.u32 %s101, 1
        %s321 = smul.addr %s320, 2
        %s322 = scalar_lea.vmem [#allocation9], %s321
        // Predicated region
        $region45: #{gat_forward.3} parent=35 // pred_check
          %p323 = pneg %p114
        $region46: #{gat_forward.3} parent=35 // pred_check_branch
          %325 = sbr.rel (%p323) target = $region48
        $region47: #{gat_forward.3} parent=35 // pred_region
          %326 = dma.done %s319, 32
        $region48: #{gat_forward.3} parent=35 // pred_fallthru
          _
        %s327 = sand.u32 %s127, 1
        %s328 = scalar_lea.sflag [#allocation11], %s327
        %s329 = sand.u32 %s127, 1
        %s330 = smul.addr %s329, 128
        %s331 = scalar_lea.vmem [#allocation10], %s330
        // Predicated region
        $region49: #{gat_forward.3} parent=35 // pred_check
          %p332 = pneg %p140
        $region50: #{gat_forward.3} parent=35 // pred_check_branch
          %334 = sbr.rel (%p332) target = $region52
        $region51: #{gat_forward.3} parent=35 // pred_region
          %335 = dma.done %s328, 2048
        $region52: #{gat_forward.3} parent=35 // pred_fallthru
          _
        %s336 = sand.u32 %s49, 1
        %s337 = scalar_lea.sflag [#allocation5], %s336
        %s338 = sand.u32 %s49, 1
        %s339 = smul.addr %s338, 16
        %s340 = scalar_lea.vmem [#allocation4], %s339
        %p341 = pneg %p62
        %p342 = pneg %p59
        %s343 = sand.u32 %s27, 1
        %s344 = scalar_lea.sflag [#allocation8], %s343
        %s345 = sand.u32 %s75, 1
        %s346 = smul.addr %s345, 64
        %s347 = scalar_lea.vmem [#allocation7], %s346
        %p348 = pneg %p88
        %p349 = pneg %p85
        %s350 = sand.u32 %s27, 1
        %s351 = scalar_lea.sflag [#allocation8], %s350
        %s352 = sand.u32 %s101, 1
        %s353 = smul.addr %s352, 2
        %s354 = scalar_lea.vmem [#allocation9], %s353
        %p355 = pneg %p114
        %p356 = pneg %p111
        %s357 = sand.u32 %s127, 1
        %s358 = scalar_lea.sflag [#allocation11], %s357
        %s359 = sand.u32 %s127, 1
        %s360 = smul.addr %s359, 128
        %s361 = scalar_lea.vmem [#allocation10], %s360
        %p362 = pneg %p140
        %p363 = pneg %p137
        %p364 = pneg %p166
        %p365 = pneg %p163
        %s366 = sand.u32 %s153, 1
        %s367 = scalar_lea.sflag [#allocation6], %s366
        %s368 = sand.u32 %s153, 1
        %s369 = smul.addr %s368, 32
        %s370 = scalar_lea.vmem [#allocation12], %s369
        %s371 = smul.u32 2, %s31
        %s372 = smul.u32 8, %s31
        %s373 = smul.u32 16, %s32
        %s374 = smul.u32 4, %s31
        %p376 = scmp.eq.s32.totalorder %s32, 0
        // Predicated region
        $region53: #{gat_forward.3} parent=35 // pred_check
          %p377 = pneg %p376
        $region54: #{gat_forward.3} parent=35 // pred_check_branch
          %379 = sbr.rel (%p377) target = $region56
        $region55: #{gat_forward.3} parent=35 // pred_region
          %vm380 = vcmask 7168
          %381 = vst.msk [vmem:[#allocation2] sm:$0xff] %vm380, -inf
          %382 = vst.msk [vmem:[#allocation2 + $0x8] sm:$0xff] %vm380, -inf
          %383 = vst.msk [vmem:[#allocation2 + $0x10] sm:$0xff] %vm380, -inf
          %384 = vst.msk [vmem:[#allocation2 + $0x18] sm:$0xff] %vm380, -inf
          %385 = vst.msk [vmem:[#allocation2 + $0x20] sm:$0xff] %vm380, -inf
          %386 = vst.msk [vmem:[#allocation2 + $0x28] sm:$0xff] %vm380, -inf
          %387 = vst.msk [vmem:[#allocation2 + $0x30] sm:$0xff] %vm380, -inf
          %388 = vst.msk [vmem:[#allocation2 + $0x38] sm:$0xff] %vm380, -inf
          %389 = vst.msk [vmem:[#allocation2 + $0x40] sm:$0xff] %vm380, -inf
          %390 = vst.msk [vmem:[#allocation2 + $0x48] sm:$0xff] %vm380, -inf
          %391 = vst.msk [vmem:[#allocation2 + $0x50] sm:$0xff] %vm380, -inf
          %392 = vst.msk [vmem:[#allocation2 + $0x58] sm:$0xff] %vm380, -inf
          %393 = vst.msk [vmem:[#allocation2 + $0x60] sm:$0xff] %vm380, -inf
          %394 = vst.msk [vmem:[#allocation2 + $0x68] sm:$0xff] %vm380, -inf
          %395 = vst.msk [vmem:[#allocation2 + $0x70] sm:$0xff] %vm380, -inf
          %396 = vst.msk [vmem:[#allocation2 + $0x78] sm:$0xff] %vm380, -inf
          %vm397 = vcmask 72704
          %398 = vst.msk [vmem:[#allocation3] sm:$0xff] %vm397, 0.0
          %399 = vst.msk [vmem:[#allocation3 + $0x8] sm:$0xff] %vm397, 0.0
          %400 = vst.msk [vmem:[#allocation3 + $0x10] sm:$0xff] %vm397, 0.0
          %401 = vst.msk [vmem:[#allocation3 + $0x18] sm:$0xff] %vm397, 0.0
          %402 = vst.msk [vmem:[#allocation3 + $0x20] sm:$0xff] %vm397, 0.0
          %403 = vst.msk [vmem:[#allocation3 + $0x28] sm:$0xff] %vm397, 0.0
          %404 = vst.msk [vmem:[#allocation3 + $0x30] sm:$0xff] %vm397, 0.0
          %405 = vst.msk [vmem:[#allocation3 + $0x38] sm:$0xff] %vm397, 0.0
          %406 = vst.msk [vmem:[#allocation3 + $0x40] sm:$0xff] %vm397, 0.0
          %407 = vst.msk [vmem:[#allocation3 + $0x48] sm:$0xff] %vm397, 0.0
          %408 = vst.msk [vmem:[#allocation3 + $0x50] sm:$0xff] %vm397, 0.0
          %409 = vst.msk [vmem:[#allocation3 + $0x58] sm:$0xff] %vm397, 0.0
          %410 = vst.msk [vmem:[#allocation3 + $0x60] sm:$0xff] %vm397, 0.0
          %411 = vst.msk [vmem:[#allocation3 + $0x68] sm:$0xff] %vm397, 0.0
          %412 = vst.msk [vmem:[#allocation3 + $0x70] sm:$0xff] %vm397, 0.0
          %413 = vst.msk [vmem:[#allocation3 + $0x78] sm:$0xff] %vm397, 0.0
        $region56: #{gat_forward.3} parent=35 // pred_fallthru
          _
        %v414 = vld [vmem:[%s304] sm:$0xff]
        %v415 = vld [vmem:[%s304 + $0x8] sm:$0xff]
        %v416 = vunpack.c.0.s8 %v414
        %v417 = vunpack.c.1.s8 %v414
        %v418 = vunpack.c.2.s8 %v414
        %v419 = vunpack.c.3.s8 %v414
        %v420 = vunpack.c.0.s8 %v415
        %v421 = vunpack.c.1.s8 %v415
        %v422 = vunpack.c.2.s8 %v415
        %v423 = vunpack.c.3.s8 %v415
        %v424 = vcvt.s32.f32 %v416
        %v425 = vcvt.s32.f32 %v417
        %v426 = vcvt.s32.f32 %v418
        %v427 = vcvt.s32.f32 %v419
        %v428 = vcvt.s32.f32 %v420
        %v429 = vcvt.s32.f32 %v421
        %v430 = vcvt.s32.f32 %v422
        %v431 = vcvt.s32.f32 %v423
        %vm432 = vcmp.gt.f32.partialorder %v424, 0.0
        %vm433 = vcmp.gt.f32.partialorder %v425, 0.0
        %vm434 = vcmp.gt.f32.partialorder %v426, 0.0
        %vm435 = vcmp.gt.f32.partialorder %v427, 0.0
        %vm436 = vcmp.gt.f32.partialorder %v428, 0.0
        %vm437 = vcmp.gt.f32.partialorder %v429, 0.0
        %vm438 = vcmp.gt.f32.partialorder %v430, 0.0
        %vm439 = vcmp.gt.f32.partialorder %v431, 0.0
        %v440 = vld [vmem:[%s313] sm:$0xff]
        %v441 = vld [vmem:[%s313 + $0x8] sm:$0xff]
        %v442 = vld [vmem:[%s313 + $0x10] sm:$0xff]
        %v443 = vld [vmem:[%s313 + $0x18] sm:$0xff]
        %v444 = vld [vmem:[%s313 + $0x20] sm:$0xff]
        %v445 = vld [vmem:[%s313 + $0x28] sm:$0xff]
        %v446 = vld [vmem:[%s313 + $0x30] sm:$0xff]
        %v447 = vld [vmem:[%s313 + $0x38] sm:$0xff]
        %v448 = vld [vmem:[%s322] sm:$0x3]
        %450 = vset.pattern.permute.xlu0 0
        %451 = vperm.xlu0 %450, %v440
        %v452 = vpop.permute.xlu0 %451
        %455 = vset.pattern.permute.xlu0 0
        %456 = vperm.xlu0 %455, %v441
        %v457 = vpop.permute.xlu0 %456
        %460 = vset.pattern.permute.xlu0 0
        %461 = vperm.xlu0 %460, %v442
        %v462 = vpop.permute.xlu0 %461
        %465 = vset.pattern.permute.xlu0 0
        %466 = vperm.xlu0 %465, %v443
        %v467 = vpop.permute.xlu0 %466
        %470 = vset.pattern.permute.xlu0 0
        %471 = vperm.xlu0 %470, %v444
        %v472 = vpop.permute.xlu0 %471
        %475 = vset.pattern.permute.xlu0 0
        %476 = vperm.xlu0 %475, %v445
        %v477 = vpop.permute.xlu0 %476
        %480 = vset.pattern.permute.xlu0 0
        %481 = vperm.xlu0 %480, %v446
        %v482 = vpop.permute.xlu0 %481
        %485 = vset.pattern.permute.xlu0 0
        %486 = vperm.xlu0 %485, %v447
        %v487 = vpop.permute.xlu0 %486
        %v489 = vlaneseq
        %v490 = vshrl.u32 %v489, 7
        %v491 = vsub.s32 0, %v490
        %v492 = vrot.slane %v448, %v491
        %v493 = vadd.f32 %v452, %v492
        %v494 = vadd.f32 %v457, %v492
        %v495 = vadd.f32 %v462, %v492
        %v496 = vadd.f32 %v467, %v492
        %v497 = vadd.f32 %v472, %v492
        %v498 = vadd.f32 %v477, %v492
        %v499 = vadd.f32 %v482, %v492
        %v500 = vadd.f32 %v487, %v492
        %v501 = vmul.f32 %v493, 0.2
        %v502 = vmul.f32 %v494, 0.2
        %v503 = vmul.f32 %v495, 0.2
        %v504 = vmul.f32 %v496, 0.2
        %v505 = vmul.f32 %v497, 0.2
        %v506 = vmul.f32 %v498, 0.2
        %v507 = vmul.f32 %v499, 0.2
        %v508 = vmul.f32 %v500, 0.2
        %v509 = vmax.f32 %v493, %v501
        %v510 = vmax.f32 %v494, %v502
        %v511 = vmax.f32 %v495, %v503
        %v512 = vmax.f32 %v496, %v504
        %v513 = vmax.f32 %v497, %v505
        %v514 = vmax.f32 %v498, %v506
        %v515 = vmax.f32 %v499, %v507
        %v516 = vmax.f32 %v500, %v508
        %v517 = vsel %vm432, %v509, -9e+15
        %v518 = vsel %vm433, %v510, -9e+15
        %v519 = vsel %vm434, %v511, -9e+15
        %v520 = vsel %vm435, %v512, -9e+15
        %v521 = vsel %vm436, %v513, -9e+15
        %v522 = vsel %vm437, %v514, -9e+15
        %v523 = vsel %vm438, %v515, -9e+15
        %v524 = vsel %vm439, %v516, -9e+15
        %v525 = vld [vmem:[#allocation2] sm:$0xff]
        %v526 = vld [vmem:[#allocation2 + $0x8] sm:$0xff]
        %v527 = vld [vmem:[#allocation2 + $0x10] sm:$0xff]
        %v528 = vld [vmem:[#allocation2 + $0x18] sm:$0xff]
        %v529 = vld [vmem:[#allocation2 + $0x20] sm:$0xff]
        %v530 = vld [vmem:[#allocation2 + $0x28] sm:$0xff]
        %v531 = vld [vmem:[#allocation2 + $0x30] sm:$0xff]
        %v532 = vld [vmem:[#allocation2 + $0x38] sm:$0xff]
        %533 = vmax.xlane.f32.xlu0 %v517
        %v534 = vpop.xlane.xlu0 %533
        %535 = vmax.xlane.f32.xlu0 %v518
        %v536 = vpop.xlane.xlu0 %535
        %537 = vmax.xlane.f32.xlu0 %v519
        %v538 = vpop.xlane.xlu0 %537
        %539 = vmax.xlane.f32.xlu0 %v520
        %v540 = vpop.xlane.xlu0 %539
        %541 = vmax.xlane.f32.xlu0 %v521
        %v542 = vpop.xlane.xlu0 %541
        %543 = vmax.xlane.f32.xlu0 %v522
        %v544 = vpop.xlane.xlu0 %543
        %545 = vmax.xlane.f32.xlu0 %v523
        %v546 = vpop.xlane.xlu0 %545
        %547 = vmax.xlane.f32.xlu0 %v524
        %v548 = vpop.xlane.xlu0 %547
        %v549 = vmax.f32 %v525, %v534
        %v550 = vmax.f32 %v526, %v536
        %v551 = vmax.f32 %v527, %v538
        %v552 = vmax.f32 %v528, %v540
        %v553 = vmax.f32 %v529, %v542
        %v554 = vmax.f32 %v530, %v544
        %v555 = vmax.f32 %v531, %v546
        %v556 = vmax.f32 %v532, %v548
        %v557 = vsub.f32 %v525, %v549
        %v558 = vsub.f32 %v526, %v550
        %v559 = vsub.f32 %v527, %v551
        %v560 = vsub.f32 %v528, %v552
        %v561 = vsub.f32 %v529, %v553
        %v562 = vsub.f32 %v530, %v554
        %v563 = vsub.f32 %v531, %v555
        %v564 = vsub.f32 %v532, %v556
        %v565 = vmul.f32 %v557, 1.442695
        %v566 = vpow.pop %v565
        %v567 = vmul.f32 %v558, 1.442695
        %v568 = vpow.pop %v567
        %v569 = vmul.f32 %v559, 1.442695
        %v570 = vpow.pop %v569
        %v571 = vmul.f32 %v560, 1.442695
        %v572 = vpow.pop %v571
        %v573 = vmul.f32 %v561, 1.442695
        %v574 = vpow.pop %v573
        %v575 = vmul.f32 %v562, 1.442695
        %v576 = vpow.pop %v575
        %v577 = vmul.f32 %v563, 1.442695
        %v578 = vpow.pop %v577
        %v579 = vmul.f32 %v564, 1.442695
        %v580 = vpow.pop %v579
        %582 = vset.pattern.permute.xlu0 0
        %583 = vperm.xlu0 %582, %v549
        %v584 = vpop.permute.xlu0 %583
        %587 = vset.pattern.permute.xlu0 0
        %588 = vperm.xlu0 %587, %v550
        %v589 = vpop.permute.xlu0 %588
        %592 = vset.pattern.permute.xlu0 0
        %593 = vperm.xlu0 %592, %v551
        %v594 = vpop.permute.xlu0 %593
        %597 = vset.pattern.permute.xlu0 0
        %598 = vperm.xlu0 %597, %v552
        %v599 = vpop.permute.xlu0 %598
        %602 = vset.pattern.permute.xlu0 0
        %603 = vperm.xlu0 %602, %v553
        %v604 = vpop.permute.xlu0 %603
        %607 = vset.pattern.permute.xlu0 0
        %608 = vperm.xlu0 %607, %v554
        %v609 = vpop.permute.xlu0 %608
        %612 = vset.pattern.permute.xlu0 0
        %613 = vperm.xlu0 %612, %v555
        %v614 = vpop.permute.xlu0 %613
        %617 = vset.pattern.permute.xlu0 0
        %618 = vperm.xlu0 %617, %v556
        %v619 = vpop.permute.xlu0 %618
        %v621 = vsub.f32 %v517, %v584
        %v622 = vsub.f32 %v518, %v589
        %v623 = vsub.f32 %v519, %v594
        %v624 = vsub.f32 %v520, %v599
        %v625 = vsub.f32 %v521, %v604
        %v626 = vsub.f32 %v522, %v609
        %v627 = vsub.f32 %v523, %v614
        %v628 = vsub.f32 %v524, %v619
        %v629 = vmul.f32 %v621, 1.442695
        %v630 = vpow.pop %v629
        %v631 = vmul.f32 %v622, 1.442695
        %v632 = vpow.pop %v631
        %v633 = vmul.f32 %v623, 1.442695
        %v634 = vpow.pop %v633
        %v635 = vmul.f32 %v624, 1.442695
        %v636 = vpow.pop %v635
        %v637 = vmul.f32 %v625, 1.442695
        %v638 = vpow.pop %v637
        %v639 = vmul.f32 %v626, 1.442695
        %v640 = vpow.pop %v639
        %v641 = vmul.f32 %v627, 1.442695
        %v642 = vpow.pop %v641
        %v643 = vmul.f32 %v628, 1.442695
        %v644 = vpow.pop %v643
        %v645 = vpack.c.bf16 %v632, %v630
        %v646 = vpack.c.bf16 %v636, %v634
        %v647 = vpack.c.bf16 %v640, %v638
        %v648 = vpack.c.bf16 %v644, %v642
        %v649 = vld [vmem:[%s331] sm:$0xf]
        %v650 = vld [vmem:[%s331 + $0x4] sm:$0xf]
        %v651 = vld [vmem:[%s331 + $0x8] sm:$0xf]
        %v652 = vld [vmem:[%s331 + $0xc] sm:$0xf]
        %v653 = vld [vmem:[%s331 + $0x10] sm:$0xf]
        %v654 = vld [vmem:[%s331 + $0x14] sm:$0xf]
        %v655 = vld [vmem:[%s331 + $0x18] sm:$0xf]
        %v656 = vld [vmem:[%s331 + $0x1c] sm:$0xf]
        %v657 = vld [vmem:[%s331 + $0x20] sm:$0xf]
        %v658 = vld [vmem:[%s331 + $0x24] sm:$0xf]
        %v659 = vld [vmem:[%s331 + $0x28] sm:$0xf]
        %v660 = vld [vmem:[%s331 + $0x2c] sm:$0xf]
        %v661 = vld [vmem:[%s331 + $0x30] sm:$0xf]
        %v662 = vld [vmem:[%s331 + $0x34] sm:$0xf]
        %v663 = vld [vmem:[%s331 + $0x38] sm:$0xf]
        %v664 = vld [vmem:[%s331 + $0x3c] sm:$0xf]
        %v681 = vunpack.c.l.b16 %v649
        %v682 = vunpack.c.l.b16 %v650
        %v683 = vunpack.c.l.b16 %v651
        %v684 = vunpack.c.l.b16 %v652
        %v685 = vunpack.c.l.b16 %v653
        %v686 = vunpack.c.l.b16 %v654
        %v687 = vunpack.c.l.b16 %v655
        %v688 = vunpack.c.l.b16 %v656
        %v689 = vunpack.c.l.b16 %v657
        %v690 = vunpack.c.l.b16 %v658
        %v691 = vunpack.c.l.b16 %v659
        %v692 = vunpack.c.l.b16 %v660
        %v693 = vunpack.c.l.b16 %v661
        %v694 = vunpack.c.l.b16 %v662
        %v695 = vunpack.c.l.b16 %v663
        %v696 = vunpack.c.l.b16 %v664
        %v697 = vpack.c.b16 %v682, %v681
        %v698 = vpack.c.b16 %v684, %v683
        %v699 = vpack.c.b16 %v686, %v685
        %v700 = vpack.c.b16 %v688, %v687
        %v701 = vpack.c.b16 %v690, %v689
        %v702 = vpack.c.b16 %v692, %v691
        %v703 = vpack.c.b16 %v694, %v693
        %v704 = vpack.c.b16 %v696, %v695
        %713 = vmatprep.subr.bf16.mxu0 0
        %714 = vmatpush1.bf16.msra.mxu0 %v697
        %715 = vmatprep.subr.bf16.mxu0 0
        %716 = vmatpush1.bf16.msra.mxu0 %v698
        %717 = vmatprep.subr.bf16.mxu0 0
        %718 = vmatpush1.bf16.msra.mxu0 %v699
        %719 = vmatprep.subr.bf16.mxu0 0
        %720 = vmatpush1.bf16.msra.mxu0 %v700
        %721 = vmatprep.subr.bf16.mxu0 0
        %722 = vmatpush1.bf16.msra.mxu0 %v701
        %723 = vmatprep.subr.bf16.mxu0 0
        %724 = vmatpush1.bf16.msra.mxu0 %v702
        %725 = vmatprep.subr.bf16.mxu0 0
        %726 = vmatpush1.bf16.msra.mxu0 %v703
        %727 = vmatprep.subr.bf16.mxu0 0
        %728 = vmatpush1.bf16.msra.mxu0 %v704
        %729 = vmatprep.subr.bf16.mxu0 0
        %730 = vmatpush1.bf16.msra.mxu0 0
        %731 = vmatprep.subr.bf16.mxu0 0
        %732 = vmatpush1.bf16.msra.mxu0 0
        %733 = vmatprep.subr.bf16.mxu0 0
        %734 = vmatpush1.bf16.msra.mxu0 0
        %735 = vmatprep.subr.bf16.mxu0 0
        %736 = vmatpush1.bf16.msra.mxu0 0
        %737 = vmatprep.subr.bf16.mxu0 0
        %738 = vmatpush1.bf16.msra.mxu0 0
        %739 = vmatprep.subr.bf16.mxu0 0
        %740 = vmatpush1.bf16.msra.mxu0 0
        %741 = vmatprep.subr.bf16.mxu0 0
        %742 = vmatpush1.bf16.msra.mxu0 0
        %743 = vmatprep.subr.bf16.mxu0 0
        %744 = vmatpush1.bf16.msra.mxu0 0
        %745 = vmatprep.mubr.bf16.mxu0 0
        %746 = vmatmul.mubr.bf16.gmra.mrb[0].mxu0 %v645
        %v747 = vpop.f32.mrb[0].mxu0
        %v748 = vadd.f32 0.0, %v747
        %v749 = vpop.f32.mrb[0].mxu0
        %v750 = vpop.f32.mrb[0].mxu0
        %v751 = vadd.f32 0.0, %v750
        %v752 = vpop.f32.mrb[0].mxu0
        %753 = vmatprep.mubr.bf16.mxu0 0
        %754 = vmatmul.mubr.bf16.gmra.mrb[0].mxu0 %v646
        %v755 = vpop.f32.mrb[0].mxu0
        %v756 = vadd.f32 0.0, %v755
        %v757 = vpop.f32.mrb[0].mxu0
        %v758 = vpop.f32.mrb[0].mxu0
        %v759 = vadd.f32 0.0, %v758
        %v760 = vpop.f32.mrb[0].mxu0
        %761 = vmatprep.mubr.bf16.mxu0 0
        %762 = vmatmul.mubr.bf16.gmra.mrb[0].mxu0 %v647
        %v763 = vpop.f32.mrb[0].mxu0
        %v764 = vadd.f32 0.0, %v763
        %v765 = vpop.f32.mrb[0].mxu0
        %v766 = vpop.f32.mrb[0].mxu0
        %v767 = vadd.f32 0.0, %v766
        %v768 = vpop.f32.mrb[0].mxu0
        %769 = vmatprep.mubr.bf16.mxu0 0
        %770 = vmatmul.mubr.bf16.gmra.mrb[0].mxu0 %v648
        %v771 = vpop.f32.mrb[0].mxu0
        %v772 = vadd.f32 0.0, %v771
        %v773 = vpop.f32.mrb[0].mxu0
        %v774 = vpop.f32.mrb[0].mxu0
        %v775 = vadd.f32 0.0, %v774
        %v776 = vpop.f32.mrb[0].mxu0
        %777 = vdwg.mxu0
        %v778 = vld [vmem:[#allocation3] sm:$0xff]
        %v779 = vld [vmem:[#allocation3 + $0x8] sm:$0xff]
        %v780 = vld [vmem:[#allocation3 + $0x10] sm:$0xff]
        %v781 = vld [vmem:[#allocation3 + $0x18] sm:$0xff]
        %v782 = vld [vmem:[#allocation3 + $0x20] sm:$0xff]
        %v783 = vld [vmem:[#allocation3 + $0x28] sm:$0xff]
        %v784 = vld [vmem:[#allocation3 + $0x30] sm:$0xff]
        %v785 = vld [vmem:[#allocation3 + $0x38] sm:$0xff]
        %787 = vset.pattern.permute.xlu0 0
        %788 = vperm.xlu0 %787, %v566
        %v789 = vpop.permute.xlu0 %788
        %792 = vset.pattern.permute.xlu0 0
        %793 = vperm.xlu0 %792, %v568
        %v794 = vpop.permute.xlu0 %793
        %797 = vset.pattern.permute.xlu0 0
        %798 = vperm.xlu0 %797, %v570
        %v799 = vpop.permute.xlu0 %798
        %802 = vset.pattern.permute.xlu0 0
        %803 = vperm.xlu0 %802, %v572
        %v804 = vpop.permute.xlu0 %803
        %807 = vset.pattern.permute.xlu0 0
        %808 = vperm.xlu0 %807, %v574
        %v809 = vpop.permute.xlu0 %808
        %812 = vset.pattern.permute.xlu0 0
        %813 = vperm.xlu0 %812, %v576
        %v814 = vpop.permute.xlu0 %813
        %817 = vset.pattern.permute.xlu0 0
        %818 = vperm.xlu0 %817, %v578
        %v819 = vpop.permute.xlu0 %818
        %822 = vset.pattern.permute.xlu0 0
        %823 = vperm.xlu0 %822, %v580
        %v824 = vpop.permute.xlu0 %823
        %v826 = vmul.f32 %v789, %v778
        %v827 = vmul.f32 %v794, %v779
        %v828 = vmul.f32 %v799, %v780
        %v829 = vmul.f32 %v804, %v781
        %v830 = vmul.f32 %v809, %v782
        %v831 = vmul.f32 %v814, %v783
        %v832 = vmul.f32 %v819, %v784
        %v833 = vmul.f32 %v824, %v785
        %v834 = vadd.f32 %v826, %v748
        %v835 = vadd.f32 %v827, %v751
        %v836 = vadd.f32 %v828, %v756
        %v837 = vadd.f32 %v829, %v759
        %v838 = vadd.f32 %v830, %v764
        %v839 = vadd.f32 %v831, %v767
        %v840 = vadd.f32 %v832, %v772
        %v841 = vadd.f32 %v833, %v775
        %vm842 = vcmask 72704
        %843 = vst.msk [vmem:[#allocation3] sm:$0xff] %vm842, %v834
        %844 = vst.msk [vmem:[#allocation3 + $0x8] sm:$0xff] %vm842, %v835
        %845 = vst.msk [vmem:[#allocation3 + $0x10] sm:$0xff] %vm842, %v836
        %846 = vst.msk [vmem:[#allocation3 + $0x18] sm:$0xff] %vm842, %v837
        %847 = vst.msk [vmem:[#allocation3 + $0x20] sm:$0xff] %vm842, %v838
        %848 = vst.msk [vmem:[#allocation3 + $0x28] sm:$0xff] %vm842, %v839
        %849 = vst.msk [vmem:[#allocation3 + $0x30] sm:$0xff] %vm842, %v840
        %850 = vst.msk [vmem:[#allocation3 + $0x38] sm:$0xff] %vm842, %v841
        %vm851 = vcmask 7168
        %852 = vst.msk [vmem:[#allocation2] sm:$0xff] %vm851, %v549
        %853 = vst.msk [vmem:[#allocation2 + $0x8] sm:$0xff] %vm851, %v550
        %854 = vst.msk [vmem:[#allocation2 + $0x10] sm:$0xff] %vm851, %v551
        %855 = vst.msk [vmem:[#allocation2 + $0x18] sm:$0xff] %vm851, %v552
        %856 = vst.msk [vmem:[#allocation2 + $0x20] sm:$0xff] %vm851, %v553
        %857 = vst.msk [vmem:[#allocation2 + $0x28] sm:$0xff] %vm851, %v554
        %858 = vst.msk [vmem:[#allocation2 + $0x30] sm:$0xff] %vm851, %v555
        %859 = vst.msk [vmem:[#allocation2 + $0x38] sm:$0xff] %vm851, %v556
        %860 = vset.pattern.permute.xlu0 1
        %861 = vperm.xlu0 %860, %v440
        %v862 = vpop.permute.xlu0 %861
        %864 = vset.pattern.permute.xlu0 1
        %865 = vperm.xlu0 %864, %v441
        %v866 = vpop.permute.xlu0 %865
        %868 = vset.pattern.permute.xlu0 1
        %869 = vperm.xlu0 %868, %v442
        %v870 = vpop.permute.xlu0 %869
        %872 = vset.pattern.permute.xlu0 1
        %873 = vperm.xlu0 %872, %v443
        %v874 = vpop.permute.xlu0 %873
        %876 = vset.pattern.permute.xlu0 1
        %877 = vperm.xlu0 %876, %v444
        %v878 = vpop.permute.xlu0 %877
        %880 = vset.pattern.permute.xlu0 1
        %881 = vperm.xlu0 %880, %v445
        %v882 = vpop.permute.xlu0 %881
        %884 = vset.pattern.permute.xlu0 1
        %885 = vperm.xlu0 %884, %v446
        %v886 = vpop.permute.xlu0 %885
        %888 = vset.pattern.permute.xlu0 1
        %889 = vperm.xlu0 %888, %v447
        %v890 = vpop.permute.xlu0 %889
        %v892 = vlaneseq
        %v893 = vshrl.u32 %v892, 7
        %v894 = vsub.s32 1, %v893
        %v895 = vrot.slane %v448, %v894
        %v896 = vadd.f32 %v862, %v895
        %v897 = vadd.f32 %v866, %v895
        %v898 = vadd.f32 %v870, %v895
        %v899 = vadd.f32 %v874, %v895
        %v900 = vadd.f32 %v878, %v895
        %v901 = vadd.f32 %v882, %v895
        %v902 = vadd.f32 %v886, %v895
        %v903 = vadd.f32 %v890, %v895
        %v904 = vmul.f32 %v896, 0.2
        %v905 = vmul.f32 %v897, 0.2
        %v906 = vmul.f32 %v898, 0.2
        %v907 = vmul.f32 %v899, 0.2
        %v908 = vmul.f32 %v900, 0.2
        %v909 = vmul.f32 %v901, 0.2
        %v910 = vmul.f32 %v902, 0.2
        %v911 = vmul.f32 %v903, 0.2
        %v912 = vmax.f32 %v896, %v904
        %v913 = vmax.f32 %v897, %v905
        %v914 = vmax.f32 %v898, %v906
        %v915 = vmax.f32 %v899, %v907
        %v916 = vmax.f32 %v900, %v908
        %v917 = vmax.f32 %v901, %v909
        %v918 = vmax.f32 %v902, %v910
        %v919 = vmax.f32 %v903, %v911
        %v920 = vsel %vm432, %v912, -9e+15
        %v921 = vsel %vm433, %v913, -9e+15
        %v922 = vsel %vm434, %v914, -9e+15
        %v923 = vsel %vm435, %v915, -9e+15
        %v924 = vsel %vm436, %v916, -9e+15
        %v925 = vsel %vm437, %v917, -9e+15
        %v926 = vsel %vm438, %v918, -9e+15
        %v927 = vsel %vm439, %v919, -9e+15
        %s928 = scalar_lea.vmem [#allocation2], 64
        %v929 = vld [vmem:[%s928] sm:$0xff]
        %v930 = vld [vmem:[%s928 + $0x8] sm:$0xff]
        %v931 = vld [vmem:[%s928 + $0x10] sm:$0xff]
        %v932 = vld [vmem:[%s928 + $0x18] sm:$0xff]
        %v933 = vld [vmem:[%s928 + $0x20] sm:$0xff]
        %v934 = vld [vmem:[%s928 + $0x28] sm:$0xff]
        %v935 = vld [vmem:[%s928 + $0x30] sm:$0xff]
        %v936 = vld [vmem:[%s928 + $0x38] sm:$0xff]
        %937 = vmax.xlane.f32.xlu0 %v920
        %v938 = vpop.xlane.xlu0 %937
        %939 = vmax.xlane.f32.xlu0 %v921
        %v940 = vpop.xlane.xlu0 %939
        %941 = vmax.xlane.f32.xlu0 %v922
        %v942 = vpop.xlane.xlu0 %941
        %943 = vmax.xlane.f32.xlu0 %v923
        %v944 = vpop.xlane.xlu0 %943
        %945 = vmax.xlane.f32.xlu0 %v924
        %v946 = vpop.xlane.xlu0 %945
        %947 = vmax.xlane.f32.xlu0 %v925
        %v948 = vpop.xlane.xlu0 %947
        %949 = vmax.xlane.f32.xlu0 %v926
        %v950 = vpop.xlane.xlu0 %949
        %951 = vmax.xlane.f32.xlu0 %v927
        %v952 = vpop.xlane.xlu0 %951
        %v953 = vmax.f32 %v929, %v938
        %v954 = vmax.f32 %v930, %v940
        %v955 = vmax.f32 %v931, %v942
        %v956 = vmax.f32 %v932, %v944
        %v957 = vmax.f32 %v933, %v946
        %v958 = vmax.f32 %v934, %v948
        %v959 = vmax.f32 %v935, %v950
        %v960 = vmax.f32 %v936, %v952
        %v961 = vsub.f32 %v929, %v953
        %v962 = vsub.f32 %v930, %v954
        %v963 = vsub.f32 %v931, %v955
        %v964 = vsub.f32 %v932, %v956
        %v965 = vsub.f32 %v933, %v957
        %v966 = vsub.f32 %v934, %v958
        %v967 = vsub.f32 %v935, %v959
        %v968 = vsub.f32 %v936, %v960
        %v969 = vmul.f32 %v961, 1.442695
        %v970 = vpow.pop %v969
        %v971 = vmul.f32 %v962, 1.442695
        %v972 = vpow.pop %v971
        %v973 = vmul.f32 %v963, 1.442695
        %v974 = vpow.pop %v973
        %v975 = vmul.f32 %v964, 1.442695
        %v976 = vpow.pop %v975
        %v977 = vmul.f32 %v965, 1.442695
        %v978 = vpow.pop %v977
        %v979 = vmul.f32 %v966, 1.442695
        %v980 = vpow.pop %v979
        %v981 = vmul.f32 %v967, 1.442695
        %v982 = vpow.pop %v981
        %v983 = vmul.f32 %v968, 1.442695
        %v984 = vpow.pop %v983
        %986 = vset.pattern.permute.xlu0 0
        %987 = vperm.xlu0 %986, %v953
        %v988 = vpop.permute.xlu0 %987
        %991 = vset.pattern.permute.xlu0 0
        %992 = vperm.xlu0 %991, %v954
        %v993 = vpop.permute.xlu0 %992
        %996 = vset.pattern.permute.xlu0 0
        %997 = vperm.xlu0 %996, %v955
        %v998 = vpop.permute.xlu0 %997
        %1001 = vset.pattern.permute.xlu0 0
        %1002 = vperm.xlu0 %1001, %v956
        %v1003 = vpop.permute.xlu0 %1002
        %1006 = vset.pattern.permute.xlu0 0
        %1007 = vperm.xlu0 %1006, %v957
        %v1008 = vpop.permute.xlu0 %1007
        %1011 = vset.pattern.permute.xlu0 0
        %1012 = vperm.xlu0 %1011, %v958
        %v1013 = vpop.permute.xlu0 %1012
        %1016 = vset.pattern.permute.xlu0 0
        %1017 = vperm.xlu0 %1016, %v959
        %v1018 = vpop.permute.xlu0 %1017
        %1021 = vset.pattern.permute.xlu0 0
        %1022 = vperm.xlu0 %1021, %v960
        %v1023 = vpop.permute.xlu0 %1022
        %v1025 = vsub.f32 %v920, %v988
        %v1026 = vsub.f32 %v921, %v993
        %v1027 = vsub.f32 %v922, %v998
        %v1028 = vsub.f32 %v923, %v1003
        %v1029 = vsub.f32 %v924, %v1008
        %v1030 = vsub.f32 %v925, %v1013
        %v1031 = vsub.f32 %v926, %v1018
        %v1032 = vsub.f32 %v927, %v1023
        %v1033 = vmul.f32 %v1025, 1.442695
        %v1034 = vpow.pop %v1033
        %v1035 = vmul.f32 %v1026, 1.442695
        %v1036 = vpow.pop %v1035
        %v1037 = vmul.f32 %v1027, 1.442695
        %v1038 = vpow.pop %v1037
        %v1039 = vmul.f32 %v1028, 1.442695
        %v1040 = vpow.pop %v1039
        %v1041 = vmul.f32 %v1029, 1.442695
        %v1042 = vpow.pop %v1041
        %v1043 = vmul.f32 %v1030, 1.442695
        %v1044 = vpow.pop %v1043
        %v1045 = vmul.f32 %v1031, 1.442695
        %v1046 = vpow.pop %v1045
        %v1047 = vmul.f32 %v1032, 1.442695
        %v1048 = vpow.pop %v1047
        %v1049 = vpack.c.bf16 %v1036, %v1034
        %v1050 = vpack.c.bf16 %v1040, %v1038
        %v1051 = vpack.c.bf16 %v1044, %v1042
        %v1052 = vpack.c.bf16 %v1048, %v1046
        %s1053 = scalar_lea.vmem %s331, 64 [#allocation10]
        %v1054 = vld [vmem:[%s1053] sm:$0xf]
        %v1055 = vld [vmem:[%s1053 + $0x4] sm:$0xf]
        %v1056 = vld [vmem:[%s1053 + $0x8] sm:$0xf]
        %v1057 = vld [vmem:[%s1053 + $0xc] sm:$0xf]
        %v1058 = vld [vmem:[%s1053 + $0x10] sm:$0xf]
        %v1059 = vld [vmem:[%s1053 + $0x14] sm:$0xf]
        %v1060 = vld [vmem:[%s1053 + $0x18] sm:$0xf]
        %v1061 = vld [vmem:[%s1053 + $0x1c] sm:$0xf]
        %v1062 = vld [vmem:[%s1053 + $0x20] sm:$0xf]
        %v1063 = vld [vmem:[%s1053 + $0x24] sm:$0xf]
        %v1064 = vld [vmem:[%s1053 + $0x28] sm:$0xf]
        %v1065 = vld [vmem:[%s1053 + $0x2c] sm:$0xf]
        %v1066 = vld [vmem:[%s1053 + $0x30] sm:$0xf]
        %v1067 = vld [vmem:[%s1053 + $0x34] sm:$0xf]
        %v1068 = vld [vmem:[%s1053 + $0x38] sm:$0xf]
        %v1069 = vld [vmem:[%s1053 + $0x3c] sm:$0xf]
        %v1086 = vunpack.c.l.b16 %v1054
        %v1087 = vunpack.c.l.b16 %v1055
        %v1088 = vunpack.c.l.b16 %v1056
        %v1089 = vunpack.c.l.b16 %v1057
        %v1090 = vunpack.c.l.b16 %v1058
        %v1091 = vunpack.c.l.b16 %v1059
        %v1092 = vunpack.c.l.b16 %v1060
        %v1093 = vunpack.c.l.b16 %v1061
        %v1094 = vunpack.c.l.b16 %v1062
        %v1095 = vunpack.c.l.b16 %v1063
        %v1096 = vunpack.c.l.b16 %v1064
        %v1097 = vunpack.c.l.b16 %v1065
        %v1098 = vunpack.c.l.b16 %v1066
        %v1099 = vunpack.c.l.b16 %v1067
        %v1100 = vunpack.c.l.b16 %v1068
        %v1101 = vunpack.c.l.b16 %v1069
        %v1102 = vpack.c.b16 %v1087, %v1086
        %v1103 = vpack.c.b16 %v1089, %v1088
        %v1104 = vpack.c.b16 %v1091, %v1090
        %v1105 = vpack.c.b16 %v1093, %v1092
        %v1106 = vpack.c.b16 %v1095, %v1094
        %v1107 = vpack.c.b16 %v1097, %v1096
        %v1108 = vpack.c.b16 %v1099, %v1098
        %v1109 = vpack.c.b16 %v1101, %v1100
        %1118 = vmatprep.subr.bf16.mxu0 0
        %1119 = vmatpush1.bf16.msra.mxu0 %v1102
        %1120 = vmatprep.subr.bf16.mxu0 0
        %1121 = vmatpush1.bf16.msra.mxu0 %v1103
        %1122 = vmatprep.subr.bf16.mxu0 0
        %1123 = vmatpush1.bf16.msra.mxu0 %v1104
        %1124 = vmatprep.subr.bf16.mxu0 0
        %1125 = vmatpush1.bf16.msra.mxu0 %v1105
        %1126 = vmatprep.subr.bf16.mxu0 0
        %1127 = vmatpush1.bf16.msra.mxu0 %v1106
        %1128 = vmatprep.subr.bf16.mxu0 0
        %1129 = vmatpush1.bf16.msra.mxu0 %v1107
        %1130 = vmatprep.subr.bf16.mxu0 0
        %1131 = vmatpush1.bf16.msra.mxu0 %v1108
        %1132 = vmatprep.subr.bf16.mxu0 0
        %1133 = vmatpush1.bf16.msra.mxu0 %v1109
        %1134 = vmatprep.subr.bf16.mxu0 0
        %1135 = vmatpush1.bf16.msra.mxu0 0
        %1136 = vmatprep.subr.bf16.mxu0 0
        %1137 = vmatpush1.bf16.msra.mxu0 0
        %1138 = vmatprep.subr.bf16.mxu0 0
        %1139 = vmatpush1.bf16.msra.mxu0 0
        %1140 = vmatprep.subr.bf16.mxu0 0
        %1141 = vmatpush1.bf16.msra.mxu0 0
        %1142 = vmatprep.subr.bf16.mxu0 0
        %1143 = vmatpush1.bf16.msra.mxu0 0
        %1144 = vmatprep.subr.bf16.mxu0 0
        %1145 = vmatpush1.bf16.msra.mxu0 0
        %1146 = vmatprep.subr.bf16.mxu0 0
        %1147 = vmatpush1.bf16.msra.mxu0 0
        %1148 = vmatprep.subr.bf16.mxu0 0
        %1149 = vmatpush1.bf16.msra.mxu0 0
        %1150 = vmatprep.mubr.bf16.mxu0 0
        %1151 = vmatmul.mubr.bf16.gmra.mrb[0].mxu0 %v1049
        %v1152 = vpop.f32.mrb[0].mxu0
        %v1153 = vadd.f32 0.0, %v1152
        %v1154 = vpop.f32.mrb[0].mxu0
        %v1155 = vpop.f32.mrb[0].mxu0
        %v1156 = vadd.f32 0.0, %v1155
        %v1157 = vpop.f32.mrb[0].mxu0
        %1158 = vmatprep.mubr.bf16.mxu0 0
        %1159 = vmatmul.mubr.bf16.gmra.mrb[0].mxu0 %v1050
        %v1160 = vpop.f32.mrb[0].mxu0
        %v1161 = vadd.f32 0.0, %v1160
        %v1162 = vpop.f32.mrb[0].mxu0
        %v1163 = vpop.f32.mrb[0].mxu0
        %v1164 = vadd.f32 0.0, %v1163
        %v1165 = vpop.f32.mrb[0].mxu0
        %1166 = vmatprep.mubr.bf16.mxu0 0
        %1167 = vmatmul.mubr.bf16.gmra.mrb[0].mxu0 %v1051
        %v1168 = vpop.f32.mrb[0].mxu0
        %v1169 = vadd.f32 0.0, %v1168
        %v1170 = vpop.f32.mrb[0].mxu0
        %v1171 = vpop.f32.mrb[0].mxu0
        %v1172 = vadd.f32 0.0, %v1171
        %v1173 = vpop.f32.mrb[0].mxu0
        %1174 = vmatprep.mubr.bf16.mxu0 0
        %1175 = vmatmul.mubr.bf16.gmra.mrb[0].mxu0 %v1052
        %v1176 = vpop.f32.mrb[0].mxu0
        %v1177 = vadd.f32 0.0, %v1176
        %v1178 = vpop.f32.mrb[0].mxu0
        %v1179 = vpop.f32.mrb[0].mxu0
        %v1180 = vadd.f32 0.0, %v1179
        %v1181 = vpop.f32.mrb[0].mxu0
        %1182 = vdwg.mxu0
        %s1183 = scalar_lea.vmem [#allocation3], 64
        %v1184 = vld [vmem:[%s1183] sm:$0xff]
        %v1185 = vld [vmem:[%s1183 + $0x8] sm:$0xff]
        %v1186 = vld [vmem:[%s1183 + $0x10] sm:$0xff]
        %v1187 = vld [vmem:[%s1183 + $0x18] sm:$0xff]
        %v1188 = vld [vmem:[%s1183 + $0x20] sm:$0xff]
        %v1189 = vld [vmem:[%s1183 + $0x28] sm:$0xff]
        %v1190 = vld [vmem:[%s1183 + $0x30] sm:$0xff]
        %v1191 = vld [vmem:[%s1183 + $0x38] sm:$0xff]
        %1193 = vset.pattern.permute.xlu0 0
        %1194 = vperm.xlu0 %1193, %v970
        %v1195 = vpop.permute.xlu0 %1194
        %1198 = vset.pattern.permute.xlu0 0
        %1199 = vperm.xlu0 %1198, %v972
        %v1200 = vpop.permute.xlu0 %1199
        %1203 = vset.pattern.permute.xlu0 0
        %1204 = vperm.xlu0 %1203, %v974
        %v1205 = vpop.permute.xlu0 %1204
        %1208 = vset.pattern.permute.xlu0 0
        %1209 = vperm.xlu0 %1208, %v976
        %v1210 = vpop.permute.xlu0 %1209
        %1213 = vset.pattern.permute.xlu0 0
        %1214 = vperm.xlu0 %1213, %v978
        %v1215 = vpop.permute.xlu0 %1214
        %1218 = vset.pattern.permute.xlu0 0
        %1219 = vperm.xlu0 %1218, %v980
        %v1220 = vpop.permute.xlu0 %1219
        %1223 = vset.pattern.permute.xlu0 0
        %1224 = vperm.xlu0 %1223, %v982
        %v1225 = vpop.permute.xlu0 %1224
        %1228 = vset.pattern.permute.xlu0 0
        %1229 = vperm.xlu0 %1228, %v984
        %v1230 = vpop.permute.xlu0 %1229
        %v1232 = vmul.f32 %v1195, %v1184
        %v1233 = vmul.f32 %v1200, %v1185
        %v1234 = vmul.f32 %v1205, %v1186
        %v1235 = vmul.f32 %v1210, %v1187
        %v1236 = vmul.f32 %v1215, %v1188
        %v1237 = vmul.f32 %v1220, %v1189
        %v1238 = vmul.f32 %v1225, %v1190
        %v1239 = vmul.f32 %v1230, %v1191
        %v1240 = vadd.f32 %v1232, %v1153
        %v1241 = vadd.f32 %v1233, %v1156
        %v1242 = vadd.f32 %v1234, %v1161
        %v1243 = vadd.f32 %v1235, %v1164
        %v1244 = vadd.f32 %v1236, %v1169
        %v1245 = vadd.f32 %v1237, %v1172
        %v1246 = vadd.f32 %v1238, %v1177
        %v1247 = vadd.f32 %v1239, %v1180
        %1248 = vst.msk [vmem:[%s1183] sm:$0xff] %vm842, %v1240
        %1249 = vst.msk [vmem:[%s1183 + $0x8] sm:$0xff] %vm842, %v1241
        %1250 = vst.msk [vmem:[%s1183 + $0x10] sm:$0xff] %vm842, %v1242
        %1251 = vst.msk [vmem:[%s1183 + $0x18] sm:$0xff] %vm842, %v1243
        %1252 = vst.msk [vmem:[%s1183 + $0x20] sm:$0xff] %vm842, %v1244
        %1253 = vst.msk [vmem:[%s1183 + $0x28] sm:$0xff] %vm842, %v1245
        %1254 = vst.msk [vmem:[%s1183 + $0x30] sm:$0xff] %vm842, %v1246
        %1255 = vst.msk [vmem:[%s1183 + $0x38] sm:$0xff] %vm842, %v1247
        %1256 = vst.msk [vmem:[%s928] sm:$0xff] %vm851, %v953
        %1257 = vst.msk [vmem:[%s928 + $0x8] sm:$0xff] %vm851, %v954
        %1258 = vst.msk [vmem:[%s928 + $0x10] sm:$0xff] %vm851, %v955
        %1259 = vst.msk [vmem:[%s928 + $0x18] sm:$0xff] %vm851, %v956
        %1260 = vst.msk [vmem:[%s928 + $0x20] sm:$0xff] %vm851, %v957
        %1261 = vst.msk [vmem:[%s928 + $0x28] sm:$0xff] %vm851, %v958
        %1262 = vst.msk [vmem:[%s928 + $0x30] sm:$0xff] %vm851, %v959
        %1263 = vst.msk [vmem:[%s928 + $0x38] sm:$0xff] %vm851, %v960
        %p1264 = scmp.eq.s32.totalorder %s32, 1
        // Predicated region
        $region57: #{gat_forward.3} parent=35 // pred_check
          %p1265 = pneg %p1264
        $region58: #{gat_forward.3} parent=35 // pred_check_branch
          %1267 = sbr.rel (%p1265) target = $region60
        $region59: #{gat_forward.3} parent=35 // pred_region
          %v1268 = vld [vmem:[#allocation3] sm:$0xff]
          %v1269 = vld [vmem:[#allocation3 + $0x8] sm:$0xff]
          %v1270 = vld [vmem:[#allocation3 + $0x10] sm:$0xff]
          %v1271 = vld [vmem:[#allocation3 + $0x18] sm:$0xff]
          %v1272 = vld [vmem:[#allocation3 + $0x20] sm:$0xff]
          %v1273 = vld [vmem:[#allocation3 + $0x28] sm:$0xff]
          %v1274 = vld [vmem:[#allocation3 + $0x30] sm:$0xff]
          %v1275 = vld [vmem:[#allocation3 + $0x38] sm:$0xff]
          %v1276 = vrcp.pop %v1268
          %v1277 = vrcp.pop %v1269
          %v1278 = vrcp.pop %v1270
          %v1279 = vrcp.pop %v1271
          %v1280 = vrcp.pop %v1272
          %v1281 = vrcp.pop %v1273
          %v1282 = vrcp.pop %v1274
          %v1283 = vrcp.pop %v1275
          %1285 = vset.pattern.permute.xlu0 8
          %1286 = vperm.xlu0 %1285, %v1276
          %v1287 = vpop.permute.xlu0 %1286
          %1290 = vset.pattern.permute.xlu0 8
          %1291 = vperm.xlu0 %1290, %v1277
          %v1292 = vpop.permute.xlu0 %1291
          %1295 = vset.pattern.permute.xlu0 8
          %1296 = vperm.xlu0 %1295, %v1278
          %v1297 = vpop.permute.xlu0 %1296
          %1300 = vset.pattern.permute.xlu0 8
          %1301 = vperm.xlu0 %1300, %v1279
          %v1302 = vpop.permute.xlu0 %1301
          %1305 = vset.pattern.permute.xlu0 8
          %1306 = vperm.xlu0 %1305, %v1280
          %v1307 = vpop.permute.xlu0 %1306
          %1310 = vset.pattern.permute.xlu0 8
          %1311 = vperm.xlu0 %1310, %v1281
          %v1312 = vpop.permute.xlu0 %1311
          %1315 = vset.pattern.permute.xlu0 8
          %1316 = vperm.xlu0 %1315, %v1282
          %v1317 = vpop.permute.xlu0 %1316
          %1320 = vset.pattern.permute.xlu0 8
          %1321 = vperm.xlu0 %1320, %v1283
          %v1322 = vpop.permute.xlu0 %1321
          %v1324 = vmul.f32 %v1268, %v1287
          %v1325 = vmul.f32 %v1269, %v1292
          %v1326 = vmul.f32 %v1270, %v1297
          %v1327 = vmul.f32 %v1271, %v1302
          %v1328 = vmul.f32 %v1272, %v1307
          %v1329 = vmul.f32 %v1273, %v1312
          %v1330 = vmul.f32 %v1274, %v1317
          %v1331 = vmul.f32 %v1275, %v1322
          %vm1332 = vcmp.gt.f32.partialorder %v1324, 0.0
          %vm1333 = vcmp.gt.f32.partialorder %v1325, 0.0
          %vm1334 = vcmp.gt.f32.partialorder %v1326, 0.0
          %vm1335 = vcmp.gt.f32.partialorder %v1327, 0.0
          %vm1336 = vcmp.gt.f32.partialorder %v1328, 0.0
          %vm1337 = vcmp.gt.f32.partialorder %v1329, 0.0
          %vm1338 = vcmp.gt.f32.partialorder %v1330, 0.0
          %vm1339 = vcmp.gt.f32.partialorder %v1331, 0.0
          %v1340 = vmin.f32 %v1324, 0.0
          %v1341 = vmin.f32 %v1325, 0.0
          %v1342 = vmin.f32 %v1326, 0.0
          %v1343 = vmin.f32 %v1327, 0.0
          %v1344 = vmin.f32 %v1328, 0.0
          %v1345 = vmin.f32 %v1329, 0.0
          %v1346 = vmin.f32 %v1330, 0.0
          %v1347 = vmin.f32 %v1331, 0.0
          %v1348 = vmul.f32 %v1340, 1.442695
          %v1349 = vpow.pop %v1348
          %v1350 = vmul.f32 %v1341, 1.442695
          %v1351 = vpow.pop %v1350
          %v1352 = vmul.f32 %v1342, 1.442695
          %v1353 = vpow.pop %v1352
          %v1354 = vmul.f32 %v1343, 1.442695
          %v1355 = vpow.pop %v1354
          %v1356 = vmul.f32 %v1344, 1.442695
          %v1357 = vpow.pop %v1356
          %v1358 = vmul.f32 %v1345, 1.442695
          %v1359 = vpow.pop %v1358
          %v1360 = vmul.f32 %v1346, 1.442695
          %v1361 = vpow.pop %v1360
          %v1362 = vmul.f32 %v1347, 1.442695
          %v1363 = vpow.pop %v1362
          %v1364 = vsub.f32 %v1349, 1.0
          %v1365 = vsub.f32 %v1351, 1.0
          %v1366 = vsub.f32 %v1353, 1.0
          %v1367 = vsub.f32 %v1355, 1.0
          %v1368 = vsub.f32 %v1357, 1.0
          %v1369 = vsub.f32 %v1359, 1.0
          %v1370 = vsub.f32 %v1361, 1.0
          %v1371 = vsub.f32 %v1363, 1.0
          %v1372 = vsel %vm1332, %v1324, %v1364
          %v1373 = vsel %vm1333, %v1325, %v1365
          %v1374 = vsel %vm1334, %v1326, %v1366
          %v1375 = vsel %vm1335, %v1327, %v1367
          %v1376 = vsel %vm1336, %v1328, %v1368
          %v1377 = vsel %vm1337, %v1329, %v1369
          %v1378 = vsel %vm1338, %v1330, %v1370
          %v1379 = vsel %vm1339, %v1331, %v1371
          %v1380 = vld [vmem:[%s1183] sm:$0xff]
          %v1381 = vld [vmem:[%s1183 + $0x8] sm:$0xff]
          %v1382 = vld [vmem:[%s1183 + $0x10] sm:$0xff]
          %v1383 = vld [vmem:[%s1183 + $0x18] sm:$0xff]
          %v1384 = vld [vmem:[%s1183 + $0x20] sm:$0xff]
          %v1385 = vld [vmem:[%s1183 + $0x28] sm:$0xff]
          %v1386 = vld [vmem:[%s1183 + $0x30] sm:$0xff]
          %v1387 = vld [vmem:[%s1183 + $0x38] sm:$0xff]
          %v1388 = vrcp.pop %v1380
          %v1389 = vrcp.pop %v1381
          %v1390 = vrcp.pop %v1382
          %v1391 = vrcp.pop %v1383
          %v1392 = vrcp.pop %v1384
          %v1393 = vrcp.pop %v1385
          %v1394 = vrcp.pop %v1386
          %v1395 = vrcp.pop %v1387
          %1397 = vset.pattern.permute.xlu0 8
          %1398 = vperm.xlu0 %1397, %v1388
          %v1399 = vpop.permute.xlu0 %1398
          %1402 = vset.pattern.permute.xlu0 8
          %1403 = vperm.xlu0 %1402, %v1389
          %v1404 = vpop.permute.xlu0 %1403
          %1407 = vset.pattern.permute.xlu0 8
          %1408 = vperm.xlu0 %1407, %v1390
          %v1409 = vpop.permute.xlu0 %1408
          %1412 = vset.pattern.permute.xlu0 8
          %1413 = vperm.xlu0 %1412, %v1391
          %v1414 = vpop.permute.xlu0 %1413
          %1417 = vset.pattern.permute.xlu0 8
          %1418 = vperm.xlu0 %1417, %v1392
          %v1419 = vpop.permute.xlu0 %1418
          %1422 = vset.pattern.permute.xlu0 8
          %1423 = vperm.xlu0 %1422, %v1393
          %v1424 = vpop.permute.xlu0 %1423
          %1427 = vset.pattern.permute.xlu0 8
          %1428 = vperm.xlu0 %1427, %v1394
          %v1429 = vpop.permute.xlu0 %1428
          %1432 = vset.pattern.permute.xlu0 8
          %1433 = vperm.xlu0 %1432, %v1395
          %v1434 = vpop.permute.xlu0 %1433
          %v1436 = vmul.f32 %v1380, %v1399
          %v1437 = vmul.f32 %v1381, %v1404
          %v1438 = vmul.f32 %v1382, %v1409
          %v1439 = vmul.f32 %v1383, %v1414
          %v1440 = vmul.f32 %v1384, %v1419
          %v1441 = vmul.f32 %v1385, %v1424
          %v1442 = vmul.f32 %v1386, %v1429
          %v1443 = vmul.f32 %v1387, %v1434
          %vm1444 = vcmp.gt.f32.partialorder %v1436, 0.0
          %vm1445 = vcmp.gt.f32.partialorder %v1437, 0.0
          %vm1446 = vcmp.gt.f32.partialorder %v1438, 0.0
          %vm1447 = vcmp.gt.f32.partialorder %v1439, 0.0
          %vm1448 = vcmp.gt.f32.partialorder %v1440, 0.0
          %vm1449 = vcmp.gt.f32.partialorder %v1441, 0.0
          %vm1450 = vcmp.gt.f32.partialorder %v1442, 0.0
          %vm1451 = vcmp.gt.f32.partialorder %v1443, 0.0
          %v1452 = vmin.f32 %v1436, 0.0
          %v1453 = vmin.f32 %v1437, 0.0
          %v1454 = vmin.f32 %v1438, 0.0
          %v1455 = vmin.f32 %v1439, 0.0
          %v1456 = vmin.f32 %v1440, 0.0
          %v1457 = vmin.f32 %v1441, 0.0
          %v1458 = vmin.f32 %v1442, 0.0
          %v1459 = vmin.f32 %v1443, 0.0
          %v1460 = vmul.f32 %v1452, 1.442695
          %v1461 = vpow.pop %v1460
          %v1462 = vmul.f32 %v1453, 1.442695
          %v1463 = vpow.pop %v1462
          %v1464 = vmul.f32 %v1454, 1.442695
          %v1465 = vpow.pop %v1464
          %v1466 = vmul.f32 %v1455, 1.442695
          %v1467 = vpow.pop %v1466
          %v1468 = vmul.f32 %v1456, 1.442695
          %v1469 = vpow.pop %v1468
          %v1470 = vmul.f32 %v1457, 1.442695
          %v1471 = vpow.pop %v1470
          %v1472 = vmul.f32 %v1458, 1.442695
          %v1473 = vpow.pop %v1472
          %v1474 = vmul.f32 %v1459, 1.442695
          %v1475 = vpow.pop %v1474
          %v1476 = vsub.f32 %v1461, 1.0
          %v1477 = vsub.f32 %v1463, 1.0
          %v1478 = vsub.f32 %v1465, 1.0
          %v1479 = vsub.f32 %v1467, 1.0
          %v1480 = vsub.f32 %v1469, 1.0
          %v1481 = vsub.f32 %v1471, 1.0
          %v1482 = vsub.f32 %v1473, 1.0
          %v1483 = vsub.f32 %v1475, 1.0
          %v1484 = vsel %vm1444, %v1436, %v1476
          %v1485 = vsel %vm1445, %v1437, %v1477
          %v1486 = vsel %vm1446, %v1438, %v1478
          %v1487 = vsel %vm1447, %v1439, %v1479
          %v1488 = vsel %vm1448, %v1440, %v1480
          %v1489 = vsel %vm1449, %v1441, %v1481
          %v1490 = vsel %vm1450, %v1442, %v1482
          %v1491 = vsel %vm1451, %v1443, %v1483
          %1500 = vrot.lane.b32.xlu0 %v1484, 8
          %v1501 = vpop.permute.xlu0 %1500
          %1502 = vrot.lane.b32.xlu0 %v1485, 8
          %v1503 = vpop.permute.xlu0 %1502
          %1504 = vrot.lane.b32.xlu0 %v1486, 8
          %v1505 = vpop.permute.xlu0 %1504
          %1506 = vrot.lane.b32.xlu0 %v1487, 8
          %v1507 = vpop.permute.xlu0 %1506
          %1508 = vrot.lane.b32.xlu0 %v1488, 8
          %v1509 = vpop.permute.xlu0 %1508
          %1510 = vrot.lane.b32.xlu0 %v1489, 8
          %v1511 = vpop.permute.xlu0 %1510
          %1512 = vrot.lane.b32.xlu0 %v1490, 8
          %v1513 = vpop.permute.xlu0 %1512
          %1514 = vrot.lane.b32.xlu0 %v1491, 8
          %v1515 = vpop.permute.xlu0 %1514
          %vm1524 = vcmask 64512
          %v1525 = vsel %vm1524, %v1372, %v1501
          %v1526 = vsel %vm1524, %v1373, %v1503
          %v1527 = vsel %vm1524, %v1374, %v1505
          %v1528 = vsel %vm1524, %v1375, %v1507
          %v1529 = vsel %vm1524, %v1376, %v1509
          %v1530 = vsel %vm1524, %v1377, %v1511
          %v1531 = vsel %vm1524, %v1378, %v1513
          %v1532 = vsel %vm1524, %v1379, %v1515
          %v1533 = vpack.c.bf16 %v1526, %v1525
          %v1534 = vpack.c.bf16 %v1528, %v1527
          %v1535 = vpack.c.bf16 %v1530, %v1529
          %v1536 = vpack.c.bf16 %v1532, %v1531
          %vm1537 = vcmask 130048
          %1538 = vst.msk [vmem:[%s370] sm:$0xff] %vm1537, %v1533
          %1539 = vst.msk [vmem:[%s370 + $0x8] sm:$0xff] %vm1537, %v1534
          %1540 = vst.msk [vmem:[%s370 + $0x10] sm:$0xff] %vm1537, %v1535
          %1541 = vst.msk [vmem:[%s370 + $0x18] sm:$0xff] %vm1537, %v1536
        $region60: #{gat_forward.3} parent=35 // pred_fallthru
          _
        %s1542 = sand.u32 %s153, 1
        %s1543 = scalar_lea.sflag [#allocation6], %s1542
        %s1544 = sand.u32 %s153, 1
        %s1545 = smul.addr %s1544, 32
        %s1546 = scalar_lea.vmem [#allocation12], %s1545
        // Predicated region
        $region61: #{gat_forward.3} parent=35 // pred_check
          %p1547 = pneg %p163
        $region62: #{gat_forward.3} parent=35 // pred_check_branch
          %1549 = sbr.rel (%p1547) target = $region64
        $region63: #{gat_forward.3} parent=35 // pred_region
          %s1550 = smul.u32 4, %s31
          %s1552 = ssub.s32 512, 512
          %1553 = vsyncadd %s1543, %s1552
          %s1554 = smul.addr %s1550, 128
          %s1555 = scalar_lea.hbm %s4, %s1554
          %s1556 = sshll.u32 %s1546, 4
          %s1557 = int_to_ptr.vmem [resolvable:$true] %s1556
          %1562 = dma.vmem_to_hbm [thread:$0]  %s1557, 512, %s1555, %s1543, 128, 128, 8
        $region64: #{gat_forward.3} parent=35 // pred_fallthru
          _
      $region36: #{gat_forward.3} parent=5 // pred_fallthru
        _
      %p1563 = scmp.le.s32.totalorder 2, %s22
      // Predicated region
      $region65: #{gat_forward.3} parent=5 // pred_check
        %p1564 = pneg %p1563
      $region66: #{gat_forward.3} parent=5 // pred_check_branch
        %1566 = sbr.rel (%p1564) target = $region68
      $region67: #{gat_forward.3} parent=5 // pred_region
        %s1567 = ssub.s32 %s22, 2
        // Predicated region
        $region69: #{gat_forward.3} parent=67 // pred_check
          %p1568 = pneg %p169
        $region70: #{gat_forward.3} parent=67 // pred_check_branch
          %1570 = sbr.rel (%p1568) target = $region72
        $region71: #{gat_forward.3} parent=67 // pred_region
          %s1571 = sand.u32 %s154, 1
          %s1572 = scalar_lea.sflag [#allocation6], %s1571
          %s1573 = sand.u32 %s154, 1
          %s1574 = smul.addr %s1573, 32
          %s1575 = scalar_lea.vmem [#allocation12], %s1574
          %1576 = dma.done %s1572, 512
        $region72: #{gat_forward.3} parent=67 // pred_fallthru
          _
      $region68: #{gat_forward.3} parent=5 // pred_fallthru
        _
    $region6: #{gat_forward.3} parent=1 // loop_footer
      %s26 = sadd.s32 1, %s22
    $region7: #{gat_forward.3} parent=1 // loop_footer_branch
      %21 = sbr.rel target = $region3
    $region8: #{gat_forward.3} parent=1 // loop_exit
      _
    %1577 = vsyncpa [#allocation5], 1
    %s1578 = scalar_lea.sflag [#allocation5], 1
    %1579 = vsyncpa %s1578, 1
    %1580 = vsyncpa [#allocation8], 1
    %s1581 = scalar_lea.sflag [#allocation8], 1
    %1582 = vsyncpa %s1581, 1
    %1583 = vsyncpa [#allocation11], 1
    %s1584 = scalar_lea.sflag [#allocation11], 1
    %1585 = vsyncpa %s1584, 1
    %1586 = vsyncpa [#allocation6], 1
    %s1587 = scalar_lea.sflag [#allocation6], 1
    %1588 = vsyncpa %s1587, 1

// kernel: gat_forward.5
$region0: #{gat_forward.5}
  #allocation0 [shape = 'u32[]', space=smem, size = 0x4, offset = 0x4, fixed_abs, tag = 'smem constant byte address 0x4 - core index']
  #allocation1 [shape = 'u32[144,128]{1,0:T(1,128)}', space=vmem, size = 0x12000, scoped, tag = 'internal scratch']
  #allocation2 [shape = 'f32[2,64,1]{2,1,0:T(8,128)}', space=vmem, size = 0x10000, scoped, tag = 'scratch operand']
  #allocation3 [shape = 'f32[2,64,5]{2,1,0:T(8,128)}', space=vmem, size = 0x10000, scoped, tag = 'scratch operand']
  #allocation13 [shape = 's32[]', space=sflag, size = 0x4, offset = 0, fixed_abs, tag = 'sflag constant byte address 0x0 - dummy sync flag']
  %s0 = inlined_call_operand.hbm [shape: s8[256,256], index: 0, kind: input, shape index: {}]
  %s1 = inlined_call_operand.hbm [shape: f32[256,2], index: 1, kind: input, shape index: {}]
  %s2 = inlined_call_operand.hbm [shape: f32[2,256], index: 2, kind: input, shape index: {}]
  %s3 = inlined_call_operand.hbm [shape: bf16[2,256,5], index: 3, kind: input, shape index: {}]
  %s4 = inlined_call_operand.hbm [shape: f32[256,8], index: 4, kind: output, shape index: {}]
  %s5 = sld [smem:[#allocation0]]
  $region73: #{gat_forward.5} parent=0
    _
  %s7 = ssub.s32 1, %s5
  %s8 = scalar_select 0, %s7, %s5
  $region1: #{gat_forward.5} parent=0
    #allocation4 [shape = 'u8[16384]{0}', space=vmem, size = 0x4000, scoped, tag = 'input window, operand 0']
    #allocation5 [shape = 's32[2]{0}', space=sflag, size = 0x8, scoped, tag = 'scoped memory for gat_forward.5']
    #allocation6 [shape = 's32[2]{0}', space=sflag, size = 0x8, scoped, tag = 'scoped memory for gat_forward.5']
    #allocation7 [shape = 'u8[65536]{0}', space=vmem, size = 0x10000, scoped, tag = 'input window, operand 1']
    #allocation8 [shape = 's32[2]{0}', space=sflag, size = 0x8, scoped, tag = 'scoped memory for gat_forward.5']
    #allocation9 [shape = 'u8[2048]{0}', space=vmem, size = 0x800, scoped, tag = 'input window, operand 2']
    #allocation10 [shape = 'u8[131072]{0}', space=vmem, size = 0x20000, scoped, tag = 'input window, operand 3']
    #allocation11 [shape = 's32[2]{0}', space=sflag, size = 0x8, scoped, tag = 'scoped memory for gat_forward.5']
    #allocation12 [shape = 'u8[65536]{0}', space=vmem, size = 0x10000, scoped, tag = 'output window, operand 0']
    %9 = vsyncpa [#allocation5], 0
    %s10 = scalar_lea.sflag [#allocation5], 1
    %11 = vsyncpa %s10, 0
    %12 = vsyncpa [#allocation8], 0
    %s13 = scalar_lea.sflag [#allocation8], 1
    %14 = vsyncpa %s13, 0
    %15 = vsyncpa [#allocation11], 0
    %s16 = scalar_lea.sflag [#allocation11], 1
    %17 = vsyncpa %s16, 0
    %18 = vsyncpa [#allocation6], 0
    %s19 = scalar_lea.sflag [#allocation6], 1
    %20 = vsyncpa %s19, 0
    loop: start=0, step=1, limit=10
    $region2: #{gat_forward.5} parent=1 // loop_pre_header
      _
    $region3: #{gat_forward.5} parent=1 // loop_header
      %s22 = sphi 0, %s26
      %p23 = scmp.ge.s32.totalorder %s22, 10
      %s29 = sphi 0, %s41
      %s30 = sphi 0, %s37
      %s31 = sphi 0, %s29
      %s32 = sphi 0, %s30
      %s33 = sphi 0, %s31
      %s34 = sphi 0, %s32
      %s46 = sphi 0, %s48
      %s49 = sphi 0, %s46
      %s50 = sphi 0, %s49
      %s66 = sphi 0, %s50
      %s72 = sphi 0, %s74
      %s75 = sphi 0, %s72
      %s76 = sphi 0, %s75
      %s92 = sphi 0, %s76
      %s98 = sphi 0, %s100
      %s101 = sphi 0, %s98
      %s102 = sphi 0, %s101
      %s118 = sphi 0, %s102
      %s124 = sphi 0, %s126
      %s127 = sphi 0, %s124
      %s128 = sphi 0, %s127
      %s144 = sphi 0, %s128
      %s150 = sphi 0, %s152
      %s153 = sphi 0, %s150
      %s154 = sphi 0, %s153
      %s170 = sphi 0, %s154
    $region4: #{gat_forward.5} parent=1 // loop_header_branch
      %25 = sbr.rel (%p23) target = $region8
    $region5: #{gat_forward.5} parent=1 // loop_body
      %s27 = ssub.s32 %s22, 1
      %s28 = ssub.s32 %s22, 2
      %s35 = sadd.s32 1, %s30
      %p36 = scmp.ge.s32.totalorder %s35, 2
      %s37 = scalar_select %p36, 0, %s35
      %s38 = sadd.s32 1, %s29
      %s39 = scalar_select %p36, %s38, %s29
      %p40 = scmp.ge.s32.totalorder %s39, 4
      %s41 = scalar_select %p40, 0, %s39
      %s42 = ssub.s32 %s29, %s41
      %s43 = ssub.s32 %s30, %s37
      %s44 = sor.u32 %s42, %s43
      %p45 = scmp.eq.s32.totalorder %s44, 0
      %s47 = sadd.s32 %s46, 1
      %s48 = scalar_select %p45, %s46, %s47
      %p51 = pneg %p45
      %p52 = scmp.eq.s32.totalorder %s22, 7
      %p53 = por %p51, %p52
      %p54 = scmp.ne.s32.totalorder %s46, %s49
      %p55 = scmp.eq.s32.totalorder %s22, 0
      %p56 = por %p54, %p55
      %p57 = scmp.ne.s32.totalorder %s46, %s49
      %p58 = scmp.eq.s32.totalorder %s27, 7
      %p59 = por %p57, %p58
      %p60 = scmp.ne.s32.totalorder %s49, %s50
      %p61 = scmp.eq.s32.totalorder %s27, 0
      %p62 = por %p60, %p61
      %p63 = scmp.ne.s32.totalorder %s49, %s50
      %p64 = scmp.eq.s32.totalorder %s28, 7
      %p65 = por %p63, %p64
      %p67 = scmp.ne.s32.totalorder %s50, %s66
      %p68 = scmp.eq.s32.totalorder %s28, 0
      %p69 = por %p67, %p68
      %s70 = ssub.s32 %s29, %s41
      %p71 = scmp.eq.s32.totalorder %s70, 0
      %s73 = sadd.s32 %s72, 1
      %s74 = scalar_select %p71, %s72, %s73
      %p77 = pneg %p71
      %p78 = scmp.eq.s32.totalorder %s22, 7
      %p79 = por %p77, %p78
      %p80 = scmp.ne.s32.totalorder %s72, %s75
      %p81 = scmp.eq.s32.totalorder %s22, 0
      %p82 = por %p80, %p81
      %p83 = scmp.ne.s32.totalorder %s72, %s75
      %p84 = scmp.eq.s32.totalorder %s27, 7
      %p85 = por %p83, %p84
      %p86 = scmp.ne.s32.totalorder %s75, %s76
      %p87 = scmp.eq.s32.totalorder %s27, 0
      %p88 = por %p86, %p87
      %p89 = scmp.ne.s32.totalorder %s75, %s76
      %p90 = scmp.eq.s32.totalorder %s28, 7
      %p91 = por %p89, %p90
      %p93 = scmp.ne.s32.totalorder %s76, %s92
      %p94 = scmp.eq.s32.totalorder %s28, 0
      %p95 = por %p93, %p94
      %s96 = ssub.s32 %s30, %s37
      %p97 = scmp.eq.s32.totalorder %s96, 0
      %s99 = sadd.s32 %s98, 1
      %s100 = scalar_select %p97, %s98, %s99
      %p103 = pneg %p97
      %p104 = scmp.eq.s32.totalorder %s22, 7
      %p105 = por %p103, %p104
      %p106 = scmp.ne.s32.totalorder %s98, %s101
      %p107 = scmp.eq.s32.totalorder %s22, 0
      %p108 = por %p106, %p107
      %p109 = scmp.ne.s32.totalorder %s98, %s101
      %p110 = scmp.eq.s32.totalorder %s27, 7
      %p111 = por %p109, %p110
      %p112 = scmp.ne.s32.totalorder %s101, %s102
      %p113 = scmp.eq.s32.totalorder %s27, 0
      %p114 = por %p112, %p113
      %p115 = scmp.ne.s32.totalorder %s101, %s102
      %p116 = scmp.eq.s32.totalorder %s28, 7
      %p117 = por %p115, %p116
      %p119 = scmp.ne.s32.totalorder %s102, %s118
      %p120 = scmp.eq.s32.totalorder %s28, 0
      %p121 = por %p119, %p120
      %s122 = ssub.s32 %s30, %s37
      %p123 = scmp.eq.s32.totalorder %s122, 0
      %s125 = sadd.s32 %s124, 1
      %s126 = scalar_select %p123, %s124, %s125
      %p129 = pneg %p123
      %p130 = scmp.eq.s32.totalorder %s22, 7
      %p131 = por %p129, %p130
      %p132 = scmp.ne.s32.totalorder %s124, %s127
      %p133 = scmp.eq.s32.totalorder %s22, 0
      %p134 = por %p132, %p133
      %p135 = scmp.ne.s32.totalorder %s124, %s127
      %p136 = scmp.eq.s32.totalorder %s27, 7
      %p137 = por %p135, %p136
      %p138 = scmp.ne.s32.totalorder %s127, %s128
      %p139 = scmp.eq.s32.totalorder %s27, 0
      %p140 = por %p138, %p139
      %p141 = scmp.ne.s32.totalorder %s127, %s128
      %p142 = scmp.eq.s32.totalorder %s28, 7
      %p143 = por %p141, %p142
      %p145 = scmp.ne.s32.totalorder %s128, %s144
      %p146 = scmp.eq.s32.totalorder %s28, 0
      %p147 = por %p145, %p146
      %s148 = ssub.s32 %s29, %s41
      %p149 = scmp.eq.s32.totalorder %s148, 0
      %s151 = sadd.s32 %s150, 1
      %s152 = scalar_select %p149, %s150, %s151
      %p155 = pneg %p149
      %p156 = scmp.eq.s32.totalorder %s22, 7
      %p157 = por %p155, %p156
      %p158 = scmp.ne.s32.totalorder %s150, %s153
      %p159 = scmp.eq.s32.totalorder %s22, 0
      %p160 = por %p158, %p159
      %p161 = scmp.ne.s32.totalorder %s150, %s153
      %p162 = scmp.eq.s32.totalorder %s27, 7
      %p163 = por %p161, %p162
      %p164 = scmp.ne.s32.totalorder %s153, %s154
      %p165 = scmp.eq.s32.totalorder %s27, 0
      %p166 = por %p164, %p165
      %p167 = scmp.ne.s32.totalorder %s153, %s154
      %p168 = scmp.eq.s32.totalorder %s28, 7
      %p169 = por %p167, %p168
      %p171 = scmp.ne.s32.totalorder %s154, %s170
      %p172 = scmp.eq.s32.totalorder %s28, 0
      %p173 = por %p171, %p172
      %p174 = scmp.le.s32.totalorder 1, %s22
      %p175 = scmp.lt.s32.totalorder %s22, 9
      %p176 = pnand %p174, %p175
      %p177 = pneg %p176
      // Predicated region
      $region9: #{gat_forward.5} parent=5 // pred_check
        _
      $region10: #{gat_forward.5} parent=5 // pred_check_branch
        %179 = sbr.rel (%p176) target = $region12
      $region11: #{gat_forward.5} parent=5 // pred_region
        %s180 = ssub.s32 %s22, 1
      $region12: #{gat_forward.5} parent=5 // pred_fallthru
        _
      %p181 = scmp.lt.s32.totalorder %s22, 8
      // Predicated region
      $region13: #{gat_forward.5} parent=5 // pred_check
        %p182 = pneg %p181
      $region14: #{gat_forward.5} parent=5 // pred_check_branch
        %184 = sbr.rel (%p182) target = $region16
      $region15: #{gat_forward.5} parent=5 // pred_region
        // Predicated region
        $region17: #{gat_forward.5} parent=15 // pred_check
          %p185 = pneg %p56
        $region18: #{gat_forward.5} parent=15 // pred_check_branch
          %187 = sbr.rel (%p185) target = $region20
        $region19: #{gat_forward.5} parent=15 // pred_region
          %s188 = sand.u32 %s46, 1
          %s189 = scalar_lea.sflag [#allocation5], %s188
          %s190 = sand.u32 %s46, 1
          %s191 = smul.addr %s190, 16
          %s192 = scalar_lea.vmem [#allocation4], %s191
          %s193 = smul.u32 2, %s29
          %s195 = ssub.s32 256, 256
          %196 = vsyncadd %s189, %s195
          %s197 = smul.addr %s193, 2
          %s198 = sadd.s32 %s30, %s197
          %s199 = smul.addr %s198, 128
          %s200 = scalar_lea.hbm %s0, %s199
          %s201 = sshll.u32 %s192, 4
          %s202 = int_to_ptr.vmem [resolvable:$true] %s201
          %207 = dma.hbm_to_vmem [thread:$0]  %s200, 256, %s202, %s189, 256, 128, 8
        $region20: #{gat_forward.5} parent=15 // pred_fallthru
          _
        // Predicated region
        $region21: #{gat_forward.5} parent=15 // pred_check
          %p208 = pneg %p82
        $region22: #{gat_forward.5} parent=15 // pred_check_branch
          %210 = sbr.rel (%p208) target = $region24
        $region23: #{gat_forward.5} parent=15 // pred_region
          %s211 = sand.u32 %s22, 1
          %s212 = scalar_lea.sflag [#allocation8], %s211
          %s213 = sand.u32 %s72, 1
          %s214 = smul.addr %s213, 64
          %s215 = scalar_lea.vmem [#allocation7], %s214
          %s216 = smul.u32 8, %s29
          %s218 = ssub.s32 1024, 1024
          %219 = vsyncadd %s212, %s218
          %s220 = smul.addr %s216, 128
          %s221 = scalar_lea.hbm %s1, %s220
          %s222 = sshll.u32 %s215, 4
          %s223 = int_to_ptr.vmem [resolvable:$true] %s222
          %228 = dma.hbm_to_vmem [thread:$0]  %s221, 1024, %s223, %s212, 128, 128, 8
        $region24: #{gat_forward.5} parent=15 // pred_fallthru
          _
        // Predicated region
        $region25: #{gat_forward.5} parent=15 // pred_check
          %p229 = pneg %p108
        $region26: #{gat_forward.5} parent=15 // pred_check_branch
          %231 = sbr.rel (%p229) target = $region28
        $region27: #{gat_forward.5} parent=15 // pred_region
          %s232 = sand.u32 %s22, 1
          %s233 = scalar_lea.sflag [#allocation8], %s232
          %s234 = sand.u32 %s98, 1
          %s235 = smul.addr %s234, 2
          %s236 = scalar_lea.vmem [#allocation9], %s235
          %s238 = ssub.s32 32, 32
          %239 = vsyncadd %s233, %s238
          %s240 = smul.addr %s30, 32
          %s241 = scalar_lea.hbm %s2, %s240
          %s243 = sshll.u32 %s236, 4
          %s244 = int_to_ptr.vmem [resolvable:$true] %s243
          %246 = dma.hbm_to_vmem [thread:$0]  %s241, 32, %s244, %s233
        $region28: #{gat_forward.5} parent=15 // pred_fallthru
          _
        // Predicated region
        $region29: #{gat_forward.5} parent=15 // pred_check
          %p247 = pneg %p134
        $region30: #{gat_forward.5} parent=15 // pred_check_branch
          %249 = sbr.rel (%p247) target = $region32
        $region31: #{gat_forward.5} parent=15 // pred_region
          #allocation14 [shape = 'u32[6]{0}', space=smem, size = 0x18, scoped, tag = 'DMA stride descriptor']
          %s250 = sand.u32 %s124, 1
          %s251 = scalar_lea.sflag [#allocation11], %s250
          %s252 = sand.u32 %s124, 1
          %s253 = smul.addr %s252, 128
          %s254 = scalar_lea.vmem [#allocation10], %s253
          %s255 = smul.u32 16, %s30
          %s257 = ssub.s32 2048, 2048
          %258 = vsyncadd %s251, %s257
          %s259 = smul.addr %s255, 64
          %s260 = scalar_lea.hbm %s3, %s259
          %s262 = sshll.u32 1, 14
          %s263 = sxor.u32 4294967295, %s262
          %s265 = sld [smem:[#allocation0]]
          %s266 = sadd.s32 2, %s265
          %s268 = sshll.u32 7, 26
          %s269 = sxor.u32 4294967295, %s268
          %s270 = sand.u32 0, %s269
          %s271 = sshll.u32 %s266, 26
          %s272 = sor.u32 %s270, %s271
          %s273 = sshll.u32 %s254, 4
          %s274 = int_to_ptr.vmem [resolvable:$true] %s273
          %280 = sst [smem:[#allocation14]] 2048
          %s281 = scalar_lea.smem [#allocation14], 1
          %282 = sst [smem:[%s281]] 1024
          %s283 = scalar_lea.smem [#allocation14], 2
          %284 = sst [smem:[%s283]] 16
          %s285 = scalar_lea.smem [#allocation14], 3
          %286 = sst [smem:[%s285]] 64
          %s287 = scalar_lea.smem [#allocation14], 4
          %288 = sst [smem:[%s287]] 64
          %s289 = scalar_lea.smem [#allocation14], 5
          %290 = sst [smem:[%s289]] 4
          %292 = dma.general %s260, 2048, %s274, %s251, [#allocation13], [#allocation14], %s272, 0
        $region32: #{gat_forward.5} parent=15 // pred_fallthru
          _
      $region16: #{gat_forward.5} parent=5 // pred_fallthru
        _
      %p293 = scmp.le.s32.totalorder 1, %s22
      %p294 = scmp.lt.s32.totalorder %s22, 9
      %p295 = pnand %p293, %p294
      %p296 = pneg %p295
      // Predicated region
      $region33: #{gat_forward.5} parent=5 // pred_check
        _
      $region34: #{gat_forward.5} parent=5 // pred_check_branch
        %298 = sbr.rel (%p295) target = $region36
      $region35: #{gat_forward.5} parent=5 // pred_region
        %s299 = ssub.s32 %s22, 1
        %s300 = sand.u32 %s49, 1
        %s301 = scalar_lea.sflag [#allocation5], %s300
        %s302 = sand.u32 %s49, 1
        %s303 = smul.addr %s302, 16
        %s304 = scalar_lea.vmem [#allocation4], %s303
        // Predicated region
        $region37: #{gat_forward.5} parent=35 // pred_check
          %p305 = pneg %p62
        $region38: #{gat_forward.5} parent=35 // pred_check_branch
          %307 = sbr.rel (%p305) target = $region40
        $region39: #{gat_forward.5} parent=35 // pred_region
          %308 = dma.done %s301, 256
        $region40: #{gat_forward.5} parent=35 // pred_fallthru
          _
        %s309 = sand.u32 %s27, 1
        %s310 = scalar_lea.sflag [#allocation8], %s309
        %s311 = sand.u32 %s75, 1
        %s312 = smul.addr %s311, 64
        %s313 = scalar_lea.vmem [#allocation7], %s312
        // Predicated region
        $region41: #{gat_forward.5} parent=35 // pred_check
          %p314 = pneg %p88
        $region42: #{gat_forward.5} parent=35 // pred_check_branch
          %316 = sbr.rel (%p314) target = $region44
        $region43: #{gat_forward.5} parent=35 // pred_region
          %317 = dma.done %s310, 1024
        $region44: #{gat_forward.5} parent=35 // pred_fallthru
          _
        %s318 = sand.u32 %s27, 1
        %s319 = scalar_lea.sflag [#allocation8], %s318
        %s320 = sand.u32 %s101, 1
        %s321 = smul.addr %s320, 2
        %s322 = scalar_lea.vmem [#allocation9], %s321
        // Predicated region
        $region45: #{gat_forward.5} parent=35 // pred_check
          %p323 = pneg %p114
        $region46: #{gat_forward.5} parent=35 // pred_check_branch
          %325 = sbr.rel (%p323) target = $region48
        $region47: #{gat_forward.5} parent=35 // pred_region
          %326 = dma.done %s319, 32
        $region48: #{gat_forward.5} parent=35 // pred_fallthru
          _
        %s327 = sand.u32 %s127, 1
        %s328 = scalar_lea.sflag [#allocation11], %s327
        %s329 = sand.u32 %s127, 1
        %s330 = smul.addr %s329, 128
        %s331 = scalar_lea.vmem [#allocation10], %s330
        // Predicated region
        $region49: #{gat_forward.5} parent=35 // pred_check
          %p332 = pneg %p140
        $region50: #{gat_forward.5} parent=35 // pred_check_branch
          %334 = sbr.rel (%p332) target = $region52
        $region51: #{gat_forward.5} parent=35 // pred_region
          %335 = dma.done %s328, 2048
        $region52: #{gat_forward.5} parent=35 // pred_fallthru
          _
        %s336 = sand.u32 %s49, 1
        %s337 = scalar_lea.sflag [#allocation5], %s336
        %s338 = sand.u32 %s49, 1
        %s339 = smul.addr %s338, 16
        %s340 = scalar_lea.vmem [#allocation4], %s339
        %p341 = pneg %p62
        %p342 = pneg %p59
        %s343 = sand.u32 %s27, 1
        %s344 = scalar_lea.sflag [#allocation8], %s343
        %s345 = sand.u32 %s75, 1
        %s346 = smul.addr %s345, 64
        %s347 = scalar_lea.vmem [#allocation7], %s346
        %p348 = pneg %p88
        %p349 = pneg %p85
        %s350 = sand.u32 %s27, 1
        %s351 = scalar_lea.sflag [#allocation8], %s350
        %s352 = sand.u32 %s101, 1
        %s353 = smul.addr %s352, 2
        %s354 = scalar_lea.vmem [#allocation9], %s353
        %p355 = pneg %p114
        %p356 = pneg %p111
        %s357 = sand.u32 %s127, 1
        %s358 = scalar_lea.sflag [#allocation11], %s357
        %s359 = sand.u32 %s127, 1
        %s360 = smul.addr %s359, 128
        %s361 = scalar_lea.vmem [#allocation10], %s360
        %p362 = pneg %p140
        %p363 = pneg %p137
        %p364 = pneg %p166
        %p365 = pneg %p163
        %s366 = sand.u32 %s153, 1
        %s367 = scalar_lea.sflag [#allocation6], %s366
        %s368 = sand.u32 %s153, 1
        %s369 = smul.addr %s368, 64
        %s370 = scalar_lea.vmem [#allocation12], %s369
        %s371 = smul.u32 2, %s31
        %s372 = smul.u32 8, %s31
        %s373 = smul.u32 16, %s32
        %s374 = smul.u32 8, %s31
        %p376 = scmp.eq.s32.totalorder %s32, 0
        // Predicated region
        $region53: #{gat_forward.5} parent=35 // pred_check
          %p377 = pneg %p376
        $region54: #{gat_forward.5} parent=35 // pred_check_branch
          %379 = sbr.rel (%p377) target = $region56
        $region55: #{gat_forward.5} parent=35 // pred_region
          %vm380 = vcmask 7168
          %381 = vst.msk [vmem:[#allocation2] sm:$0xff] %vm380, -inf
          %382 = vst.msk [vmem:[#allocation2 + $0x8] sm:$0xff] %vm380, -inf
          %383 = vst.msk [vmem:[#allocation2 + $0x10] sm:$0xff] %vm380, -inf
          %384 = vst.msk [vmem:[#allocation2 + $0x18] sm:$0xff] %vm380, -inf
          %385 = vst.msk [vmem:[#allocation2 + $0x20] sm:$0xff] %vm380, -inf
          %386 = vst.msk [vmem:[#allocation2 + $0x28] sm:$0xff] %vm380, -inf
          %387 = vst.msk [vmem:[#allocation2 + $0x30] sm:$0xff] %vm380, -inf
          %388 = vst.msk [vmem:[#allocation2 + $0x38] sm:$0xff] %vm380, -inf
          %389 = vst.msk [vmem:[#allocation2 + $0x40] sm:$0xff] %vm380, -inf
          %390 = vst.msk [vmem:[#allocation2 + $0x48] sm:$0xff] %vm380, -inf
          %391 = vst.msk [vmem:[#allocation2 + $0x50] sm:$0xff] %vm380, -inf
          %392 = vst.msk [vmem:[#allocation2 + $0x58] sm:$0xff] %vm380, -inf
          %393 = vst.msk [vmem:[#allocation2 + $0x60] sm:$0xff] %vm380, -inf
          %394 = vst.msk [vmem:[#allocation2 + $0x68] sm:$0xff] %vm380, -inf
          %395 = vst.msk [vmem:[#allocation2 + $0x70] sm:$0xff] %vm380, -inf
          %396 = vst.msk [vmem:[#allocation2 + $0x78] sm:$0xff] %vm380, -inf
          %vm397 = vcmask 39936
          %398 = vst.msk [vmem:[#allocation3] sm:$0xff] %vm397, 0.0
          %399 = vst.msk [vmem:[#allocation3 + $0x8] sm:$0xff] %vm397, 0.0
          %400 = vst.msk [vmem:[#allocation3 + $0x10] sm:$0xff] %vm397, 0.0
          %401 = vst.msk [vmem:[#allocation3 + $0x18] sm:$0xff] %vm397, 0.0
          %402 = vst.msk [vmem:[#allocation3 + $0x20] sm:$0xff] %vm397, 0.0
          %403 = vst.msk [vmem:[#allocation3 + $0x28] sm:$0xff] %vm397, 0.0
          %404 = vst.msk [vmem:[#allocation3 + $0x30] sm:$0xff] %vm397, 0.0
          %405 = vst.msk [vmem:[#allocation3 + $0x38] sm:$0xff] %vm397, 0.0
          %406 = vst.msk [vmem:[#allocation3 + $0x40] sm:$0xff] %vm397, 0.0
          %407 = vst.msk [vmem:[#allocation3 + $0x48] sm:$0xff] %vm397, 0.0
          %408 = vst.msk [vmem:[#allocation3 + $0x50] sm:$0xff] %vm397, 0.0
          %409 = vst.msk [vmem:[#allocation3 + $0x58] sm:$0xff] %vm397, 0.0
          %410 = vst.msk [vmem:[#allocation3 + $0x60] sm:$0xff] %vm397, 0.0
          %411 = vst.msk [vmem:[#allocation3 + $0x68] sm:$0xff] %vm397, 0.0
          %412 = vst.msk [vmem:[#allocation3 + $0x70] sm:$0xff] %vm397, 0.0
          %413 = vst.msk [vmem:[#allocation3 + $0x78] sm:$0xff] %vm397, 0.0
        $region56: #{gat_forward.5} parent=35 // pred_fallthru
          _
        %v414 = vld [vmem:[%s304] sm:$0xff]
        %v415 = vld [vmem:[%s304 + $0x8] sm:$0xff]
        %v416 = vunpack.c.0.s8 %v414
        %v417 = vunpack.c.1.s8 %v414
        %v418 = vunpack.c.2.s8 %v414
        %v419 = vunpack.c.3.s8 %v414
        %v420 = vunpack.c.0.s8 %v415
        %v421 = vunpack.c.1.s8 %v415
        %v422 = vunpack.c.2.s8 %v415
        %v423 = vunpack.c.3.s8 %v415
        %v424 = vcvt.s32.f32 %v416
        %v425 = vcvt.s32.f32 %v417
        %v426 = vcvt.s32.f32 %v418
        %v427 = vcvt.s32.f32 %v419
        %v428 = vcvt.s32.f32 %v420
        %v429 = vcvt.s32.f32 %v421
        %v430 = vcvt.s32.f32 %v422
        %v431 = vcvt.s32.f32 %v423
        %vm432 = vcmp.gt.f32.partialorder %v424, 0.0
        %vm433 = vcmp.gt.f32.partialorder %v425, 0.0
        %vm434 = vcmp.gt.f32.partialorder %v426, 0.0
        %vm435 = vcmp.gt.f32.partialorder %v427, 0.0
        %vm436 = vcmp.gt.f32.partialorder %v428, 0.0
        %vm437 = vcmp.gt.f32.partialorder %v429, 0.0
        %vm438 = vcmp.gt.f32.partialorder %v430, 0.0
        %vm439 = vcmp.gt.f32.partialorder %v431, 0.0
        %v440 = vld [vmem:[%s313] sm:$0xff]
        %v441 = vld [vmem:[%s313 + $0x8] sm:$0xff]
        %v442 = vld [vmem:[%s313 + $0x10] sm:$0xff]
        %v443 = vld [vmem:[%s313 + $0x18] sm:$0xff]
        %v444 = vld [vmem:[%s313 + $0x20] sm:$0xff]
        %v445 = vld [vmem:[%s313 + $0x28] sm:$0xff]
        %v446 = vld [vmem:[%s313 + $0x30] sm:$0xff]
        %v447 = vld [vmem:[%s313 + $0x38] sm:$0xff]
        %v448 = vld [vmem:[%s322] sm:$0x3]
        %450 = vset.pattern.permute.xlu0 0
        %451 = vperm.xlu0 %450, %v440
        %v452 = vpop.permute.xlu0 %451
        %455 = vset.pattern.permute.xlu0 0
        %456 = vperm.xlu0 %455, %v441
        %v457 = vpop.permute.xlu0 %456
        %460 = vset.pattern.permute.xlu0 0
        %461 = vperm.xlu0 %460, %v442
        %v462 = vpop.permute.xlu0 %461
        %465 = vset.pattern.permute.xlu0 0
        %466 = vperm.xlu0 %465, %v443
        %v467 = vpop.permute.xlu0 %466
        %470 = vset.pattern.permute.xlu0 0
        %471 = vperm.xlu0 %470, %v444
        %v472 = vpop.permute.xlu0 %471
        %475 = vset.pattern.permute.xlu0 0
        %476 = vperm.xlu0 %475, %v445
        %v477 = vpop.permute.xlu0 %476
        %480 = vset.pattern.permute.xlu0 0
        %481 = vperm.xlu0 %480, %v446
        %v482 = vpop.permute.xlu0 %481
        %485 = vset.pattern.permute.xlu0 0
        %486 = vperm.xlu0 %485, %v447
        %v487 = vpop.permute.xlu0 %486
        %v489 = vlaneseq
        %v490 = vshrl.u32 %v489, 7
        %v491 = vsub.s32 0, %v490
        %v492 = vrot.slane %v448, %v491
        %v493 = vadd.f32 %v452, %v492
        %v494 = vadd.f32 %v457, %v492
        %v495 = vadd.f32 %v462, %v492
        %v496 = vadd.f32 %v467, %v492
        %v497 = vadd.f32 %v472, %v492
        %v498 = vadd.f32 %v477, %v492
        %v499 = vadd.f32 %v482, %v492
        %v500 = vadd.f32 %v487, %v492
        %v501 = vmul.f32 %v493, 0.2
        %v502 = vmul.f32 %v494, 0.2
        %v503 = vmul.f32 %v495, 0.2
        %v504 = vmul.f32 %v496, 0.2
        %v505 = vmul.f32 %v497, 0.2
        %v506 = vmul.f32 %v498, 0.2
        %v507 = vmul.f32 %v499, 0.2
        %v508 = vmul.f32 %v500, 0.2
        %v509 = vmax.f32 %v493, %v501
        %v510 = vmax.f32 %v494, %v502
        %v511 = vmax.f32 %v495, %v503
        %v512 = vmax.f32 %v496, %v504
        %v513 = vmax.f32 %v497, %v505
        %v514 = vmax.f32 %v498, %v506
        %v515 = vmax.f32 %v499, %v507
        %v516 = vmax.f32 %v500, %v508
        %v517 = vsel %vm432, %v509, -9e+15
        %v518 = vsel %vm433, %v510, -9e+15
        %v519 = vsel %vm434, %v511, -9e+15
        %v520 = vsel %vm435, %v512, -9e+15
        %v521 = vsel %vm436, %v513, -9e+15
        %v522 = vsel %vm437, %v514, -9e+15
        %v523 = vsel %vm438, %v515, -9e+15
        %v524 = vsel %vm439, %v516, -9e+15
        %v525 = vld [vmem:[#allocation2] sm:$0xff]
        %v526 = vld [vmem:[#allocation2 + $0x8] sm:$0xff]
        %v527 = vld [vmem:[#allocation2 + $0x10] sm:$0xff]
        %v528 = vld [vmem:[#allocation2 + $0x18] sm:$0xff]
        %v529 = vld [vmem:[#allocation2 + $0x20] sm:$0xff]
        %v530 = vld [vmem:[#allocation2 + $0x28] sm:$0xff]
        %v531 = vld [vmem:[#allocation2 + $0x30] sm:$0xff]
        %v532 = vld [vmem:[#allocation2 + $0x38] sm:$0xff]
        %533 = vmax.xlane.f32.xlu0 %v517
        %v534 = vpop.xlane.xlu0 %533
        %535 = vmax.xlane.f32.xlu0 %v518
        %v536 = vpop.xlane.xlu0 %535
        %537 = vmax.xlane.f32.xlu0 %v519
        %v538 = vpop.xlane.xlu0 %537
        %539 = vmax.xlane.f32.xlu0 %v520
        %v540 = vpop.xlane.xlu0 %539
        %541 = vmax.xlane.f32.xlu0 %v521
        %v542 = vpop.xlane.xlu0 %541
        %543 = vmax.xlane.f32.xlu0 %v522
        %v544 = vpop.xlane.xlu0 %543
        %545 = vmax.xlane.f32.xlu0 %v523
        %v546 = vpop.xlane.xlu0 %545
        %547 = vmax.xlane.f32.xlu0 %v524
        %v548 = vpop.xlane.xlu0 %547
        %v549 = vmax.f32 %v525, %v534
        %v550 = vmax.f32 %v526, %v536
        %v551 = vmax.f32 %v527, %v538
        %v552 = vmax.f32 %v528, %v540
        %v553 = vmax.f32 %v529, %v542
        %v554 = vmax.f32 %v530, %v544
        %v555 = vmax.f32 %v531, %v546
        %v556 = vmax.f32 %v532, %v548
        %v557 = vsub.f32 %v525, %v549
        %v558 = vsub.f32 %v526, %v550
        %v559 = vsub.f32 %v527, %v551
        %v560 = vsub.f32 %v528, %v552
        %v561 = vsub.f32 %v529, %v553
        %v562 = vsub.f32 %v530, %v554
        %v563 = vsub.f32 %v531, %v555
        %v564 = vsub.f32 %v532, %v556
        %v565 = vmul.f32 %v557, 1.442695
        %v566 = vpow.pop %v565
        %v567 = vmul.f32 %v558, 1.442695
        %v568 = vpow.pop %v567
        %v569 = vmul.f32 %v559, 1.442695
        %v570 = vpow.pop %v569
        %v571 = vmul.f32 %v560, 1.442695
        %v572 = vpow.pop %v571
        %v573 = vmul.f32 %v561, 1.442695
        %v574 = vpow.pop %v573
        %v575 = vmul.f32 %v562, 1.442695
        %v576 = vpow.pop %v575
        %v577 = vmul.f32 %v563, 1.442695
        %v578 = vpow.pop %v577
        %v579 = vmul.f32 %v564, 1.442695
        %v580 = vpow.pop %v579
        %582 = vset.pattern.permute.xlu0 0
        %583 = vperm.xlu0 %582, %v549
        %v584 = vpop.permute.xlu0 %583
        %587 = vset.pattern.permute.xlu0 0
        %588 = vperm.xlu0 %587, %v550
        %v589 = vpop.permute.xlu0 %588
        %592 = vset.pattern.permute.xlu0 0
        %593 = vperm.xlu0 %592, %v551
        %v594 = vpop.permute.xlu0 %593
        %597 = vset.pattern.permute.xlu0 0
        %598 = vperm.xlu0 %597, %v552
        %v599 = vpop.permute.xlu0 %598
        %602 = vset.pattern.permute.xlu0 0
        %603 = vperm.xlu0 %602, %v553
        %v604 = vpop.permute.xlu0 %603
        %607 = vset.pattern.permute.xlu0 0
        %608 = vperm.xlu0 %607, %v554
        %v609 = vpop.permute.xlu0 %608
        %612 = vset.pattern.permute.xlu0 0
        %613 = vperm.xlu0 %612, %v555
        %v614 = vpop.permute.xlu0 %613
        %617 = vset.pattern.permute.xlu0 0
        %618 = vperm.xlu0 %617, %v556
        %v619 = vpop.permute.xlu0 %618
        %v621 = vsub.f32 %v517, %v584
        %v622 = vsub.f32 %v518, %v589
        %v623 = vsub.f32 %v519, %v594
        %v624 = vsub.f32 %v520, %v599
        %v625 = vsub.f32 %v521, %v604
        %v626 = vsub.f32 %v522, %v609
        %v627 = vsub.f32 %v523, %v614
        %v628 = vsub.f32 %v524, %v619
        %v629 = vmul.f32 %v621, 1.442695
        %v630 = vpow.pop %v629
        %v631 = vmul.f32 %v622, 1.442695
        %v632 = vpow.pop %v631
        %v633 = vmul.f32 %v623, 1.442695
        %v634 = vpow.pop %v633
        %v635 = vmul.f32 %v624, 1.442695
        %v636 = vpow.pop %v635
        %v637 = vmul.f32 %v625, 1.442695
        %v638 = vpow.pop %v637
        %v639 = vmul.f32 %v626, 1.442695
        %v640 = vpow.pop %v639
        %v641 = vmul.f32 %v627, 1.442695
        %v642 = vpow.pop %v641
        %v643 = vmul.f32 %v628, 1.442695
        %v644 = vpow.pop %v643
        %v645 = vpack.c.bf16 %v632, %v630
        %v646 = vpack.c.bf16 %v636, %v634
        %v647 = vpack.c.bf16 %v640, %v638
        %v648 = vpack.c.bf16 %v644, %v642
        %v649 = vld [vmem:[%s331] sm:$0xf]
        %v650 = vld [vmem:[%s331 + $0x4] sm:$0xf]
        %v651 = vld [vmem:[%s331 + $0x8] sm:$0xf]
        %v652 = vld [vmem:[%s331 + $0xc] sm:$0xf]
        %v653 = vld [vmem:[%s331 + $0x10] sm:$0xf]
        %v654 = vld [vmem:[%s331 + $0x14] sm:$0xf]
        %v655 = vld [vmem:[%s331 + $0x18] sm:$0xf]
        %v656 = vld [vmem:[%s331 + $0x1c] sm:$0xf]
        %v657 = vld [vmem:[%s331 + $0x20] sm:$0xf]
        %v658 = vld [vmem:[%s331 + $0x24] sm:$0xf]
        %v659 = vld [vmem:[%s331 + $0x28] sm:$0xf]
        %v660 = vld [vmem:[%s331 + $0x2c] sm:$0xf]
        %v661 = vld [vmem:[%s331 + $0x30] sm:$0xf]
        %v662 = vld [vmem:[%s331 + $0x34] sm:$0xf]
        %v663 = vld [vmem:[%s331 + $0x38] sm:$0xf]
        %v664 = vld [vmem:[%s331 + $0x3c] sm:$0xf]
        %v681 = vunpack.c.l.b16 %v649
        %v682 = vunpack.c.l.b16 %v650
        %v683 = vunpack.c.l.b16 %v651
        %v684 = vunpack.c.l.b16 %v652
        %v685 = vunpack.c.l.b16 %v653
        %v686 = vunpack.c.l.b16 %v654
        %v687 = vunpack.c.l.b16 %v655
        %v688 = vunpack.c.l.b16 %v656
        %v689 = vunpack.c.l.b16 %v657
        %v690 = vunpack.c.l.b16 %v658
        %v691 = vunpack.c.l.b16 %v659
        %v692 = vunpack.c.l.b16 %v660
        %v693 = vunpack.c.l.b16 %v661
        %v694 = vunpack.c.l.b16 %v662
        %v695 = vunpack.c.l.b16 %v663
        %v696 = vunpack.c.l.b16 %v664
        %v697 = vpack.c.b16 %v682, %v681
        %v698 = vpack.c.b16 %v684, %v683
        %v699 = vpack.c.b16 %v686, %v685
        %v700 = vpack.c.b16 %v688, %v687
        %v701 = vpack.c.b16 %v690, %v689
        %v702 = vpack.c.b16 %v692, %v691
        %v703 = vpack.c.b16 %v694, %v693
        %v704 = vpack.c.b16 %v696, %v695
        %713 = vmatprep.subr.bf16.mxu0 0
        %714 = vmatpush1.bf16.msra.mxu0 %v697
        %715 = vmatprep.subr.bf16.mxu0 0
        %716 = vmatpush1.bf16.msra.mxu0 %v698
        %717 = vmatprep.subr.bf16.mxu0 0
        %718 = vmatpush1.bf16.msra.mxu0 %v699
        %719 = vmatprep.subr.bf16.mxu0 0
        %720 = vmatpush1.bf16.msra.mxu0 %v700
        %721 = vmatprep.subr.bf16.mxu0 0
        %722 = vmatpush1.bf16.msra.mxu0 %v701
        %723 = vmatprep.subr.bf16.mxu0 0
        %724 = vmatpush1.bf16.msra.mxu0 %v702
        %725 = vmatprep.subr.bf16.mxu0 0
        %726 = vmatpush1.bf16.msra.mxu0 %v703
        %727 = vmatprep.subr.bf16.mxu0 0
        %728 = vmatpush1.bf16.msra.mxu0 %v704
        %729 = vmatprep.subr.bf16.mxu0 0
        %730 = vmatpush1.bf16.msra.mxu0 0
        %731 = vmatprep.subr.bf16.mxu0 0
        %732 = vmatpush1.bf16.msra.mxu0 0
        %733 = vmatprep.subr.bf16.mxu0 0
        %734 = vmatpush1.bf16.msra.mxu0 0
        %735 = vmatprep.subr.bf16.mxu0 0
        %736 = vmatpush1.bf16.msra.mxu0 0
        %737 = vmatprep.subr.bf16.mxu0 0
        %738 = vmatpush1.bf16.msra.mxu0 0
        %739 = vmatprep.subr.bf16.mxu0 0
        %740 = vmatpush1.bf16.msra.mxu0 0
        %741 = vmatprep.subr.bf16.mxu0 0
        %742 = vmatpush1.bf16.msra.mxu0 0
        %743 = vmatprep.subr.bf16.mxu0 0
        %744 = vmatpush1.bf16.msra.mxu0 0
        %745 = vmatprep.mubr.bf16.mxu0 0
        %746 = vmatmul.mubr.bf16.gmra.mrb[0].mxu0 %v645
        %v747 = vpop.f32.mrb[0].mxu0
        %v748 = vadd.f32 0.0, %v747
        %v749 = vpop.f32.mrb[0].mxu0
        %v750 = vpop.f32.mrb[0].mxu0
        %v751 = vadd.f32 0.0, %v750
        %v752 = vpop.f32.mrb[0].mxu0
        %753 = vmatprep.mubr.bf16.mxu0 0
        %754 = vmatmul.mubr.bf16.gmra.mrb[0].mxu0 %v646
        %v755 = vpop.f32.mrb[0].mxu0
        %v756 = vadd.f32 0.0, %v755
        %v757 = vpop.f32.mrb[0].mxu0
        %v758 = vpop.f32.mrb[0].mxu0
        %v759 = vadd.f32 0.0, %v758
        %v760 = vpop.f32.mrb[0].mxu0
        %761 = vmatprep.mubr.bf16.mxu0 0
        %762 = vmatmul.mubr.bf16.gmra.mrb[0].mxu0 %v647
        %v763 = vpop.f32.mrb[0].mxu0
        %v764 = vadd.f32 0.0, %v763
        %v765 = vpop.f32.mrb[0].mxu0
        %v766 = vpop.f32.mrb[0].mxu0
        %v767 = vadd.f32 0.0, %v766
        %v768 = vpop.f32.mrb[0].mxu0
        %769 = vmatprep.mubr.bf16.mxu0 0
        %770 = vmatmul.mubr.bf16.gmra.mrb[0].mxu0 %v648
        %v771 = vpop.f32.mrb[0].mxu0
        %v772 = vadd.f32 0.0, %v771
        %v773 = vpop.f32.mrb[0].mxu0
        %v774 = vpop.f32.mrb[0].mxu0
        %v775 = vadd.f32 0.0, %v774
        %v776 = vpop.f32.mrb[0].mxu0
        %777 = vdwg.mxu0
        %v778 = vld [vmem:[#allocation3] sm:$0xff]
        %v779 = vld [vmem:[#allocation3 + $0x8] sm:$0xff]
        %v780 = vld [vmem:[#allocation3 + $0x10] sm:$0xff]
        %v781 = vld [vmem:[#allocation3 + $0x18] sm:$0xff]
        %v782 = vld [vmem:[#allocation3 + $0x20] sm:$0xff]
        %v783 = vld [vmem:[#allocation3 + $0x28] sm:$0xff]
        %v784 = vld [vmem:[#allocation3 + $0x30] sm:$0xff]
        %v785 = vld [vmem:[#allocation3 + $0x38] sm:$0xff]
        %787 = vset.pattern.permute.xlu0 0
        %788 = vperm.xlu0 %787, %v566
        %v789 = vpop.permute.xlu0 %788
        %792 = vset.pattern.permute.xlu0 0
        %793 = vperm.xlu0 %792, %v568
        %v794 = vpop.permute.xlu0 %793
        %797 = vset.pattern.permute.xlu0 0
        %798 = vperm.xlu0 %797, %v570
        %v799 = vpop.permute.xlu0 %798
        %802 = vset.pattern.permute.xlu0 0
        %803 = vperm.xlu0 %802, %v572
        %v804 = vpop.permute.xlu0 %803
        %807 = vset.pattern.permute.xlu0 0
        %808 = vperm.xlu0 %807, %v574
        %v809 = vpop.permute.xlu0 %808
        %812 = vset.pattern.permute.xlu0 0
        %813 = vperm.xlu0 %812, %v576
        %v814 = vpop.permute.xlu0 %813
        %817 = vset.pattern.permute.xlu0 0
        %818 = vperm.xlu0 %817, %v578
        %v819 = vpop.permute.xlu0 %818
        %822 = vset.pattern.permute.xlu0 0
        %823 = vperm.xlu0 %822, %v580
        %v824 = vpop.permute.xlu0 %823
        %v826 = vmul.f32 %v789, %v778
        %v827 = vmul.f32 %v794, %v779
        %v828 = vmul.f32 %v799, %v780
        %v829 = vmul.f32 %v804, %v781
        %v830 = vmul.f32 %v809, %v782
        %v831 = vmul.f32 %v814, %v783
        %v832 = vmul.f32 %v819, %v784
        %v833 = vmul.f32 %v824, %v785
        %v834 = vadd.f32 %v826, %v748
        %v835 = vadd.f32 %v827, %v751
        %v836 = vadd.f32 %v828, %v756
        %v837 = vadd.f32 %v829, %v759
        %v838 = vadd.f32 %v830, %v764
        %v839 = vadd.f32 %v831, %v767
        %v840 = vadd.f32 %v832, %v772
        %v841 = vadd.f32 %v833, %v775
        %vm842 = vcmask 39936
        %843 = vst.msk [vmem:[#allocation3] sm:$0xff] %vm842, %v834
        %844 = vst.msk [vmem:[#allocation3 + $0x8] sm:$0xff] %vm842, %v835
        %845 = vst.msk [vmem:[#allocation3 + $0x10] sm:$0xff] %vm842, %v836
        %846 = vst.msk [vmem:[#allocation3 + $0x18] sm:$0xff] %vm842, %v837
        %847 = vst.msk [vmem:[#allocation3 + $0x20] sm:$0xff] %vm842, %v838
        %848 = vst.msk [vmem:[#allocation3 + $0x28] sm:$0xff] %vm842, %v839
        %849 = vst.msk [vmem:[#allocation3 + $0x30] sm:$0xff] %vm842, %v840
        %850 = vst.msk [vmem:[#allocation3 + $0x38] sm:$0xff] %vm842, %v841
        %vm851 = vcmask 7168
        %852 = vst.msk [vmem:[#allocation2] sm:$0xff] %vm851, %v549
        %853 = vst.msk [vmem:[#allocation2 + $0x8] sm:$0xff] %vm851, %v550
        %854 = vst.msk [vmem:[#allocation2 + $0x10] sm:$0xff] %vm851, %v551
        %855 = vst.msk [vmem:[#allocation2 + $0x18] sm:$0xff] %vm851, %v552
        %856 = vst.msk [vmem:[#allocation2 + $0x20] sm:$0xff] %vm851, %v553
        %857 = vst.msk [vmem:[#allocation2 + $0x28] sm:$0xff] %vm851, %v554
        %858 = vst.msk [vmem:[#allocation2 + $0x30] sm:$0xff] %vm851, %v555
        %859 = vst.msk [vmem:[#allocation2 + $0x38] sm:$0xff] %vm851, %v556
        %860 = vset.pattern.permute.xlu0 1
        %861 = vperm.xlu0 %860, %v440
        %v862 = vpop.permute.xlu0 %861
        %864 = vset.pattern.permute.xlu0 1
        %865 = vperm.xlu0 %864, %v441
        %v866 = vpop.permute.xlu0 %865
        %868 = vset.pattern.permute.xlu0 1
        %869 = vperm.xlu0 %868, %v442
        %v870 = vpop.permute.xlu0 %869
        %872 = vset.pattern.permute.xlu0 1
        %873 = vperm.xlu0 %872, %v443
        %v874 = vpop.permute.xlu0 %873
        %876 = vset.pattern.permute.xlu0 1
        %877 = vperm.xlu0 %876, %v444
        %v878 = vpop.permute.xlu0 %877
        %880 = vset.pattern.permute.xlu0 1
        %881 = vperm.xlu0 %880, %v445
        %v882 = vpop.permute.xlu0 %881
        %884 = vset.pattern.permute.xlu0 1
        %885 = vperm.xlu0 %884, %v446
        %v886 = vpop.permute.xlu0 %885
        %888 = vset.pattern.permute.xlu0 1
        %889 = vperm.xlu0 %888, %v447
        %v890 = vpop.permute.xlu0 %889
        %v892 = vlaneseq
        %v893 = vshrl.u32 %v892, 7
        %v894 = vsub.s32 1, %v893
        %v895 = vrot.slane %v448, %v894
        %v896 = vadd.f32 %v862, %v895
        %v897 = vadd.f32 %v866, %v895
        %v898 = vadd.f32 %v870, %v895
        %v899 = vadd.f32 %v874, %v895
        %v900 = vadd.f32 %v878, %v895
        %v901 = vadd.f32 %v882, %v895
        %v902 = vadd.f32 %v886, %v895
        %v903 = vadd.f32 %v890, %v895
        %v904 = vmul.f32 %v896, 0.2
        %v905 = vmul.f32 %v897, 0.2
        %v906 = vmul.f32 %v898, 0.2
        %v907 = vmul.f32 %v899, 0.2
        %v908 = vmul.f32 %v900, 0.2
        %v909 = vmul.f32 %v901, 0.2
        %v910 = vmul.f32 %v902, 0.2
        %v911 = vmul.f32 %v903, 0.2
        %v912 = vmax.f32 %v896, %v904
        %v913 = vmax.f32 %v897, %v905
        %v914 = vmax.f32 %v898, %v906
        %v915 = vmax.f32 %v899, %v907
        %v916 = vmax.f32 %v900, %v908
        %v917 = vmax.f32 %v901, %v909
        %v918 = vmax.f32 %v902, %v910
        %v919 = vmax.f32 %v903, %v911
        %v920 = vsel %vm432, %v912, -9e+15
        %v921 = vsel %vm433, %v913, -9e+15
        %v922 = vsel %vm434, %v914, -9e+15
        %v923 = vsel %vm435, %v915, -9e+15
        %v924 = vsel %vm436, %v916, -9e+15
        %v925 = vsel %vm437, %v917, -9e+15
        %v926 = vsel %vm438, %v918, -9e+15
        %v927 = vsel %vm439, %v919, -9e+15
        %s928 = scalar_lea.vmem [#allocation2], 64
        %v929 = vld [vmem:[%s928] sm:$0xff]
        %v930 = vld [vmem:[%s928 + $0x8] sm:$0xff]
        %v931 = vld [vmem:[%s928 + $0x10] sm:$0xff]
        %v932 = vld [vmem:[%s928 + $0x18] sm:$0xff]
        %v933 = vld [vmem:[%s928 + $0x20] sm:$0xff]
        %v934 = vld [vmem:[%s928 + $0x28] sm:$0xff]
        %v935 = vld [vmem:[%s928 + $0x30] sm:$0xff]
        %v936 = vld [vmem:[%s928 + $0x38] sm:$0xff]
        %937 = vmax.xlane.f32.xlu0 %v920
        %v938 = vpop.xlane.xlu0 %937
        %939 = vmax.xlane.f32.xlu0 %v921
        %v940 = vpop.xlane.xlu0 %939
        %941 = vmax.xlane.f32.xlu0 %v922
        %v942 = vpop.xlane.xlu0 %941
        %943 = vmax.xlane.f32.xlu0 %v923
        %v944 = vpop.xlane.xlu0 %943
        %945 = vmax.xlane.f32.xlu0 %v924
        %v946 = vpop.xlane.xlu0 %945
        %947 = vmax.xlane.f32.xlu0 %v925
        %v948 = vpop.xlane.xlu0 %947
        %949 = vmax.xlane.f32.xlu0 %v926
        %v950 = vpop.xlane.xlu0 %949
        %951 = vmax.xlane.f32.xlu0 %v927
        %v952 = vpop.xlane.xlu0 %951
        %v953 = vmax.f32 %v929, %v938
        %v954 = vmax.f32 %v930, %v940
        %v955 = vmax.f32 %v931, %v942
        %v956 = vmax.f32 %v932, %v944
        %v957 = vmax.f32 %v933, %v946
        %v958 = vmax.f32 %v934, %v948
        %v959 = vmax.f32 %v935, %v950
        %v960 = vmax.f32 %v936, %v952
        %v961 = vsub.f32 %v929, %v953
        %v962 = vsub.f32 %v930, %v954
        %v963 = vsub.f32 %v931, %v955
        %v964 = vsub.f32 %v932, %v956
        %v965 = vsub.f32 %v933, %v957
        %v966 = vsub.f32 %v934, %v958
        %v967 = vsub.f32 %v935, %v959
        %v968 = vsub.f32 %v936, %v960
        %v969 = vmul.f32 %v961, 1.442695
        %v970 = vpow.pop %v969
        %v971 = vmul.f32 %v962, 1.442695
        %v972 = vpow.pop %v971
        %v973 = vmul.f32 %v963, 1.442695
        %v974 = vpow.pop %v973
        %v975 = vmul.f32 %v964, 1.442695
        %v976 = vpow.pop %v975
        %v977 = vmul.f32 %v965, 1.442695
        %v978 = vpow.pop %v977
        %v979 = vmul.f32 %v966, 1.442695
        %v980 = vpow.pop %v979
        %v981 = vmul.f32 %v967, 1.442695
        %v982 = vpow.pop %v981
        %v983 = vmul.f32 %v968, 1.442695
        %v984 = vpow.pop %v983
        %986 = vset.pattern.permute.xlu0 0
        %987 = vperm.xlu0 %986, %v953
        %v988 = vpop.permute.xlu0 %987
        %991 = vset.pattern.permute.xlu0 0
        %992 = vperm.xlu0 %991, %v954
        %v993 = vpop.permute.xlu0 %992
        %996 = vset.pattern.permute.xlu0 0
        %997 = vperm.xlu0 %996, %v955
        %v998 = vpop.permute.xlu0 %997
        %1001 = vset.pattern.permute.xlu0 0
        %1002 = vperm.xlu0 %1001, %v956
        %v1003 = vpop.permute.xlu0 %1002
        %1006 = vset.pattern.permute.xlu0 0
        %1007 = vperm.xlu0 %1006, %v957
        %v1008 = vpop.permute.xlu0 %1007
        %1011 = vset.pattern.permute.xlu0 0
        %1012 = vperm.xlu0 %1011, %v958
        %v1013 = vpop.permute.xlu0 %1012
        %1016 = vset.pattern.permute.xlu0 0
        %1017 = vperm.xlu0 %1016, %v959
        %v1018 = vpop.permute.xlu0 %1017
        %1021 = vset.pattern.permute.xlu0 0
        %1022 = vperm.xlu0 %1021, %v960
        %v1023 = vpop.permute.xlu0 %1022
        %v1025 = vsub.f32 %v920, %v988
        %v1026 = vsub.f32 %v921, %v993
        %v1027 = vsub.f32 %v922, %v998
        %v1028 = vsub.f32 %v923, %v1003
        %v1029 = vsub.f32 %v924, %v1008
        %v1030 = vsub.f32 %v925, %v1013
        %v1031 = vsub.f32 %v926, %v1018
        %v1032 = vsub.f32 %v927, %v1023
        %v1033 = vmul.f32 %v1025, 1.442695
        %v1034 = vpow.pop %v1033
        %v1035 = vmul.f32 %v1026, 1.442695
        %v1036 = vpow.pop %v1035
        %v1037 = vmul.f32 %v1027, 1.442695
        %v1038 = vpow.pop %v1037
        %v1039 = vmul.f32 %v1028, 1.442695
        %v1040 = vpow.pop %v1039
        %v1041 = vmul.f32 %v1029, 1.442695
        %v1042 = vpow.pop %v1041
        %v1043 = vmul.f32 %v1030, 1.442695
        %v1044 = vpow.pop %v1043
        %v1045 = vmul.f32 %v1031, 1.442695
        %v1046 = vpow.pop %v1045
        %v1047 = vmul.f32 %v1032, 1.442695
        %v1048 = vpow.pop %v1047
        %v1049 = vpack.c.bf16 %v1036, %v1034
        %v1050 = vpack.c.bf16 %v1040, %v1038
        %v1051 = vpack.c.bf16 %v1044, %v1042
        %v1052 = vpack.c.bf16 %v1048, %v1046
        %s1053 = scalar_lea.vmem %s331, 64 [#allocation10]
        %v1054 = vld [vmem:[%s1053] sm:$0xf]
        %v1055 = vld [vmem:[%s1053 + $0x4] sm:$0xf]
        %v1056 = vld [vmem:[%s1053 + $0x8] sm:$0xf]
        %v1057 = vld [vmem:[%s1053 + $0xc] sm:$0xf]
        %v1058 = vld [vmem:[%s1053 + $0x10] sm:$0xf]
        %v1059 = vld [vmem:[%s1053 + $0x14] sm:$0xf]
        %v1060 = vld [vmem:[%s1053 + $0x18] sm:$0xf]
        %v1061 = vld [vmem:[%s1053 + $0x1c] sm:$0xf]
        %v1062 = vld [vmem:[%s1053 + $0x20] sm:$0xf]
        %v1063 = vld [vmem:[%s1053 + $0x24] sm:$0xf]
        %v1064 = vld [vmem:[%s1053 + $0x28] sm:$0xf]
        %v1065 = vld [vmem:[%s1053 + $0x2c] sm:$0xf]
        %v1066 = vld [vmem:[%s1053 + $0x30] sm:$0xf]
        %v1067 = vld [vmem:[%s1053 + $0x34] sm:$0xf]
        %v1068 = vld [vmem:[%s1053 + $0x38] sm:$0xf]
        %v1069 = vld [vmem:[%s1053 + $0x3c] sm:$0xf]
        %v1086 = vunpack.c.l.b16 %v1054
        %v1087 = vunpack.c.l.b16 %v1055
        %v1088 = vunpack.c.l.b16 %v1056
        %v1089 = vunpack.c.l.b16 %v1057
        %v1090 = vunpack.c.l.b16 %v1058
        %v1091 = vunpack.c.l.b16 %v1059
        %v1092 = vunpack.c.l.b16 %v1060
        %v1093 = vunpack.c.l.b16 %v1061
        %v1094 = vunpack.c.l.b16 %v1062
        %v1095 = vunpack.c.l.b16 %v1063
        %v1096 = vunpack.c.l.b16 %v1064
        %v1097 = vunpack.c.l.b16 %v1065
        %v1098 = vunpack.c.l.b16 %v1066
        %v1099 = vunpack.c.l.b16 %v1067
        %v1100 = vunpack.c.l.b16 %v1068
        %v1101 = vunpack.c.l.b16 %v1069
        %v1102 = vpack.c.b16 %v1087, %v1086
        %v1103 = vpack.c.b16 %v1089, %v1088
        %v1104 = vpack.c.b16 %v1091, %v1090
        %v1105 = vpack.c.b16 %v1093, %v1092
        %v1106 = vpack.c.b16 %v1095, %v1094
        %v1107 = vpack.c.b16 %v1097, %v1096
        %v1108 = vpack.c.b16 %v1099, %v1098
        %v1109 = vpack.c.b16 %v1101, %v1100
        %1118 = vmatprep.subr.bf16.mxu0 0
        %1119 = vmatpush1.bf16.msra.mxu0 %v1102
        %1120 = vmatprep.subr.bf16.mxu0 0
        %1121 = vmatpush1.bf16.msra.mxu0 %v1103
        %1122 = vmatprep.subr.bf16.mxu0 0
        %1123 = vmatpush1.bf16.msra.mxu0 %v1104
        %1124 = vmatprep.subr.bf16.mxu0 0
        %1125 = vmatpush1.bf16.msra.mxu0 %v1105
        %1126 = vmatprep.subr.bf16.mxu0 0
        %1127 = vmatpush1.bf16.msra.mxu0 %v1106
        %1128 = vmatprep.subr.bf16.mxu0 0
        %1129 = vmatpush1.bf16.msra.mxu0 %v1107
        %1130 = vmatprep.subr.bf16.mxu0 0
        %1131 = vmatpush1.bf16.msra.mxu0 %v1108
        %1132 = vmatprep.subr.bf16.mxu0 0
        %1133 = vmatpush1.bf16.msra.mxu0 %v1109
        %1134 = vmatprep.subr.bf16.mxu0 0
        %1135 = vmatpush1.bf16.msra.mxu0 0
        %1136 = vmatprep.subr.bf16.mxu0 0
        %1137 = vmatpush1.bf16.msra.mxu0 0
        %1138 = vmatprep.subr.bf16.mxu0 0
        %1139 = vmatpush1.bf16.msra.mxu0 0
        %1140 = vmatprep.subr.bf16.mxu0 0
        %1141 = vmatpush1.bf16.msra.mxu0 0
        %1142 = vmatprep.subr.bf16.mxu0 0
        %1143 = vmatpush1.bf16.msra.mxu0 0
        %1144 = vmatprep.subr.bf16.mxu0 0
        %1145 = vmatpush1.bf16.msra.mxu0 0
        %1146 = vmatprep.subr.bf16.mxu0 0
        %1147 = vmatpush1.bf16.msra.mxu0 0
        %1148 = vmatprep.subr.bf16.mxu0 0
        %1149 = vmatpush1.bf16.msra.mxu0 0
        %1150 = vmatprep.mubr.bf16.mxu0 0
        %1151 = vmatmul.mubr.bf16.gmra.mrb[0].mxu0 %v1049
        %v1152 = vpop.f32.mrb[0].mxu0
        %v1153 = vadd.f32 0.0, %v1152
        %v1154 = vpop.f32.mrb[0].mxu0
        %v1155 = vpop.f32.mrb[0].mxu0
        %v1156 = vadd.f32 0.0, %v1155
        %v1157 = vpop.f32.mrb[0].mxu0
        %1158 = vmatprep.mubr.bf16.mxu0 0
        %1159 = vmatmul.mubr.bf16.gmra.mrb[0].mxu0 %v1050
        %v1160 = vpop.f32.mrb[0].mxu0
        %v1161 = vadd.f32 0.0, %v1160
        %v1162 = vpop.f32.mrb[0].mxu0
        %v1163 = vpop.f32.mrb[0].mxu0
        %v1164 = vadd.f32 0.0, %v1163
        %v1165 = vpop.f32.mrb[0].mxu0
        %1166 = vmatprep.mubr.bf16.mxu0 0
        %1167 = vmatmul.mubr.bf16.gmra.mrb[0].mxu0 %v1051
        %v1168 = vpop.f32.mrb[0].mxu0
        %v1169 = vadd.f32 0.0, %v1168
        %v1170 = vpop.f32.mrb[0].mxu0
        %v1171 = vpop.f32.mrb[0].mxu0
        %v1172 = vadd.f32 0.0, %v1171
        %v1173 = vpop.f32.mrb[0].mxu0
        %1174 = vmatprep.mubr.bf16.mxu0 0
        %1175 = vmatmul.mubr.bf16.gmra.mrb[0].mxu0 %v1052
        %v1176 = vpop.f32.mrb[0].mxu0
        %v1177 = vadd.f32 0.0, %v1176
        %v1178 = vpop.f32.mrb[0].mxu0
        %v1179 = vpop.f32.mrb[0].mxu0
        %v1180 = vadd.f32 0.0, %v1179
        %v1181 = vpop.f32.mrb[0].mxu0
        %1182 = vdwg.mxu0
        %s1183 = scalar_lea.vmem [#allocation3], 64
        %v1184 = vld [vmem:[%s1183] sm:$0xff]
        %v1185 = vld [vmem:[%s1183 + $0x8] sm:$0xff]
        %v1186 = vld [vmem:[%s1183 + $0x10] sm:$0xff]
        %v1187 = vld [vmem:[%s1183 + $0x18] sm:$0xff]
        %v1188 = vld [vmem:[%s1183 + $0x20] sm:$0xff]
        %v1189 = vld [vmem:[%s1183 + $0x28] sm:$0xff]
        %v1190 = vld [vmem:[%s1183 + $0x30] sm:$0xff]
        %v1191 = vld [vmem:[%s1183 + $0x38] sm:$0xff]
        %1193 = vset.pattern.permute.xlu0 0
        %1194 = vperm.xlu0 %1193, %v970
        %v1195 = vpop.permute.xlu0 %1194
        %1198 = vset.pattern.permute.xlu0 0
        %1199 = vperm.xlu0 %1198, %v972
        %v1200 = vpop.permute.xlu0 %1199
        %1203 = vset.pattern.permute.xlu0 0
        %1204 = vperm.xlu0 %1203, %v974
        %v1205 = vpop.permute.xlu0 %1204
        %1208 = vset.pattern.permute.xlu0 0
        %1209 = vperm.xlu0 %1208, %v976
        %v1210 = vpop.permute.xlu0 %1209
        %1213 = vset.pattern.permute.xlu0 0
        %1214 = vperm.xlu0 %1213, %v978
        %v1215 = vpop.permute.xlu0 %1214
        %1218 = vset.pattern.permute.xlu0 0
        %1219 = vperm.xlu0 %1218, %v980
        %v1220 = vpop.permute.xlu0 %1219
        %1223 = vset.pattern.permute.xlu0 0
        %1224 = vperm.xlu0 %1223, %v982
        %v1225 = vpop.permute.xlu0 %1224
        %1228 = vset.pattern.permute.xlu0 0
        %1229 = vperm.xlu0 %1228, %v984
        %v1230 = vpop.permute.xlu0 %1229
        %v1232 = vmul.f32 %v1195, %v1184
        %v1233 = vmul.f32 %v1200, %v1185
        %v1234 = vmul.f32 %v1205, %v1186
        %v1235 = vmul.f32 %v1210, %v1187
        %v1236 = vmul.f32 %v1215, %v1188
        %v1237 = vmul.f32 %v1220, %v1189
        %v1238 = vmul.f32 %v1225, %v1190
        %v1239 = vmul.f32 %v1230, %v1191
        %v1240 = vadd.f32 %v1232, %v1153
        %v1241 = vadd.f32 %v1233, %v1156
        %v1242 = vadd.f32 %v1234, %v1161
        %v1243 = vadd.f32 %v1235, %v1164
        %v1244 = vadd.f32 %v1236, %v1169
        %v1245 = vadd.f32 %v1237, %v1172
        %v1246 = vadd.f32 %v1238, %v1177
        %v1247 = vadd.f32 %v1239, %v1180
        %1248 = vst.msk [vmem:[%s1183] sm:$0xff] %vm842, %v1240
        %1249 = vst.msk [vmem:[%s1183 + $0x8] sm:$0xff] %vm842, %v1241
        %1250 = vst.msk [vmem:[%s1183 + $0x10] sm:$0xff] %vm842, %v1242
        %1251 = vst.msk [vmem:[%s1183 + $0x18] sm:$0xff] %vm842, %v1243
        %1252 = vst.msk [vmem:[%s1183 + $0x20] sm:$0xff] %vm842, %v1244
        %1253 = vst.msk [vmem:[%s1183 + $0x28] sm:$0xff] %vm842, %v1245
        %1254 = vst.msk [vmem:[%s1183 + $0x30] sm:$0xff] %vm842, %v1246
        %1255 = vst.msk [vmem:[%s1183 + $0x38] sm:$0xff] %vm842, %v1247
        %1256 = vst.msk [vmem:[%s928] sm:$0xff] %vm851, %v953
        %1257 = vst.msk [vmem:[%s928 + $0x8] sm:$0xff] %vm851, %v954
        %1258 = vst.msk [vmem:[%s928 + $0x10] sm:$0xff] %vm851, %v955
        %1259 = vst.msk [vmem:[%s928 + $0x18] sm:$0xff] %vm851, %v956
        %1260 = vst.msk [vmem:[%s928 + $0x20] sm:$0xff] %vm851, %v957
        %1261 = vst.msk [vmem:[%s928 + $0x28] sm:$0xff] %vm851, %v958
        %1262 = vst.msk [vmem:[%s928 + $0x30] sm:$0xff] %vm851, %v959
        %1263 = vst.msk [vmem:[%s928 + $0x38] sm:$0xff] %vm851, %v960
        %p1264 = scmp.eq.s32.totalorder %s32, 1
        // Predicated region
        $region57: #{gat_forward.5} parent=35 // pred_check
          %p1265 = pneg %p1264
        $region58: #{gat_forward.5} parent=35 // pred_check_branch
          %1267 = sbr.rel (%p1265) target = $region60
        $region59: #{gat_forward.5} parent=35 // pred_region
          %v1268 = vld [vmem:[#allocation3] sm:$0xff]
          %v1269 = vld [vmem:[#allocation3 + $0x8] sm:$0xff]
          %v1270 = vld [vmem:[#allocation3 + $0x10] sm:$0xff]
          %v1271 = vld [vmem:[#allocation3 + $0x18] sm:$0xff]
          %v1272 = vld [vmem:[#allocation3 + $0x20] sm:$0xff]
          %v1273 = vld [vmem:[#allocation3 + $0x28] sm:$0xff]
          %v1274 = vld [vmem:[#allocation3 + $0x30] sm:$0xff]
          %v1275 = vld [vmem:[#allocation3 + $0x38] sm:$0xff]
          %v1276 = vrcp.pop %v1268
          %v1277 = vrcp.pop %v1269
          %v1278 = vrcp.pop %v1270
          %v1279 = vrcp.pop %v1271
          %v1280 = vrcp.pop %v1272
          %v1281 = vrcp.pop %v1273
          %v1282 = vrcp.pop %v1274
          %v1283 = vrcp.pop %v1275
          %1285 = vset.pattern.permute.xlu0 4
          %1286 = vperm.xlu0 %1285, %v1276
          %v1287 = vpop.permute.xlu0 %1286
          %1290 = vset.pattern.permute.xlu0 4
          %1291 = vperm.xlu0 %1290, %v1277
          %v1292 = vpop.permute.xlu0 %1291
          %1295 = vset.pattern.permute.xlu0 4
          %1296 = vperm.xlu0 %1295, %v1278
          %v1297 = vpop.permute.xlu0 %1296
          %1300 = vset.pattern.permute.xlu0 4
          %1301 = vperm.xlu0 %1300, %v1279
          %v1302 = vpop.permute.xlu0 %1301
          %1305 = vset.pattern.permute.xlu0 4
          %1306 = vperm.xlu0 %1305, %v1280
          %v1307 = vpop.permute.xlu0 %1306
          %1310 = vset.pattern.permute.xlu0 4
          %1311 = vperm.xlu0 %1310, %v1281
          %v1312 = vpop.permute.xlu0 %1311
          %1315 = vset.pattern.permute.xlu0 4
          %1316 = vperm.xlu0 %1315, %v1282
          %v1317 = vpop.permute.xlu0 %1316
          %1320 = vset.pattern.permute.xlu0 4
          %1321 = vperm.xlu0 %1320, %v1283
          %v1322 = vpop.permute.xlu0 %1321
          %v1324 = vmul.f32 %v1268, %v1287
          %v1325 = vmul.f32 %v1269, %v1292
          %v1326 = vmul.f32 %v1270, %v1297
          %v1327 = vmul.f32 %v1271, %v1302
          %v1328 = vmul.f32 %v1272, %v1307
          %v1329 = vmul.f32 %v1273, %v1312
          %v1330 = vmul.f32 %v1274, %v1317
          %v1331 = vmul.f32 %v1275, %v1322
          %vm1332 = vcmp.gt.f32.partialorder %v1324, 0.0
          %vm1333 = vcmp.gt.f32.partialorder %v1325, 0.0
          %vm1334 = vcmp.gt.f32.partialorder %v1326, 0.0
          %vm1335 = vcmp.gt.f32.partialorder %v1327, 0.0
          %vm1336 = vcmp.gt.f32.partialorder %v1328, 0.0
          %vm1337 = vcmp.gt.f32.partialorder %v1329, 0.0
          %vm1338 = vcmp.gt.f32.partialorder %v1330, 0.0
          %vm1339 = vcmp.gt.f32.partialorder %v1331, 0.0
          %v1340 = vmin.f32 %v1324, 0.0
          %v1341 = vmin.f32 %v1325, 0.0
          %v1342 = vmin.f32 %v1326, 0.0
          %v1343 = vmin.f32 %v1327, 0.0
          %v1344 = vmin.f32 %v1328, 0.0
          %v1345 = vmin.f32 %v1329, 0.0
          %v1346 = vmin.f32 %v1330, 0.0
          %v1347 = vmin.f32 %v1331, 0.0
          %v1348 = vmul.f32 %v1340, 1.442695
          %v1349 = vpow.pop %v1348
          %v1350 = vmul.f32 %v1341, 1.442695
          %v1351 = vpow.pop %v1350
          %v1352 = vmul.f32 %v1342, 1.442695
          %v1353 = vpow.pop %v1352
          %v1354 = vmul.f32 %v1343, 1.442695
          %v1355 = vpow.pop %v1354
          %v1356 = vmul.f32 %v1344, 1.442695
          %v1357 = vpow.pop %v1356
          %v1358 = vmul.f32 %v1345, 1.442695
          %v1359 = vpow.pop %v1358
          %v1360 = vmul.f32 %v1346, 1.442695
          %v1361 = vpow.pop %v1360
          %v1362 = vmul.f32 %v1347, 1.442695
          %v1363 = vpow.pop %v1362
          %v1364 = vsub.f32 %v1349, 1.0
          %v1365 = vsub.f32 %v1351, 1.0
          %v1366 = vsub.f32 %v1353, 1.0
          %v1367 = vsub.f32 %v1355, 1.0
          %v1368 = vsub.f32 %v1357, 1.0
          %v1369 = vsub.f32 %v1359, 1.0
          %v1370 = vsub.f32 %v1361, 1.0
          %v1371 = vsub.f32 %v1363, 1.0
          %v1372 = vsel %vm1332, %v1324, %v1364
          %v1373 = vsel %vm1333, %v1325, %v1365
          %v1374 = vsel %vm1334, %v1326, %v1366
          %v1375 = vsel %vm1335, %v1327, %v1367
          %v1376 = vsel %vm1336, %v1328, %v1368
          %v1377 = vsel %vm1337, %v1329, %v1369
          %v1378 = vsel %vm1338, %v1330, %v1370
          %v1379 = vsel %vm1339, %v1331, %v1371
          %v1380 = vld [vmem:[%s1183] sm:$0xff]
          %v1381 = vld [vmem:[%s1183 + $0x8] sm:$0xff]
          %v1382 = vld [vmem:[%s1183 + $0x10] sm:$0xff]
          %v1383 = vld [vmem:[%s1183 + $0x18] sm:$0xff]
          %v1384 = vld [vmem:[%s1183 + $0x20] sm:$0xff]
          %v1385 = vld [vmem:[%s1183 + $0x28] sm:$0xff]
          %v1386 = vld [vmem:[%s1183 + $0x30] sm:$0xff]
          %v1387 = vld [vmem:[%s1183 + $0x38] sm:$0xff]
          %v1388 = vrcp.pop %v1380
          %v1389 = vrcp.pop %v1381
          %v1390 = vrcp.pop %v1382
          %v1391 = vrcp.pop %v1383
          %v1392 = vrcp.pop %v1384
          %v1393 = vrcp.pop %v1385
          %v1394 = vrcp.pop %v1386
          %v1395 = vrcp.pop %v1387
          %1397 = vset.pattern.permute.xlu0 4
          %1398 = vperm.xlu0 %1397, %v1388
          %v1399 = vpop.permute.xlu0 %1398
          %1402 = vset.pattern.permute.xlu0 4
          %1403 = vperm.xlu0 %1402, %v1389
          %v1404 = vpop.permute.xlu0 %1403
          %1407 = vset.pattern.permute.xlu0 4
          %1408 = vperm.xlu0 %1407, %v1390
          %v1409 = vpop.permute.xlu0 %1408
          %1412 = vset.pattern.permute.xlu0 4
          %1413 = vperm.xlu0 %1412, %v1391
          %v1414 = vpop.permute.xlu0 %1413
          %1417 = vset.pattern.permute.xlu0 4
          %1418 = vperm.xlu0 %1417, %v1392
          %v1419 = vpop.permute.xlu0 %1418
          %1422 = vset.pattern.permute.xlu0 4
          %1423 = vperm.xlu0 %1422, %v1393
          %v1424 = vpop.permute.xlu0 %1423
          %1427 = vset.pattern.permute.xlu0 4
          %1428 = vperm.xlu0 %1427, %v1394
          %v1429 = vpop.permute.xlu0 %1428
          %1432 = vset.pattern.permute.xlu0 4
          %1433 = vperm.xlu0 %1432, %v1395
          %v1434 = vpop.permute.xlu0 %1433
          %v1436 = vmul.f32 %v1380, %v1399
          %v1437 = vmul.f32 %v1381, %v1404
          %v1438 = vmul.f32 %v1382, %v1409
          %v1439 = vmul.f32 %v1383, %v1414
          %v1440 = vmul.f32 %v1384, %v1419
          %v1441 = vmul.f32 %v1385, %v1424
          %v1442 = vmul.f32 %v1386, %v1429
          %v1443 = vmul.f32 %v1387, %v1434
          %vm1444 = vcmp.gt.f32.partialorder %v1436, 0.0
          %vm1445 = vcmp.gt.f32.partialorder %v1437, 0.0
          %vm1446 = vcmp.gt.f32.partialorder %v1438, 0.0
          %vm1447 = vcmp.gt.f32.partialorder %v1439, 0.0
          %vm1448 = vcmp.gt.f32.partialorder %v1440, 0.0
          %vm1449 = vcmp.gt.f32.partialorder %v1441, 0.0
          %vm1450 = vcmp.gt.f32.partialorder %v1442, 0.0
          %vm1451 = vcmp.gt.f32.partialorder %v1443, 0.0
          %v1452 = vmin.f32 %v1436, 0.0
          %v1453 = vmin.f32 %v1437, 0.0
          %v1454 = vmin.f32 %v1438, 0.0
          %v1455 = vmin.f32 %v1439, 0.0
          %v1456 = vmin.f32 %v1440, 0.0
          %v1457 = vmin.f32 %v1441, 0.0
          %v1458 = vmin.f32 %v1442, 0.0
          %v1459 = vmin.f32 %v1443, 0.0
          %v1460 = vmul.f32 %v1452, 1.442695
          %v1461 = vpow.pop %v1460
          %v1462 = vmul.f32 %v1453, 1.442695
          %v1463 = vpow.pop %v1462
          %v1464 = vmul.f32 %v1454, 1.442695
          %v1465 = vpow.pop %v1464
          %v1466 = vmul.f32 %v1455, 1.442695
          %v1467 = vpow.pop %v1466
          %v1468 = vmul.f32 %v1456, 1.442695
          %v1469 = vpow.pop %v1468
          %v1470 = vmul.f32 %v1457, 1.442695
          %v1471 = vpow.pop %v1470
          %v1472 = vmul.f32 %v1458, 1.442695
          %v1473 = vpow.pop %v1472
          %v1474 = vmul.f32 %v1459, 1.442695
          %v1475 = vpow.pop %v1474
          %v1476 = vsub.f32 %v1461, 1.0
          %v1477 = vsub.f32 %v1463, 1.0
          %v1478 = vsub.f32 %v1465, 1.0
          %v1479 = vsub.f32 %v1467, 1.0
          %v1480 = vsub.f32 %v1469, 1.0
          %v1481 = vsub.f32 %v1471, 1.0
          %v1482 = vsub.f32 %v1473, 1.0
          %v1483 = vsub.f32 %v1475, 1.0
          %v1484 = vsel %vm1444, %v1436, %v1476
          %v1485 = vsel %vm1445, %v1437, %v1477
          %v1486 = vsel %vm1446, %v1438, %v1478
          %v1487 = vsel %vm1447, %v1439, %v1479
          %v1488 = vsel %vm1448, %v1440, %v1480
          %v1489 = vsel %vm1449, %v1441, %v1481
          %v1490 = vsel %vm1450, %v1442, %v1482
          %v1491 = vsel %vm1451, %v1443, %v1483
          %1500 = vrot.lane.b32.xlu0 %v1484, 4
          %v1501 = vpop.permute.xlu0 %1500
          %1502 = vrot.lane.b32.xlu0 %v1485, 4
          %v1503 = vpop.permute.xlu0 %1502
          %1504 = vrot.lane.b32.xlu0 %v1486, 4
          %v1505 = vpop.permute.xlu0 %1504
          %1506 = vrot.lane.b32.xlu0 %v1487, 4
          %v1507 = vpop.permute.xlu0 %1506
          %1508 = vrot.lane.b32.xlu0 %v1488, 4
          %v1509 = vpop.permute.xlu0 %1508
          %1510 = vrot.lane.b32.xlu0 %v1489, 4
          %v1511 = vpop.permute.xlu0 %1510
          %1512 = vrot.lane.b32.xlu0 %v1490, 4
          %v1513 = vpop.permute.xlu0 %1512
          %1514 = vrot.lane.b32.xlu0 %v1491, 4
          %v1515 = vpop.permute.xlu0 %1514
          %vm1524 = vcmask 31744
          %v1525 = vsel %vm1524, %v1372, %v1501
          %v1526 = vsel %vm1524, %v1373, %v1503
          %v1527 = vsel %vm1524, %v1374, %v1505
          %v1528 = vsel %vm1524, %v1375, %v1507
          %v1529 = vsel %vm1524, %v1376, %v1509
          %v1530 = vsel %vm1524, %v1377, %v1511
          %v1531 = vsel %vm1524, %v1378, %v1513
          %v1532 = vsel %vm1524, %v1379, %v1515
          %vm1533 = vcmask 64512
          %1534 = vst.msk [vmem:[%s370] sm:$0xff] %vm1533, %v1525
          %1535 = vst.msk [vmem:[%s370 + $0x8] sm:$0xff] %vm1533, %v1526
          %1536 = vst.msk [vmem:[%s370 + $0x10] sm:$0xff] %vm1533, %v1527
          %1537 = vst.msk [vmem:[%s370 + $0x18] sm:$0xff] %vm1533, %v1528
          %1538 = vst.msk [vmem:[%s370 + $0x20] sm:$0xff] %vm1533, %v1529
          %1539 = vst.msk [vmem:[%s370 + $0x28] sm:$0xff] %vm1533, %v1530
          %1540 = vst.msk [vmem:[%s370 + $0x30] sm:$0xff] %vm1533, %v1531
          %1541 = vst.msk [vmem:[%s370 + $0x38] sm:$0xff] %vm1533, %v1532
        $region60: #{gat_forward.5} parent=35 // pred_fallthru
          _
        %s1542 = sand.u32 %s153, 1
        %s1543 = scalar_lea.sflag [#allocation6], %s1542
        %s1544 = sand.u32 %s153, 1
        %s1545 = smul.addr %s1544, 64
        %s1546 = scalar_lea.vmem [#allocation12], %s1545
        // Predicated region
        $region61: #{gat_forward.5} parent=35 // pred_check
          %p1547 = pneg %p163
        $region62: #{gat_forward.5} parent=35 // pred_check_branch
          %1549 = sbr.rel (%p1547) target = $region64
        $region63: #{gat_forward.5} parent=35 // pred_region
          %s1550 = smul.u32 8, %s31
          %s1552 = ssub.s32 1024, 1024
          %1553 = vsyncadd %s1543, %s1552
          %s1554 = smul.addr %s1550, 128
          %s1555 = scalar_lea.hbm %s4, %s1554
          %s1556 = sshll.u32 %s1546, 4
          %s1557 = int_to_ptr.vmem [resolvable:$true] %s1556
          %1562 = dma.vmem_to_hbm [thread:$0]  %s1557, 1024, %s1555, %s1543, 128, 128, 8
        $region64: #{gat_forward.5} parent=35 // pred_fallthru
          _
      $region36: #{gat_forward.5} parent=5 // pred_fallthru
        _
      %p1563 = scmp.le.s32.totalorder 2, %s22
      // Predicated region
      $region65: #{gat_forward.5} parent=5 // pred_check
        %p1564 = pneg %p1563
      $region66: #{gat_forward.5} parent=5 // pred_check_branch
        %1566 = sbr.rel (%p1564) target = $region68
      $region67: #{gat_forward.5} parent=5 // pred_region
        %s1567 = ssub.s32 %s22, 2
        // Predicated region
        $region69: #{gat_forward.5} parent=67 // pred_check
          %p1568 = pneg %p169
        $region70: #{gat_forward.5} parent=67 // pred_check_branch
          %1570 = sbr.rel (%p1568) target = $region72
        $region71: #{gat_forward.5} parent=67 // pred_region
          %s1571 = sand.u32 %s154, 1
          %s1572 = scalar_lea.sflag [#allocation6], %s1571
          %s1573 = sand.u32 %s154, 1
          %s1574 = smul.addr %s1573, 64
          %s1575 = scalar_lea.vmem [#allocation12], %s1574
          %1576 = dma.done %s1572, 1024
        $region72: #{gat_forward.5} parent=67 // pred_fallthru
          _
      $region68: #{gat_forward.5} parent=5 // pred_fallthru
        _
    $region6: #{gat_forward.5} parent=1 // loop_footer
      %s26 = sadd.s32 1, %s22
    $region7: #{gat_forward.5} parent=1 // loop_footer_branch
      %21 = sbr.rel target = $region3
    $region8: #{gat_forward.5} parent=1 // loop_exit
      _
    %1577 = vsyncpa [#allocation5], 1
    %s1578 = scalar_lea.sflag [#allocation5], 1
    %1579 = vsyncpa %s1578, 1
    %1580 = vsyncpa [#allocation8], 1
    %s1581 = scalar_lea.sflag [#allocation8], 1
    %1582 = vsyncpa %s1581, 1
    %1583 = vsyncpa [#allocation11], 1
    %s1584 = scalar_lea.sflag [#allocation11], 1
    %1585 = vsyncpa %s1584, 1
    %1586 = vsyncpa [#allocation6], 1
    %s1587 = scalar_lea.sflag [#allocation6], 1
    %1588 = vsyncpa %s1587, 1

</llo_original>
